<compile_context>
chip_gen: v7x
topology: tpu7x:2x2x1
jax: 0.10.0
libtpu: 0.0.40
codegen_flags: <defaults>
</compile_context>

<pallas_src>
import functools

import jax
import jax.numpy as jnp
from jax.experimental import pallas as pl
from jax.experimental.pallas import tpu as pltpu


_VMEM_LIMIT = 32 * 1024 * 1024  # safe scoped-VMEM budget on v5e/v6e (128 MiB) and v7x (64 MiB)
_EPS = 1e-5


def _round_up(x, m):
    return (x + m - 1) // m * m


# ----------------------------------------------------------------------------
# Fused matmul kernel
#   out = act(A @ B + bias)          (bf16 MXU inputs, f32 accumulation)
#   optional in_bn     : BatchNorm(batch-stats)+ReLU applied to A in-kernel
#   optional want_stats: per-tile (sum, sum^2) of the output columns (for a following BN)
# ----------------------------------------------------------------------------
def _mm_kernel(*refs, in_bn, want_stats, activation, tm, m_real, count_in, eps):
    if in_bn:
        a_ref, b_ref, bias_ref, sin_ref = refs[:4]
        rest = refs[4:]
    else:
        a_ref, b_ref, bias_ref = refs[:3]
        rest = refs[3:]
    if want_stats:
        o_ref, sout_ref = rest
    else:
        (o_ref,) = rest

    a = a_ref[...]
    if in_bn:
        # training-mode BatchNorm + ReLU of the A operand (used by the ResBlock 1x1 conv)
        tot = jnp.sum(sin_ref[...], axis=0)                       # (2, K)
        mean = tot[0:1, :] * (1.0 / count_in)
        var = jnp.maximum(tot[1:2, :] * (1.0 / count_in) - mean * mean, 0.0)
        a = jnp.maximum((a - mean) * jax.lax.rsqrt(var + eps), 0.0)
        a = a.astype(jnp.bfloat16)

    acc = jnp.dot(a, b_ref[...], preferred_element_type=jnp.float32)
    y = acc + bias_ref[...]
    if activation == "relu":
        y = jnp.maximum(y, 0.0)
    elif activation == "tanh":
        y = jnp.tanh(y)
    o_ref[...] = y

    if want_stats:
        # exclude rows that are pure zero-padding of the M dimension
        row = pl.program_id(0) * tm + jax.lax.broadcasted_iota(jnp.int32, (tm, 1), 0)
        ym = jnp.where(row < m_real, y, 0.0)
        s = jnp.concatenate(
            [jnp.sum(ym, axis=0, keepdims=True),
             jnp.sum(ym * ym, axis=0, keepdims=True)], axis=0)    # (2, Npad)
        sout_ref[...] = s[None]


def matmul_bias(a, b, bias, *, activation="none", want_stats=False,
                in_bn_stats=None, in_bn_count=None, eps=_EPS):
    """(M,K) @ (K,N) + bias(N). M-tiled, lane-dense (N padded to 128), bf16 MXU inputs."""
    M, K = a.shape
    _, N = b.shape
    Npad = _round_up(N, 128)
    TM = min(256, _round_up(M, 8))
    M_pad = _round_up(M, TM)
    n_tiles = M_pad // TM
    in_bn = in_bn_stats is not None

    a_p = jnp.pad(a, ((0, M_pad - M), (0, 0)))
    if not in_bn:
        a_p = a_p.astype(jnp.bfloat16)            # in_bn path normalizes in f32 in-kernel
    b_p = jnp.pad(b, ((0, 0), (0, Npad - N))).astype(jnp.bfloat16)
    bias_p = jnp.pad(bias, (0, Npad - N)).astype(jnp.float32).reshape(1, Npad)

    inputs = [a_p, b_p, bias_p]
    in_specs = [
        pl.BlockSpec((TM, K), lambda i: (i, 0)),
        pl.BlockSpec((K, Npad), lambda i: (0, 0)),
        pl.BlockSpec((1, Npad), lambda i: (0, 0)),
    ]
    if in_bn:
        n_in = in_bn_stats.shape[0]
        inputs.append(in_bn_stats)
        in_specs.append(pl.BlockSpec((n_in, 2, K), lambda i: (0, 0, 0)))

    out_shapes = [jax.ShapeDtypeStruct((M_pad, Npad), jnp.float32)]
    out_specs = [pl.BlockSpec((TM, Npad), lambda i: (i, 0))]
    if want_stats:
        out_shapes.append(jax.ShapeDtypeStruct((n_tiles, 2, Npad), jnp.float32))
        out_specs.append(pl.BlockSpec((1, 2, Npad), lambda i: (i, 0, 0)))

    cost = pl.CostEstimate(
        flops=2 * M_pad * K * Npad,
        transcendentals=M_pad * Npad if activation == "tanh" else 0,
        bytes_accessed=a_p.size * a_p.dtype.itemsize + b_p.size * 2 + M_pad * Npad * 4)

    kernel = functools.partial(
        _mm_kernel, in_bn=in_bn, want_stats=want_stats, activation=activation,
        tm=TM, m_real=M, count_in=in_bn_count, eps=eps)

    res = pl.pallas_call(
        kernel,
        out_shape=tuple(out_shapes) if want_stats else out_shapes[0],
        grid=(n_tiles,),
        in_specs=in_specs,
        out_specs=tuple(out_specs) if want_stats else out_specs[0],
        compiler_params=pltpu.CompilerParams(
            dimension_semantics=("parallel",),
            vmem_limit_bytes=_VMEM_LIMIT),
        cost_estimate=cost,
    )(*inputs)

    if want_stats:
        y, stats = res
        return y[:M, :N], stats[:, :, :N]
    return res[:M, :N]


# ----------------------------------------------------------------------------
# Blocked BatchNorm "apply" kernel (stats come as per-tile partials from the conv kernel)
#   y = (h - mean) * rsqrt(var + eps)  [+ ReLU] [+ residual]
# ----------------------------------------------------------------------------
def _bn_apply_kernel(*refs, relu, residual, count, eps):
    if residual:
        h_ref, s_ref, r_ref, o_ref = refs
    else:
        h_ref, s_ref, o_ref = refs
    tot = jnp.sum(s_ref[...], axis=0)                             # (2, C)
    mean = tot[0:1, :] * (1.0 / count)
    var = jnp.maximum(tot[1:2, :] * (1.0 / count) - mean * mean, 0.0)
    y = (h_ref[...] - mean) * jax.lax.rsqrt(var + eps)
    if relu:
        y = jnp.maximum(y, 0.0)
    if residual:
        y = y + r_ref[...]
    o_ref[...] = y


def bn_apply(h, stats, count, *, relu=False, residual=None, eps=_EPS):
    M, C = h.shape
    TR = min(512, _round_up(M, 8))
    M_pad = _round_up(M, TR)
    n_s = stats.shape[0]

    h_p = jnp.pad(h, ((0, M_pad - M), (0, 0)))
    inputs = [h_p, stats]
    in_specs = [pl.BlockSpec((TR, C), lambda i: (i, 0)),
                pl.BlockSpec((n_s, 2, C), lambda i: (0, 0, 0))]
    if residual is not None:
        inputs.append(jnp.pad(residual, ((0, M_pad - M), (0, 0))))
        in_specs.append(pl.BlockSpec((TR, C), lambda i: (i, 0)))

    y = pl.pallas_call(
        functools.partial(_bn_apply_kernel, relu=relu, residual=residual is not None,
                          count=count, eps=eps),
        out_shape=jax.ShapeDtypeStruct((M_pad, C), jnp.float32),
        grid=(M_pad // TR,),
        in_specs=in_specs,
        out_specs=pl.BlockSpec((TR, C), lambda i: (i, 0)),
        compiler_params=pltpu.CompilerParams(
            dimension_semantics=("parallel",),
            vmem_limit_bytes=_VMEM_LIMIT),
    )(*inputs)
    return y[:M]


# ----------------------------------------------------------------------------
# Vector quantization: nearest codeword (first argmin) + codebook gather (one-hot matmul)
# ----------------------------------------------------------------------------
def _vq_kernel(z_ref, et_ref, e2_ref, e_ref, zq_ref):
    z = z_ref[...]                                                # (TM, D) f32
    # argmin_k ||z - e_k||^2 == argmin_k (||e_k||^2 - 2 z.e_k)   (||z||^2 is row-constant)
    score = e2_ref[...] - 2.0 * jnp.dot(z, et_ref[...], preferred_element_type=jnp.float32)
    K = score.shape[1]
    best = jnp.min(score, axis=1, keepdims=True)
    iota = jax.lax.broadcasted_iota(jnp.int32, score.shape, 1)
    idx = jnp.min(jnp.where(score <= best, iota, K), axis=1, keepdims=True)
    onehot = (iota == idx).astype(jnp.float32)                    # (TM, K)
    zq_ref[...] = jnp.dot(onehot, e_ref[...], preferred_element_type=jnp.float32)


def vector_quantize(z_flat, codebook):
    # NOTE: forward() never consumes the argmin indices, so they are not stored at all
    # (eliminates the lane-sparse (M,1) int32 store of the previous version).
    M, D = z_flat.shape
    K = codebook.shape[0]
    TM = min(256, _round_up(M, 8))
    M_pad = _round_up(M, TM)
    z_p = jnp.pad(z_flat, ((0, M_pad - M), (0, 0)))
    e_t = codebook.T                                              # (D, K), constant
    e2 = jnp.sum(codebook * codebook, axis=1).reshape(1, K)       # (1, K), constant

    zq = pl.pallas_call(
        _vq_kernel,
        out_shape=jax.ShapeDtypeStruct((M_pad, D), jnp.float32),
        grid=(M_pad // TM,),
        in_specs=[pl.BlockSpec((TM, D), lambda i: (i, 0)),
                  pl.BlockSpec((D, K), lambda i: (0, 0)),
                  pl.BlockSpec((1, K), lambda i: (0, 0)),
                  pl.BlockSpec((K, D), lambda i: (0, 0))],
        out_specs=pl.BlockSpec((TM, D), lambda i: (i, 0)),
        compiler_params=pltpu.CompilerParams(
            dimension_semantics=("parallel",),
            vmem_limit_bytes=_VMEM_LIMIT),
    )(z_p, e_t, e2, codebook)
    return zq[:M]


# ----------------------------------------------------------------------------
# Conv glue (im2col in XLA, all matmuls in Pallas)
# ----------------------------------------------------------------------------
def _im2col(x, kh, kw, stride, pad):
    N, H, W, C = x.shape
    xp = jnp.pad(x, ((0, 0), (pad, pad), (pad, pad), (0, 0)))
    Ho = (H + 2 * pad - kh) // stride + 1
    Wo = (W + 2 * pad - kw) // stride + 1
    cols = []
    for i in range(kh):
        for j in range(kw):
            cols.append(xp[:, i:i + stride * Ho:stride, j:j + stride * Wo:stride, :])
    patches = jnp.concatenate(cols, axis=-1)                      # (N, Ho, Wo, kh*kw*C)
    return patches.reshape(N * Ho * Wo, kh * kw * C), (N, Ho, Wo)


def conv2d(x, w, b, stride, pad, *, activation="none", want_stats=False):
    # w layout: (kh, kw, Cin, Cout)
    kh, kw, Cin, Cout = w.shape
    a, (N, Ho, Wo) = _im2col(x, kh, kw, stride, pad)
    res = matmul_bias(a, w.reshape(kh * kw * Cin, Cout), b,
                      activation=activation, want_stats=want_stats)
    if want_stats:
        y, s = res
        return y.reshape(N, Ho, Wo, Cout), s
    return res.reshape(N, Ho, Wo, Cout)


def _convt_big_weight(w):
    # Sub-pixel decomposition of ConvTranspose2d(k=4, s=2, p=1):
    #   y[2u+rh, 2v+rw, co] = sum_{m,ci} x[m, ci] * W[ci, co, j]  with j = o + p - 2m.
    # Each output phase (rh, rw) only touches taps {u-1, u} (rh=0) or {u, u+1} (rh=1) of the
    # UNDILATED input, so the whole ConvT is one stride-1 3x3 conv producing 4*Cout channels.
    kh, kw, Cin, Cout = w.shape
    assert kh == 4 and kw == 4, "module only uses 4x4 transposed convs"
    tap = {0: ((0, 3), (1, 1)), 1: ((1, 2), (2, 0))}   # phase -> ((3x3 tap, kernel idx), ...)
    wb = jnp.zeros((3, 3, Cin, 2, 2, Cout), w.dtype)
    for rh in (0, 1):
        for rw in (0, 1):
            for th, jh in tap[rh]:
                for tw, jw in tap[rw]:
                    wb = wb.at[th, tw, :, rh, rw, :].set(w[jh, jw])
    return wb.reshape(3, 3, Cin, 4 * Cout)


def conv_transpose2d_pre(x, w, b, *, pre_relu=False, activation="none", want_stats=False):
    # Returns the pre-interleave (M, 4*Cout) slab (lane dense: 4*32 = 128 for dim=32).
    N, H, W, Cin = x.shape
    Cout = w.shape[3]
    wb = _convt_big_weight(w)
    bb = jnp.tile(b, 4)
    if pre_relu:
        x = jnp.maximum(x, 0.0)
    a, _ = _im2col(x, 3, 3, 1, 1)
    res = matmul_bias(a, wb.reshape(9 * Cin, 4 * Cout), bb,
                      activation=activation, want_stats=want_stats)
    geom = (N, H, W, Cout)
    if want_stats:
        y, s = res
        return y, s, geom
    return res, None, geom


def _interleave_phases(y, geom):
    N, H, W, Cout = geom
    y = y.reshape(N, H, W, 2, 2, Cout)
    y = jnp.transpose(y, (0, 1, 3, 2, 4, 5))
    return y.reshape(N, 2 * H, 2 * W, Cout)


def conv_transpose2d(x, w, b, *, pre_relu=False, activation="none"):
    y, _, geom = conv_transpose2d_pre(x, w, b, pre_relu=pre_relu, activation=activation)
    return _interleave_phases(y, geom)


def res_block(x_nhwc, p, eps=_EPS):
    # x + BN2(Conv1x1(ReLU(BN1(Conv3x3(ReLU(x))))))   -- fully fused:
    #   * ReLU folded into the im2col producer of Conv3x3,
    #   * BN1 stats produced by the Conv3x3 matmul, BN1+ReLU applied inside the 1x1 conv,
    #   * BN2 stats produced by the 1x1 conv matmul, BN2 + residual add in one kernel.
    N, H, W, C = x_nhwc.shape
    M = N * H * W
    a1, _ = _im2col(jnp.maximum(x_nhwc, 0.0), 3, 3, 1, 1)
    h1, s1 = matmul_bias(a1, p["w1"].reshape(9 * C, C), p["b1"], want_stats=True)
    h2, s2 = matmul_bias(h1, p["w2"].reshape(C, C), p["b2"], want_stats=True,
                         in_bn_stats=s1, in_bn_count=M, eps=eps)
    y = bn_apply(h2, s2, M, residual=x_nhwc.reshape(M, C), eps=eps)
    return y.reshape(N, H, W, C)


# ----------------------------------------------------------------------------
# Parameter init (deterministic, matches module __init__ shapes / init schemes)
# ----------------------------------------------------------------------------
def _xavier_uniform(key, shape):
    kh, kw, cin, cout = shape
    fan_in, fan_out = kh * kw * cin, kh * kw * cout
    bound = (6.0 / (fan_in + fan_out)) ** 0.5
    return jax.random.uniform(key, shape, jnp.float32, -bound, bound)


def init_params(key, input_dim, dim, K):
    keys = iter(jax.random.split(key, 16))

    def conv(kh, kw, cin, cout):
        return {"w": _xavier_uniform(next(keys), (kh, kw, cin, cout)),
                "b": jnp.zeros((cout,), jnp.float32)}

    def res(d):
        c1, c2 = conv(3, 3, d, d), conv(1, 1, d, d)
        return {"w1": c1["w"], "b1": c1["b"], "w2": c2["w"], "b2": c2["b"]}

    return {
        "enc_c1": conv(4, 4, input_dim, dim),
        "enc_c2": conv(4, 4, dim, dim),
        "enc_res1": res(dim),
        "enc_res2": res(dim),
        "dec_res1": res(dim),
        "dec_res2": res(dim),
        "dec_t1": conv(4, 4, dim, dim),
        "dec_t2": conv(4, 4, dim, input_dim),
        "codebook": jax.random.uniform(next(keys), (K, dim), jnp.float32,
                                       -1.0 / K, 1.0 / K),
    }


# ----------------------------------------------------------------------------
# Forward pass  (== VectorQuantizedVAE.forward, image_dim=2)
# ----------------------------------------------------------------------------
def vqvae_forward(x_nchw, p):
    x = jnp.transpose(x_nchw, (0, 2, 3, 1))                      # NCHW -> NHWC

    # encoder: Conv4x4/s2 -> BN+ReLU -> Conv4x4/s2 -> Res -> Res
    h, s = conv2d(x, p["enc_c1"]["w"], p["enc_c1"]["b"], 2, 1, want_stats=True)
    N, Ho, Wo, C = h.shape
    M = N * Ho * Wo
    h = bn_apply(h.reshape(M, C), s, M, relu=True).reshape(N, Ho, Wo, C)
    h = conv2d(h, p["enc_c2"]["w"], p["enc_c2"]["b"], 2, 1)
    h = res_block(h, p["enc_res1"])
    z_e = res_block(h, p["enc_res2"])                            # (N, H/4, W/4, dim)

    # codebook.straight_through: nearest-codeword quantization (forward value)
    Nq, Hq, Wq, D = z_e.shape
    zq_flat = vector_quantize(z_e.reshape(Nq * Hq * Wq, D), p["codebook"])
    z_q = zq_flat.reshape(Nq, Hq, Wq, D)

    # decoder: Res -> Res -> ReLU -> ConvT -> BN+ReLU -> ConvT -> Tanh
    h = res_block(z_q, p["dec_res1"])
    h = res_block(h, p["dec_res2"])
    y_pre, s1, geom = conv_transpose2d_pre(h, p["dec_t1"]["w"], p["dec_t1"]["b"],
                                           pre_relu=True, want_stats=True)
    Ng, Hg, Wg, Cg = geom
    Mg = Ng * Hg * Wg
    # fold the 4 sub-pixel phase groups into per-channel BN stats, tiled back per column
    sf = s1.reshape(s1.shape[0], 2, 4, Cg).sum(axis=2, keepdims=True)
    st = jnp.broadcast_to(sf, (s1.shape[0], 2, 4, Cg)).reshape(s1.shape[0], 2, 4 * Cg)
    h_bn = bn_apply(y_pre, st, 4 * Mg, relu=True)                # lane-dense (Mg, 4*dim)
    h = _interleave_phases(h_bn, geom)                           # (N, H/2, W/2, dim)
    x_tilde = conv_transpose2d(h, p["dec_t2"]["w"], p["dec_t2"]["b"], activation="tanh")

    # back to the PyTorch NCHW convention
    return (jnp.transpose(x_tilde, (0, 3, 1, 2)),
            jnp.transpose(z_e, (0, 3, 1, 2)),
            jnp.transpose(z_q, (0, 3, 1, 2)))


# ----------------------------------------------------------------------------
if __name__ == "__main__":
    INPUT_DIM, DIM, K = 3, 32, 512
    B, H, W = 2, 16, 16

    key = jax.random.PRNGKey(0)
    k_param, k_x = jax.random.split(key)
    params = init_params(k_param, INPUT_DIM, DIM, K)
    x = jax.random.normal(k_x, (B, INPUT_DIM, H, W), jnp.float32)   # NCHW input

    fwd = jax.jit(vqvae_forward)
    x_tilde, z_e_x, z_q_x = fwd(x, params)
    jax.block_until_ready((x_tilde, z_e_x, z_q_x))

    assert x_tilde.shape == (B, INPUT_DIM, H, W)
    assert z_e_x.shape == (B, DIM, H // 4, W // 4)
    assert z_q_x.shape == (B, DIM, H // 4, W // 4)
    assert bool(jnp.all(jnp.isfinite(x_tilde)))
    print("KERNEL_OK")
</pallas_src>

<mosaic_0001>
module attributes {stable_mosaic.version = 11 : i64} {
  func.func @_bn_apply_kernel(%arg0: i32, %arg1: memref<128x32xf32, #tpu.memory_space<vmem>>, %arg2: memref<1x2x32xf32, #tpu.memory_space<vmem>>, %arg3: memref<128x32xf32, #tpu.memory_space<vmem>>) attributes {dimension_semantics = [#tpu.dimension_semantics<parallel>], iteration_bounds = array<i64: 1>, scalar_prefetch = 0 : i64, scratch_operands = 0 : i64, tpu.core_type = #tpu.core_type<tc>, window_params = [{transform_indices = @transform_0, window_bounds = array<i64: 128, 32>}, {pipeline_mode = #tpu.pipeline_mode<synchronous>, transform_indices = @transform_1, window_bounds = array<i64: 1, 2, 32>}, {transform_indices = @transform_2, window_bounds = array<i64: 128, 32>}]} {
    %c0 = arith.constant 0 : index
    %c0_0 = arith.constant 0 : index
    %c0_1 = arith.constant 0 : index
    %0 = vector.load %arg2[%c0, %c0_0, %c0_1] : memref<1x2x32xf32, #tpu.memory_space<vmem>>, vector<1x2x32xf32>
    %cst = arith.constant dense<0.000000e+00> : vector<2x32xf32>
    %1 = vector.multi_reduction <add>, %0, %cst [0] : vector<1x2x32xf32> to vector<2x32xf32>
    %2 = vector.extract_strided_slice %1 {offsets = [0, 0], sizes = [1, 32], strides = [1, 1]} : vector<2x32xf32> to vector<1x32xf32>
    %cst_2 = arith.constant 7.812500e-03 : f32
    %3 = vector.broadcast %cst_2 : f32 to vector<1x32xf32>
    %4 = arith.mulf %2, %3 : vector<1x32xf32>
    %5 = vector.extract_strided_slice %1 {offsets = [1, 0], sizes = [1, 32], strides = [1, 1]} : vector<2x32xf32> to vector<1x32xf32>
    %cst_3 = arith.constant 7.812500e-03 : f32
    %6 = vector.broadcast %cst_3 : f32 to vector<1x32xf32>
    %7 = arith.mulf %5, %6 : vector<1x32xf32>
    %8 = arith.mulf %4, %4 : vector<1x32xf32>
    %9 = arith.subf %7, %8 : vector<1x32xf32>
    %cst_4 = arith.constant 0.000000e+00 : f32
    %10 = vector.broadcast %cst_4 : f32 to vector<1x32xf32>
    %11 = arith.maximumf %9, %10 : vector<1x32xf32>
    %c0_5 = arith.constant 0 : index
    %c0_6 = arith.constant 0 : index
    %12 = vector.load %arg1[%c0_5, %c0_6] : memref<128x32xf32, #tpu.memory_space<vmem>>, vector<128x32xf32>
    %13 = vector.broadcast %4 : vector<1x32xf32> to vector<128x32xf32>
    %14 = arith.subf %12, %13 : vector<128x32xf32>
    %cst_7 = arith.constant 9.99999974E-6 : f32
    %15 = vector.broadcast %cst_7 : f32 to vector<1x32xf32>
    %16 = arith.addf %11, %15 : vector<1x32xf32>
    %17 = math.rsqrt %16 : vector<1x32xf32>
    %18 = vector.broadcast %17 : vector<1x32xf32> to vector<128x32xf32>
    %19 = arith.mulf %14, %18 : vector<128x32xf32>
    %cst_8 = arith.constant 0.000000e+00 : f32
    %20 = vector.broadcast %cst_8 : f32 to vector<128x32xf32>
    %21 = arith.maximumf %19, %20 : vector<128x32xf32>
    %c0_9 = arith.constant 0 : index
    %c0_10 = arith.constant 0 : index
    %22 = vector.load %arg3[%c0_9, %c0_10] : memref<128x32xf32, #tpu.memory_space<vmem>>, vector<128x32xf32>
    tpu.vector_store %arg3[%c0_9, %c0_10], %21 {strides = array<i32>} : memref<128x32xf32, #tpu.memory_space<vmem>>, vector<128x32xf32>,
    return
  }
  func.func @transform_0(%arg0: i32) -> (i32, i32) {
    %c0_i32 = arith.constant 0 : i32
    %c0_i32_0 = arith.constant 0 : i32
    return %arg0, %c0_i32 : i32, i32
  }
  func.func @transform_1(%arg0: i32) -> (i32, i32, i32) {
    %c0_i32 = arith.constant 0 : i32
    %c0_i32_0 = arith.constant 0 : i32
    %c0_i32_1 = arith.constant 0 : i32
    %c0_i32_2 = arith.constant 0 : i32
    return %c0_i32, %c0_i32_0, %c0_i32_1 : i32, i32, i32
  }
  func.func @transform_2(%arg0: i32) -> (i32, i32) {
    %c0_i32 = arith.constant 0 : i32
    %c0_i32_0 = arith.constant 0 : i32
    return %arg0, %c0_i32 : i32, i32
  }
}

module attributes {stable_mosaic.version = 11 : i64} {
  func.func @_mm_kernel(%arg0: i32, %arg1: memref<128x48xbf16, #tpu.memory_space<vmem>>, %arg2: memref<48x128xbf16, #tpu.memory_space<vmem>>, %arg3: memref<1x128xf32, #tpu.memory_space<vmem>>, %arg4: memref<128x128xf32, #tpu.memory_space<vmem>>, %arg5: memref<1x2x128xf32, #tpu.memory_space<vmem>>) attributes {dimension_semantics = [#tpu.dimension_semantics<parallel>], iteration_bounds = array<i64: 1>, scalar_prefetch = 0 : i64, scratch_operands = 0 : i64, tpu.core_type = #tpu.core_type<tc>, window_params = [{transform_indices = @transform_0, window_bounds = array<i64: 128, 48>}, {pipeline_mode = #tpu.pipeline_mode<synchronous>, transform_indices = @transform_1, window_bounds = array<i64: 48, 128>}, {pipeline_mode = #tpu.pipeline_mode<synchronous>, transform_indices = @transform_2, window_bounds = array<i64: 1, 128>}, {transform_indices = @transform_3, window_bounds = array<i64: 128, 128>}, {transform_indices = @transform_4, window_bounds = array<i64: 1, 2, 128>}]} {
    %c0 = arith.constant 0 : index
    %c0_0 = arith.constant 0 : index
    %0 = vector.load %arg1[%c0, %c0_0] : memref<128x48xbf16, #tpu.memory_space<vmem>>, vector<128x48xbf16>
    %c0_1 = arith.constant 0 : index
    %c0_2 = arith.constant 0 : index
    %1 = vector.load %arg2[%c0_1, %c0_2] : memref<48x128xbf16, #tpu.memory_space<vmem>>, vector<48x128xbf16>
    %cst = arith.constant dense<0.000000e+00> : vector<128x128xf32>
    %2 = tpu.matmul %0, %1, %cst {dimension_numbers = #tpu.dot_dimension_numbers<[1], [0], [0], [1], [0, 0, 1, 1], [], []>} : vector<128x48xbf16>, vector<48x128xbf16>, vector<128x128xf32> -> vector<128x128xf32>
    %c0_3 = arith.constant 0 : index
    %c0_4 = arith.constant 0 : index
    %3 = vector.load %arg3[%c0_3, %c0_4] : memref<1x128xf32, #tpu.memory_space<vmem>>, vector<1x128xf32>
    %4 = vector.broadcast %3 : vector<1x128xf32> to vector<128x128xf32>
    %5 = arith.addf %2, %4 : vector<128x128xf32>
    %c0_5 = arith.constant 0 : index
    %c0_6 = arith.constant 0 : index
    %6 = vector.load %arg4[%c0_5, %c0_6] : memref<128x128xf32, #tpu.memory_space<vmem>>, vector<128x128xf32>
    tpu.vector_store %arg4[%c0_5, %c0_6], %5 {strides = array<i32>} : memref<128x128xf32, #tpu.memory_space<vmem>>, vector<128x128xf32>,
    %c128_i32 = arith.constant 128 : i32
    %7 = arith.muli %arg0, %c128_i32 : i32
    %8 = tpu.iota {dimensions = array<i32: 0>} : vector<128x1xi32>
    %9 = vector.broadcast %7 : i32 to vector<128x1xi32>
    %10 = arith.addi %9, %8 : vector<128x1xi32>
    %c128_i32_7 = arith.constant 128 : i32
    %11 = vector.broadcast %c128_i32_7 : i32 to vector<128x1xi32>
    %12 = arith.cmpi slt, %10, %11 : vector<128x1xi32>
    %cst_8 = arith.constant 0.000000e+00 : f32
    %13 = vector.shape_cast %12 : vector<128x1xi1> to vector<128x1xi1>
    %14 = vector.broadcast %13 : vector<128x1xi1> to vector<128x128xi1>
    %15 = vector.broadcast %cst_8 : f32 to vector<128x128xf32>
    %16 = arith.select %14, %5, %15 : vector<128x128xi1>, vector<128x128xf32>
    %cst_9 = arith.constant dense<0.000000e+00> : vector<128xf32>
    %17 = vector.multi_reduction <add>, %16, %cst_9 [0] : vector<128x128xf32> to vector<128xf32>
    %18 = vector.shape_cast %17 : vector<128xf32> to vector<1x128xf32>
    %19 = arith.mulf %16, %16 : vector<128x128xf32>
    %cst_10 = arith.constant dense<0.000000e+00> : vector<128xf32>
    %20 = vector.multi_reduction <add>, %19, %cst_10 [0] : vector<128x128xf32> to vector<128xf32>
    %21 = vector.shape_cast %20 : vector<128xf32> to vector<1x128xf32>
    %22 = tpu.concatenate %18, %21 in 0 : vector<1x128xf32>, vector<1x128xf32> -> vector<2x128xf32>
    %23 = vector.shape_cast %22 : vector<2x128xf32> to vector<1x2x128xf32>
    %c0_11 = arith.constant 0 : index
    %c0_12 = arith.constant 0 : index
    %c0_13 = arith.constant 0 : index
    %24 = vector.load %arg5[%c0_11, %c0_12, %c0_13] : memref<1x2x128xf32, #tpu.memory_space<vmem>>, vector<1x2x128xf32>
    tpu.vector_store %arg5[%c0_11, %c0_12, %c0_13], %23 {strides = array<i32>} : memref<1x2x128xf32, #tpu.memory_space<vmem>>, vector<1x2x128xf32>,
    return
  }
  func.func @transform_0(%arg0: i32) -> (i32, i32) {
    %c0_i32 = arith.constant 0 : i32
    %c0_i32_0 = arith.constant 0 : i32
    return %arg0, %c0_i32 : i32, i32
  }
  func.func @transform_1(%arg0: i32) -> (i32, i32) {
    %c0_i32 = arith.constant 0 : i32
    %c0_i32_0 = arith.constant 0 : i32
    %c0_i32_1 = arith.constant 0 : i32
    return %c0_i32, %c0_i32_0 : i32, i32
  }
  func.func @transform_2(%arg0: i32) -> (i32, i32) {
    %c0_i32 = arith.constant 0 : i32
    %c0_i32_0 = arith.constant 0 : i32
    %c0_i32_1 = arith.constant 0 : i32
    return %c0_i32, %c0_i32_0 : i32, i32
  }
  func.func @transform_3(%arg0: i32) -> (i32, i32) {
    %c0_i32 = arith.constant 0 : i32
    %c0_i32_0 = arith.constant 0 : i32
    return %arg0, %c0_i32 : i32, i32
  }
  func.func @transform_4(%arg0: i32) -> (i32, i32, i32) {
    %c0_i32 = arith.constant 0 : i32
    %c0_i32_0 = arith.constant 0 : i32
    %c0_i32_1 = arith.constant 0 : i32
    return %arg0, %c0_i32, %c0_i32_0 : i32, i32, i32
  }
}

module attributes {stable_mosaic.version = 11 : i64} {
  func.func @_mm_kernel(%arg0: i32, %arg1: memref<32x512xbf16, #tpu.memory_space<vmem>>, %arg2: memref<512x128xbf16, #tpu.memory_space<vmem>>, %arg3: memref<1x128xf32, #tpu.memory_space<vmem>>, %arg4: memref<32x128xf32, #tpu.memory_space<vmem>>) attributes {dimension_semantics = [#tpu.dimension_semantics<parallel>], iteration_bounds = array<i64: 1>, scalar_prefetch = 0 : i64, scratch_operands = 0 : i64, tpu.core_type = #tpu.core_type<tc>, window_params = [{transform_indices = @transform_0, window_bounds = array<i64: 32, 512>}, {pipeline_mode = #tpu.pipeline_mode<synchronous>, transform_indices = @transform_1, window_bounds = array<i64: 512, 128>}, {pipeline_mode = #tpu.pipeline_mode<synchronous>, transform_indices = @transform_2, window_bounds = array<i64: 1, 128>}, {transform_indices = @transform_3, window_bounds = array<i64: 32, 128>}]} {
    %c0 = arith.constant 0 : index
    %c0_0 = arith.constant 0 : index
    %0 = vector.load %arg1[%c0, %c0_0] : memref<32x512xbf16, #tpu.memory_space<vmem>>, vector<32x512xbf16>
    %c0_1 = arith.constant 0 : index
    %c0_2 = arith.constant 0 : index
    %1 = vector.load %arg2[%c0_1, %c0_2] : memref<512x128xbf16, #tpu.memory_space<vmem>>, vector<512x128xbf16>
    %cst = arith.constant dense<0.000000e+00> : vector<32x128xf32>
    %2 = tpu.matmul %0, %1, %cst {dimension_numbers = #tpu.dot_dimension_numbers<[1], [0], [0], [1], [0, 0, 1, 1], [], []>} : vector<32x512xbf16>, vector<512x128xbf16>, vector<32x128xf32> -> vector<32x128xf32>
    %c0_3 = arith.constant 0 : index
    %c0_4 = arith.constant 0 : index
    %3 = vector.load %arg3[%c0_3, %c0_4] : memref<1x128xf32, #tpu.memory_space<vmem>>, vector<1x128xf32>
    %4 = vector.broadcast %3 : vector<1x128xf32> to vector<32x128xf32>
    %5 = arith.addf %2, %4 : vector<32x128xf32>
    %c0_5 = arith.constant 0 : index
    %c0_6 = arith.constant 0 : index
    %6 = vector.load %arg4[%c0_5, %c0_6] : memref<32x128xf32, #tpu.memory_space<vmem>>, vector<32x128xf32>
    tpu.vector_store %arg4[%c0_5, %c0_6], %5 {strides = array<i32>} : memref<32x128xf32, #tpu.memory_space<vmem>>, vector<32x128xf32>,
    return
  }
  func.func @transform_0(%arg0: i32) -> (i32, i32) {
    %c0_i32 = arith.constant 0 : i32
    %c0_i32_0 = arith.constant 0 : i32
    return %arg0, %c0_i32 : i32, i32
  }
  func.func @transform_1(%arg0: i32) -> (i32, i32) {
    %c0_i32 = arith.constant 0 : i32
    %c0_i32_0 = arith.constant 0 : i32
    %c0_i32_1 = arith.constant 0 : i32
    return %c0_i32, %c0_i32_0 : i32, i32
  }
  func.func @transform_2(%arg0: i32) -> (i32, i32) {
    %c0_i32 = arith.constant 0 : i32
    %c0_i32_0 = arith.constant 0 : i32
    %c0_i32_1 = arith.constant 0 : i32
    return %c0_i32, %c0_i32_0 : i32, i32
  }
  func.func @transform_3(%arg0: i32) -> (i32, i32) {
    %c0_i32 = arith.constant 0 : i32
    %c0_i32_0 = arith.constant 0 : i32
    return %arg0, %c0_i32 : i32, i32
  }
}

module attributes {stable_mosaic.version = 11 : i64} {
  func.func @_mm_kernel(%arg0: i32, %arg1: memref<32x32xf32, #tpu.memory_space<vmem>>, %arg2: memref<32x128xbf16, #tpu.memory_space<vmem>>, %arg3: memref<1x128xf32, #tpu.memory_space<vmem>>, %arg4: memref<1x2x32xf32, #tpu.memory_space<vmem>>, %arg5: memref<32x128xf32, #tpu.memory_space<vmem>>, %arg6: memref<1x2x128xf32, #tpu.memory_space<vmem>>) attributes {dimension_semantics = [#tpu.dimension_semantics<parallel>], iteration_bounds = array<i64: 1>, scalar_prefetch = 0 : i64, scratch_operands = 0 : i64, tpu.core_type = #tpu.core_type<tc>, window_params = [{transform_indices = @transform_0, window_bounds = array<i64: 32, 32>}, {pipeline_mode = #tpu.pipeline_mode<synchronous>, transform_indices = @transform_1, window_bounds = array<i64: 32, 128>}, {pipeline_mode = #tpu.pipeline_mode<synchronous>, transform_indices = @transform_2, window_bounds = array<i64: 1, 128>}, {pipeline_mode = #tpu.pipeline_mode<synchronous>, transform_indices = @transform_3, window_bounds = array<i64: 1, 2, 32>}, {transform_indices = @transform_4, window_bounds = array<i64: 32, 128>}, {transform_indices = @transform_5, window_bounds = array<i64: 1, 2, 128>}]} {
    %c0 = arith.constant 0 : index
    %c0_0 = arith.constant 0 : index
    %0 = vector.load %arg1[%c0, %c0_0] : memref<32x32xf32, #tpu.memory_space<vmem>>, vector<32x32xf32>
    %c0_1 = arith.constant 0 : index
    %c0_2 = arith.constant 0 : index
    %c0_3 = arith.constant 0 : index
    %1 = vector.load %arg4[%c0_1, %c0_2, %c0_3] : memref<1x2x32xf32, #tpu.memory_space<vmem>>, vector<1x2x32xf32>
    %cst = arith.constant dense<0.000000e+00> : vector<2x32xf32>
    %2 = vector.multi_reduction <add>, %1, %cst [0] : vector<1x2x32xf32> to vector<2x32xf32>
    %3 = vector.extract_strided_slice %2 {offsets = [0, 0], sizes = [1, 32], strides = [1, 1]} : vector<2x32xf32> to vector<1x32xf32>
    %cst_4 = arith.constant 3.125000e-02 : f32
    %4 = vector.broadcast %cst_4 : f32 to vector<1x32xf32>
    %5 = arith.mulf %3, %4 : vector<1x32xf32>
    %6 = vector.extract_strided_slice %2 {offsets = [1, 0], sizes = [1, 32], strides = [1, 1]} : vector<2x32xf32> to vector<1x32xf32>
    %cst_5 = arith.constant 3.125000e-02 : f32
    %7 = vector.broadcast %cst_5 : f32 to vector<1x32xf32>
    %8 = arith.mulf %6, %7 : vector<1x32xf32>
    %9 = arith.mulf %5, %5 : vector<1x32xf32>
    %10 = arith.subf %8, %9 : vector<1x32xf32>
    %cst_6 = arith.constant 0.000000e+00 : f32
    %11 = vector.broadcast %cst_6 : f32 to vector<1x32xf32>
    %12 = arith.maximumf %10, %11 : vector<1x32xf32>
    %13 = vector.broadcast %5 : vector<1x32xf32> to vector<32x32xf32>
    %14 = arith.subf %0, %13 : vector<32x32xf32>
    %cst_7 = arith.constant 9.99999974E-6 : f32
    %15 = vector.broadcast %cst_7 : f32 to vector<1x32xf32>
    %16 = arith.addf %12, %15 : vector<1x32xf32>
    %17 = math.rsqrt %16 : vector<1x32xf32>
    %18 = vector.broadcast %17 : vector<1x32xf32> to vector<32x32xf32>
    %19 = arith.mulf %14, %18 : vector<32x32xf32>
    %cst_8 = arith.constant 0.000000e+00 : f32
    %20 = vector.broadcast %cst_8 : f32 to vector<32x32xf32>
    %21 = arith.maximumf %19, %20 : vector<32x32xf32>
    %22 = arith.truncf %21 : vector<32x32xf32> to vector<32x32xbf16>
    %c0_9 = arith.constant 0 : index
    %c0_10 = arith.constant 0 : index
    %23 = vector.load %arg2[%c0_9, %c0_10] : memref<32x128xbf16, #tpu.memory_space<vmem>>, vector<32x128xbf16>
    %cst_11 = arith.constant dense<0.000000e+00> : vector<32x128xf32>
    %24 = tpu.matmul %22, %23, %cst_11 {dimension_numbers = #tpu.dot_dimension_numbers<[1], [0], [0], [1], [0, 0, 1, 1], [], []>} : vector<32x32xbf16>, vector<32x128xbf16>, vector<32x128xf32> -> vector<32x128xf32>
    %c0_12 = arith.constant 0 : index
    %c0_13 = arith.constant 0 : index
    %25 = vector.load %arg3[%c0_12, %c0_13] : memref<1x128xf32, #tpu.memory_space<vmem>>, vector<1x128xf32>
    %26 = vector.broadcast %25 : vector<1x128xf32> to vector<32x128xf32>
    %27 = arith.addf %24, %26 : vector<32x128xf32>
    %c0_14 = arith.constant 0 : index
    %c0_15 = arith.constant 0 : index
    %28 = vector.load %arg5[%c0_14, %c0_15] : memref<32x128xf32, #tpu.memory_space<vmem>>, vector<32x128xf32>
    tpu.vector_store %arg5[%c0_14, %c0_15], %27 {strides = array<i32>} : memref<32x128xf32, #tpu.memory_space<vmem>>, vector<32x128xf32>,
    %c32_i32 = arith.constant 32 : i32
    %29 = arith.muli %arg0, %c32_i32 : i32
    %30 = tpu.iota {dimensions = array<i32: 0>} : vector<32x1xi32>
    %31 = vector.broadcast %29 : i32 to vector<32x1xi32>
    %32 = arith.addi %31, %30 : vector<32x1xi32>
    %c32_i32_16 = arith.constant 32 : i32
    %33 = vector.broadcast %c32_i32_16 : i32 to vector<32x1xi32>
    %34 = arith.cmpi slt, %32, %33 : vector<32x1xi32>
    %cst_17 = arith.constant 0.000000e+00 : f32
    %35 = vector.shape_cast %34 : vector<32x1xi1> to vector<32x1xi1>
    %36 = vector.broadcast %35 : vector<32x1xi1> to vector<32x128xi1>
    %37 = vector.broadcast %cst_17 : f32 to vector<32x128xf32>
    %38 = arith.select %36, %27, %37 : vector<32x128xi1>, vector<32x128xf32>
    %cst_18 = arith.constant dense<0.000000e+00> : vector<128xf32>
    %39 = vector.multi_reduction <add>, %38, %cst_18 [0] : vector<32x128xf32> to vector<128xf32>
    %40 = vector.shape_cast %39 : vector<128xf32> to vector<1x128xf32>
    %41 = arith.mulf %38, %38 : vector<32x128xf32>
    %cst_19 = arith.constant dense<0.000000e+00> : vector<128xf32>
    %42 = vector.multi_reduction <add>, %41, %cst_19 [0] : vector<32x128xf32> to vector<128xf32>
    %43 = vector.shape_cast %42 : vector<128xf32> to vector<1x128xf32>
    %44 = tpu.concatenate %40, %43 in 0 : vector<1x128xf32>, vector<1x128xf32> -> vector<2x128xf32>
    %45 = vector.shape_cast %44 : vector<2x128xf32> to vector<1x2x128xf32>
    %c0_20 = arith.constant 0 : index
    %c0_21 = arith.constant 0 : index
    %c0_22 = arith.constant 0 : index
    %46 = vector.load %arg6[%c0_20, %c0_21, %c0_22] : memref<1x2x128xf32, #tpu.memory_space<vmem>>, vector<1x2x128xf32>
    tpu.vector_store %arg6[%c0_20, %c0_21, %c0_22], %45 {strides = array<i32>} : memref<1x2x128xf32, #tpu.memory_space<vmem>>, vector<1x2x128xf32>,
    return
  }
  func.func @transform_0(%arg0: i32) -> (i32, i32) {
    %c0_i32 = arith.constant 0 : i32
    %c0_i32_0 = arith.constant 0 : i32
    return %arg0, %c0_i32 : i32, i32
  }
  func.func @transform_1(%arg0: i32) -> (i32, i32) {
    %c0_i32 = arith.constant 0 : i32
    %c0_i32_0 = arith.constant 0 : i32
    %c0_i32_1 = arith.constant 0 : i32
    return %c0_i32, %c0_i32_0 : i32, i32
  }
  func.func @transform_2(%arg0: i32) -> (i32, i32) {
    %c0_i32 = arith.constant 0 : i32
    %c0_i32_0 = arith.constant 0 : i32
    %c0_i32_1 = arith.constant 0 : i32
    return %c0_i32, %c0_i32_0 : i32, i32
  }
  func.func @transform_3(%arg0: i32) -> (i32, i32, i32) {
    %c0_i32 = arith.constant 0 : i32
    %c0_i32_0 = arith.constant 0 : i32
    %c0_i32_1 = arith.constant 0 : i32
    %c0_i32_2 = arith.constant 0 : i32
    return %c0_i32, %c0_i32_0, %c0_i32_1 : i32, i32, i32
  }
  func.func @transform_4(%arg0: i32) -> (i32, i32) {
    %c0_i32 = arith.constant 0 : i32
    %c0_i32_0 = arith.constant 0 : i32
    return %arg0, %c0_i32 : i32, i32
  }
  func.func @transform_5(%arg0: i32) -> (i32, i32, i32) {
    %c0_i32 = arith.constant 0 : i32
    %c0_i32_0 = arith.constant 0 : i32
    %c0_i32_1 = arith.constant 0 : i32
    return %arg0, %c0_i32, %c0_i32_0 : i32, i32, i32
  }
}

module attributes {stable_mosaic.version = 11 : i64} {
  func.func @_bn_apply_kernel(%arg0: i32, %arg1: memref<32x32xf32, #tpu.memory_space<vmem>>, %arg2: memref<1x2x32xf32, #tpu.memory_space<vmem>>, %arg3: memref<32x32xf32, #tpu.memory_space<vmem>>, %arg4: memref<32x32xf32, #tpu.memory_space<vmem>>) attributes {dimension_semantics = [#tpu.dimension_semantics<parallel>], iteration_bounds = array<i64: 1>, scalar_prefetch = 0 : i64, scratch_operands = 0 : i64, tpu.core_type = #tpu.core_type<tc>, window_params = [{transform_indices = @transform_0, window_bounds = array<i64: 32, 32>}, {pipeline_mode = #tpu.pipeline_mode<synchronous>, transform_indices = @transform_1, window_bounds = array<i64: 1, 2, 32>}, {transform_indices = @transform_2, window_bounds = array<i64: 32, 32>}, {transform_indices = @transform_3, window_bounds = array<i64: 32, 32>}]} {
    %c0 = arith.constant 0 : index
    %c0_0 = arith.constant 0 : index
    %c0_1 = arith.constant 0 : index
    %0 = vector.load %arg2[%c0, %c0_0, %c0_1] : memref<1x2x32xf32, #tpu.memory_space<vmem>>, vector<1x2x32xf32>
    %cst = arith.constant dense<0.000000e+00> : vector<2x32xf32>
    %1 = vector.multi_reduction <add>, %0, %cst [0] : vector<1x2x32xf32> to vector<2x32xf32>
    %2 = vector.extract_strided_slice %1 {offsets = [0, 0], sizes = [1, 32], strides = [1, 1]} : vector<2x32xf32> to vector<1x32xf32>
    %cst_2 = arith.constant 3.125000e-02 : f32
    %3 = vector.broadcast %cst_2 : f32 to vector<1x32xf32>
    %4 = arith.mulf %2, %3 : vector<1x32xf32>
    %5 = vector.extract_strided_slice %1 {offsets = [1, 0], sizes = [1, 32], strides = [1, 1]} : vector<2x32xf32> to vector<1x32xf32>
    %cst_3 = arith.constant 3.125000e-02 : f32
    %6 = vector.broadcast %cst_3 : f32 to vector<1x32xf32>
    %7 = arith.mulf %5, %6 : vector<1x32xf32>
    %8 = arith.mulf %4, %4 : vector<1x32xf32>
    %9 = arith.subf %7, %8 : vector<1x32xf32>
    %cst_4 = arith.constant 0.000000e+00 : f32
    %10 = vector.broadcast %cst_4 : f32 to vector<1x32xf32>
    %11 = arith.maximumf %9, %10 : vector<1x32xf32>
    %c0_5 = arith.constant 0 : index
    %c0_6 = arith.constant 0 : index
    %12 = vector.load %arg1[%c0_5, %c0_6] : memref<32x32xf32, #tpu.memory_space<vmem>>, vector<32x32xf32>
    %13 = vector.broadcast %4 : vector<1x32xf32> to vector<32x32xf32>
    %14 = arith.subf %12, %13 : vector<32x32xf32>
    %cst_7 = arith.constant 9.99999974E-6 : f32
    %15 = vector.broadcast %cst_7 : f32 to vector<1x32xf32>
    %16 = arith.addf %11, %15 : vector<1x32xf32>
    %17 = math.rsqrt %16 : vector<1x32xf32>
    %18 = vector.broadcast %17 : vector<1x32xf32> to vector<32x32xf32>
    %19 = arith.mulf %14, %18 : vector<32x32xf32>
    %c0_8 = arith.constant 0 : index
    %c0_9 = arith.constant 0 : index
    %20 = vector.load %arg3[%c0_8, %c0_9] : memref<32x32xf32, #tpu.memory_space<vmem>>, vector<32x32xf32>
    %21 = arith.addf %19, %20 : vector<32x32xf32>
    %c0_10 = arith.constant 0 : index
    %c0_11 = arith.constant 0 : index
    %22 = vector.load %arg4[%c0_10, %c0_11] : memref<32x32xf32, #tpu.memory_space<vmem>>, vector<32x32xf32>
    tpu.vector_store %arg4[%c0_10, %c0_11], %21 {strides = array<i32>} : memref<32x32xf32, #tpu.memory_space<vmem>>, vector<32x32xf32>,
    return
  }
  func.func @transform_0(%arg0: i32) -> (i32, i32) {
    %c0_i32 = arith.constant 0 : i32
    %c0_i32_0 = arith.constant 0 : i32
    return %arg0, %c0_i32 : i32, i32
  }
  func.func @transform_1(%arg0: i32) -> (i32, i32, i32) {
    %c0_i32 = arith.constant 0 : i32
    %c0_i32_0 = arith.constant 0 : i32
    %c0_i32_1 = arith.constant 0 : i32
    %c0_i32_2 = arith.constant 0 : i32
    return %c0_i32, %c0_i32_0, %c0_i32_1 : i32, i32, i32
  }
  func.func @transform_2(%arg0: i32) -> (i32, i32) {
    %c0_i32 = arith.constant 0 : i32
    %c0_i32_0 = arith.constant 0 : i32
    return %arg0, %c0_i32 : i32, i32
  }
  func.func @transform_3(%arg0: i32) -> (i32, i32) {
    %c0_i32 = arith.constant 0 : i32
    %c0_i32_0 = arith.constant 0 : i32
    return %arg0, %c0_i32 : i32, i32
  }
}

module attributes {stable_mosaic.version = 11 : i64} {
  func.func @_mm_kernel(%arg0: i32, %arg1: memref<32x288xbf16, #tpu.memory_space<vmem>>, %arg2: memref<288x128xbf16, #tpu.memory_space<vmem>>, %arg3: memref<1x128xf32, #tpu.memory_space<vmem>>, %arg4: memref<32x128xf32, #tpu.memory_space<vmem>>, %arg5: memref<1x2x128xf32, #tpu.memory_space<vmem>>) attributes {dimension_semantics = [#tpu.dimension_semantics<parallel>], iteration_bounds = array<i64: 1>, scalar_prefetch = 0 : i64, scratch_operands = 0 : i64, tpu.core_type = #tpu.core_type<tc>, window_params = [{transform_indices = @transform_0, window_bounds = array<i64: 32, 288>}, {pipeline_mode = #tpu.pipeline_mode<synchronous>, transform_indices = @transform_1, window_bounds = array<i64: 288, 128>}, {pipeline_mode = #tpu.pipeline_mode<synchronous>, transform_indices = @transform_2, window_bounds = array<i64: 1, 128>}, {transform_indices = @transform_3, window_bounds = array<i64: 32, 128>}, {transform_indices = @transform_4, window_bounds = array<i64: 1, 2, 128>}]} {
    %c0 = arith.constant 0 : index
    %c0_0 = arith.constant 0 : index
    %0 = vector.load %arg1[%c0, %c0_0] : memref<32x288xbf16, #tpu.memory_space<vmem>>, vector<32x288xbf16>
    %c0_1 = arith.constant 0 : index
    %c0_2 = arith.constant 0 : index
    %1 = vector.load %arg2[%c0_1, %c0_2] : memref<288x128xbf16, #tpu.memory_space<vmem>>, vector<288x128xbf16>
    %cst = arith.constant dense<0.000000e+00> : vector<32x128xf32>
    %2 = tpu.matmul %0, %1, %cst {dimension_numbers = #tpu.dot_dimension_numbers<[1], [0], [0], [1], [0, 0, 1, 1], [], []>} : vector<32x288xbf16>, vector<288x128xbf16>, vector<32x128xf32> -> vector<32x128xf32>
    %c0_3 = arith.constant 0 : index
    %c0_4 = arith.constant 0 : index
    %3 = vector.load %arg3[%c0_3, %c0_4] : memref<1x128xf32, #tpu.memory_space<vmem>>, vector<1x128xf32>
    %4 = vector.broadcast %3 : vector<1x128xf32> to vector<32x128xf32>
    %5 = arith.addf %2, %4 : vector<32x128xf32>
    %c0_5 = arith.constant 0 : index
    %c0_6 = arith.constant 0 : index
    %6 = vector.load %arg4[%c0_5, %c0_6] : memref<32x128xf32, #tpu.memory_space<vmem>>, vector<32x128xf32>
    tpu.vector_store %arg4[%c0_5, %c0_6], %5 {strides = array<i32>} : memref<32x128xf32, #tpu.memory_space<vmem>>, vector<32x128xf32>,
    %c32_i32 = arith.constant 32 : i32
    %7 = arith.muli %arg0, %c32_i32 : i32
    %8 = tpu.iota {dimensions = array<i32: 0>} : vector<32x1xi32>
    %9 = vector.broadcast %7 : i32 to vector<32x1xi32>
    %10 = arith.addi %9, %8 : vector<32x1xi32>
    %c32_i32_7 = arith.constant 32 : i32
    %11 = vector.broadcast %c32_i32_7 : i32 to vector<32x1xi32>
    %12 = arith.cmpi slt, %10, %11 : vector<32x1xi32>
    %cst_8 = arith.constant 0.000000e+00 : f32
    %13 = vector.shape_cast %12 : vector<32x1xi1> to vector<32x1xi1>
    %14 = vector.broadcast %13 : vector<32x1xi1> to vector<32x128xi1>
    %15 = vector.broadcast %cst_8 : f32 to vector<32x128xf32>
    %16 = arith.select %14, %5, %15 : vector<32x128xi1>, vector<32x128xf32>
    %cst_9 = arith.constant dense<0.000000e+00> : vector<128xf32>
    %17 = vector.multi_reduction <add>, %16, %cst_9 [0] : vector<32x128xf32> to vector<128xf32>
    %18 = vector.shape_cast %17 : vector<128xf32> to vector<1x128xf32>
    %19 = arith.mulf %16, %16 : vector<32x128xf32>
    %cst_10 = arith.constant dense<0.000000e+00> : vector<128xf32>
    %20 = vector.multi_reduction <add>, %19, %cst_10 [0] : vector<32x128xf32> to vector<128xf32>
    %21 = vector.shape_cast %20 : vector<128xf32> to vector<1x128xf32>
    %22 = tpu.concatenate %18, %21 in 0 : vector<1x128xf32>, vector<1x128xf32> -> vector<2x128xf32>
    %23 = vector.shape_cast %22 : vector<2x128xf32> to vector<1x2x128xf32>
    %c0_11 = arith.constant 0 : index
    %c0_12 = arith.constant 0 : index
    %c0_13 = arith.constant 0 : index
    %24 = vector.load %arg5[%c0_11, %c0_12, %c0_13] : memref<1x2x128xf32, #tpu.memory_space<vmem>>, vector<1x2x128xf32>
    tpu.vector_store %arg5[%c0_11, %c0_12, %c0_13], %23 {strides = array<i32>} : memref<1x2x128xf32, #tpu.memory_space<vmem>>, vector<1x2x128xf32>,
    return
  }
  func.func @transform_0(%arg0: i32) -> (i32, i32) {
    %c0_i32 = arith.constant 0 : i32
    %c0_i32_0 = arith.constant 0 : i32
    return %arg0, %c0_i32 : i32, i32
  }
  func.func @transform_1(%arg0: i32) -> (i32, i32) {
    %c0_i32 = arith.constant 0 : i32
    %c0_i32_0 = arith.constant 0 : i32
    %c0_i32_1 = arith.constant 0 : i32
    return %c0_i32, %c0_i32_0 : i32, i32
  }
  func.func @transform_2(%arg0: i32) -> (i32, i32) {
    %c0_i32 = arith.constant 0 : i32
    %c0_i32_0 = arith.constant 0 : i32
    %c0_i32_1 = arith.constant 0 : i32
    return %c0_i32, %c0_i32_0 : i32, i32
  }
  func.func @transform_3(%arg0: i32) -> (i32, i32) {
    %c0_i32 = arith.constant 0 : i32
    %c0_i32_0 = arith.constant 0 : i32
    return %arg0, %c0_i32 : i32, i32
  }
  func.func @transform_4(%arg0: i32) -> (i32, i32, i32) {
    %c0_i32 = arith.constant 0 : i32
    %c0_i32_0 = arith.constant 0 : i32
    %c0_i32_1 = arith.constant 0 : i32
    return %arg0, %c0_i32, %c0_i32_0 : i32, i32, i32
  }
}

module attributes {stable_mosaic.version = 11 : i64} {
  func.func @_vq_kernel(%arg0: i32, %arg1: memref<32x32xf32, #tpu.memory_space<vmem>>, %arg2: memref<32x512xf32, #tpu.memory_space<vmem>>, %arg3: memref<1x512xf32, #tpu.memory_space<vmem>>, %arg4: memref<512x32xf32, #tpu.memory_space<vmem>>, %arg5: memref<32x32xf32, #tpu.memory_space<vmem>>) attributes {dimension_semantics = [#tpu.dimension_semantics<parallel>], iteration_bounds = array<i64: 1>, scalar_prefetch = 0 : i64, scratch_operands = 0 : i64, tpu.core_type = #tpu.core_type<tc>, window_params = [{transform_indices = @transform_0, window_bounds = array<i64: 32, 32>}, {pipeline_mode = #tpu.pipeline_mode<synchronous>, transform_indices = @transform_1, window_bounds = array<i64: 32, 512>}, {pipeline_mode = #tpu.pipeline_mode<synchronous>, transform_indices = @transform_2, window_bounds = array<i64: 1, 512>}, {pipeline_mode = #tpu.pipeline_mode<synchronous>, transform_indices = @transform_3, window_bounds = array<i64: 512, 32>}, {transform_indices = @transform_4, window_bounds = array<i64: 32, 32>}]} {
    %c0 = arith.constant 0 : index
    %c0_0 = arith.constant 0 : index
    %0 = vector.load %arg1[%c0, %c0_0] : memref<32x32xf32, #tpu.memory_space<vmem>>, vector<32x32xf32>
    %c0_1 = arith.constant 0 : index
    %c0_2 = arith.constant 0 : index
    %1 = vector.load %arg3[%c0_1, %c0_2] : memref<1x512xf32, #tpu.memory_space<vmem>>, vector<1x512xf32>
    %c0_3 = arith.constant 0 : index
    %c0_4 = arith.constant 0 : index
    %2 = vector.load %arg2[%c0_3, %c0_4] : memref<32x512xf32, #tpu.memory_space<vmem>>, vector<32x512xf32>
    %cst = arith.constant dense<0.000000e+00> : vector<32x512xf32>
    %3 = tpu.matmul %0, %2, %cst {dimension_numbers = #tpu.dot_dimension_numbers<[1], [0], [0], [1], [0, 0, 1, 1], [], []>} : vector<32x32xf32>, vector<32x512xf32>, vector<32x512xf32> -> vector<32x512xf32>
    %cst_5 = arith.constant 2.000000e+00 : f32
    %4 = vector.broadcast %cst_5 : f32 to vector<32x512xf32>
    %5 = arith.mulf %4, %3 : vector<32x512xf32>
    %6 = vector.broadcast %1 : vector<1x512xf32> to vector<32x512xf32>
    %7 = arith.subf %6, %5 : vector<32x512xf32>
    %cst_6 = arith.constant dense<0x7F800000> : vector<32xf32>
    %8 = vector.multi_reduction <minimumf>, %7, %cst_6 [1] : vector<32x512xf32> to vector<32xf32>
    %9 = vector.shape_cast %8 : vector<32xf32> to vector<32x1xf32>
    %10 = tpu.iota {dimensions = array<i32: 1>} : vector<32x512xi32>
    %11 = vector.broadcast %9 : vector<32x1xf32> to vector<32x512xf32>
    %12 = arith.cmpf ole, %7, %11 : vector<32x512xf32>
    %c512_i32 = arith.constant 512 : i32
    %13 = vector.broadcast %c512_i32 : i32 to vector<32x512xi32>
    %14 = arith.select %12, %10, %13 : vector<32x512xi1>, vector<32x512xi32>
    %cst_7 = arith.constant dense<2147483647> : vector<32xi32>
    %15 = vector.multi_reduction <minsi>, %14, %cst_7 [1] : vector<32x512xi32> to vector<32xi32>
    %16 = vector.shape_cast %15 : vector<32xi32> to vector<32x1xi32>
    %17 = vector.broadcast %16 : vector<32x1xi32> to vector<32x512xi32>
    %18 = arith.cmpi eq, %10, %17 : vector<32x512xi32>
    %19 = arith.extui %18 : vector<32x512xi1> to vector<32x512xi32>
    %20 = arith.sitofp %19 : vector<32x512xi32> to vector<32x512xf32>
    %c0_8 = arith.constant 0 : index
    %c0_9 = arith.constant 0 : index
    %21 = vector.load %arg4[%c0_8, %c0_9] : memref<512x32xf32, #tpu.memory_space<vmem>>, vector<512x32xf32>
    %cst_10 = arith.constant dense<0.000000e+00> : vector<32x32xf32>
    %22 = tpu.matmul %20, %21, %cst_10 {dimension_numbers = #tpu.dot_dimension_numbers<[1], [0], [0], [1], [0, 0, 1, 1], [], []>} : vector<32x512xf32>, vector<512x32xf32>, vector<32x32xf32> -> vector<32x32xf32>
    %c0_11 = arith.constant 0 : index
    %c0_12 = arith.constant 0 : index
    %23 = vector.load %arg5[%c0_11, %c0_12] : memref<32x32xf32, #tpu.memory_space<vmem>>, vector<32x32xf32>
    tpu.vector_store %arg5[%c0_11, %c0_12], %22 {strides = array<i32>} : memref<32x32xf32, #tpu.memory_space<vmem>>, vector<32x32xf32>,
    return
  }
  func.func @transform_0(%arg0: i32) -> (i32, i32) {
    %c0_i32 = arith.constant 0 : i32
    %c0_i32_0 = arith.constant 0 : i32
    return %arg0, %c0_i32 : i32, i32
  }
  func.func @transform_1(%arg0: i32) -> (i32, i32) {
    %c0_i32 = arith.constant 0 : i32
    %c0_i32_0 = arith.constant 0 : i32
    %c0_i32_1 = arith.constant 0 : i32
    return %c0_i32, %c0_i32_0 : i32, i32
  }
  func.func @transform_2(%arg0: i32) -> (i32, i32) {
    %c0_i32 = arith.constant 0 : i32
    %c0_i32_0 = arith.constant 0 : i32
    %c0_i32_1 = arith.constant 0 : i32
    return %c0_i32, %c0_i32_0 : i32, i32
  }
  func.func @transform_3(%arg0: i32) -> (i32, i32) {
    %c0_i32 = arith.constant 0 : i32
    %c0_i32_0 = arith.constant 0 : i32
    %c0_i32_1 = arith.constant 0 : i32
    return %c0_i32, %c0_i32_0 : i32, i32
  }
  func.func @transform_4(%arg0: i32) -> (i32, i32) {
    %c0_i32 = arith.constant 0 : i32
    %c0_i32_0 = arith.constant 0 : i32
    return %arg0, %c0_i32 : i32, i32
  }
}

module attributes {stable_mosaic.version = 11 : i64} {
  func.func @_mm_kernel(%arg0: i32, %arg1: memref<128x288xbf16, #tpu.memory_space<vmem>>, %arg2: memref<288x128xbf16, #tpu.memory_space<vmem>>, %arg3: memref<1x128xf32, #tpu.memory_space<vmem>>, %arg4: memref<128x128xf32, #tpu.memory_space<vmem>>) attributes {dimension_semantics = [#tpu.dimension_semantics<parallel>], iteration_bounds = array<i64: 1>, scalar_prefetch = 0 : i64, scratch_operands = 0 : i64, tpu.core_type = #tpu.core_type<tc>, window_params = [{transform_indices = @transform_0, window_bounds = array<i64: 128, 288>}, {pipeline_mode = #tpu.pipeline_mode<synchronous>, transform_indices = @transform_1, window_bounds = array<i64: 288, 128>}, {pipeline_mode = #tpu.pipeline_mode<synchronous>, transform_indices = @transform_2, window_bounds = array<i64: 1, 128>}, {transform_indices = @transform_3, window_bounds = array<i64: 128, 128>}]} {
    %c0 = arith.constant 0 : index
    %c0_0 = arith.constant 0 : index
    %0 = vector.load %arg1[%c0, %c0_0] : memref<128x288xbf16, #tpu.memory_space<vmem>>, vector<128x288xbf16>
    %c0_1 = arith.constant 0 : index
    %c0_2 = arith.constant 0 : index
    %1 = vector.load %arg2[%c0_1, %c0_2] : memref<288x128xbf16, #tpu.memory_space<vmem>>, vector<288x128xbf16>
    %cst = arith.constant dense<0.000000e+00> : vector<128x128xf32>
    %2 = tpu.matmul %0, %1, %cst {dimension_numbers = #tpu.dot_dimension_numbers<[1], [0], [0], [1], [0, 0, 1, 1], [], []>} : vector<128x288xbf16>, vector<288x128xbf16>, vector<128x128xf32> -> vector<128x128xf32>
    %c0_3 = arith.constant 0 : index
    %c0_4 = arith.constant 0 : index
    %3 = vector.load %arg3[%c0_3, %c0_4] : memref<1x128xf32, #tpu.memory_space<vmem>>, vector<1x128xf32>
    %4 = vector.broadcast %3 : vector<1x128xf32> to vector<128x128xf32>
    %5 = arith.addf %2, %4 : vector<128x128xf32>
    %6 = math.tanh %5 : vector<128x128xf32>
    %c0_5 = arith.constant 0 : index
    %c0_6 = arith.constant 0 : index
    %7 = vector.load %arg4[%c0_5, %c0_6] : memref<128x128xf32, #tpu.memory_space<vmem>>, vector<128x128xf32>
    tpu.vector_store %arg4[%c0_5, %c0_6], %6 {strides = array<i32>} : memref<128x128xf32, #tpu.memory_space<vmem>>, vector<128x128xf32>,
    return
  }
  func.func @transform_0(%arg0: i32) -> (i32, i32) {
    %c0_i32 = arith.constant 0 : i32
    %c0_i32_0 = arith.constant 0 : i32
    return %arg0, %c0_i32 : i32, i32
  }
  func.func @transform_1(%arg0: i32) -> (i32, i32) {
    %c0_i32 = arith.constant 0 : i32
    %c0_i32_0 = arith.constant 0 : i32
    %c0_i32_1 = arith.constant 0 : i32
    return %c0_i32, %c0_i32_0 : i32, i32
  }
  func.func @transform_2(%arg0: i32) -> (i32, i32) {
    %c0_i32 = arith.constant 0 : i32
    %c0_i32_0 = arith.constant 0 : i32
    %c0_i32_1 = arith.constant 0 : i32
    return %c0_i32, %c0_i32_0 : i32, i32
  }
  func.func @transform_3(%arg0: i32) -> (i32, i32) {
    %c0_i32 = arith.constant 0 : i32
    %c0_i32_0 = arith.constant 0 : i32
    return %arg0, %c0_i32 : i32, i32
  }
}

module attributes {stable_mosaic.version = 11 : i64} {
  func.func @_bn_apply_kernel(%arg0: i32, %arg1: memref<32x128xf32, #tpu.memory_space<vmem>>, %arg2: memref<1x2x128xf32, #tpu.memory_space<vmem>>, %arg3: memref<32x128xf32, #tpu.memory_space<vmem>>) attributes {dimension_semantics = [#tpu.dimension_semantics<parallel>], iteration_bounds = array<i64: 1>, scalar_prefetch = 0 : i64, scratch_operands = 0 : i64, tpu.core_type = #tpu.core_type<tc>, window_params = [{transform_indices = @transform_0, window_bounds = array<i64: 32, 128>}, {pipeline_mode = #tpu.pipeline_mode<synchronous>, transform_indices = @transform_1, window_bounds = array<i64: 1, 2, 128>}, {transform_indices = @transform_2, window_bounds = array<i64: 32, 128>}]} {
    %c0 = arith.constant 0 : index
    %c0_0 = arith.constant 0 : index
    %c0_1 = arith.constant 0 : index
    %0 = vector.load %arg2[%c0, %c0_0, %c0_1] : memref<1x2x128xf32, #tpu.memory_space<vmem>>, vector<1x2x128xf32>
    %cst = arith.constant dense<0.000000e+00> : vector<2x128xf32>
    %1 = vector.multi_reduction <add>, %0, %cst [0] : vector<1x2x128xf32> to vector<2x128xf32>
    %2 = vector.extract_strided_slice %1 {offsets = [0, 0], sizes = [1, 128], strides = [1, 1]} : vector<2x128xf32> to vector<1x128xf32>
    %cst_2 = arith.constant 7.812500e-03 : f32
    %3 = vector.broadcast %cst_2 : f32 to vector<1x128xf32>
    %4 = arith.mulf %2, %3 : vector<1x128xf32>
    %5 = vector.extract_strided_slice %1 {offsets = [1, 0], sizes = [1, 128], strides = [1, 1]} : vector<2x128xf32> to vector<1x128xf32>
    %cst_3 = arith.constant 7.812500e-03 : f32
    %6 = vector.broadcast %cst_3 : f32 to vector<1x128xf32>
    %7 = arith.mulf %5, %6 : vector<1x128xf32>
    %8 = arith.mulf %4, %4 : vector<1x128xf32>
    %9 = arith.subf %7, %8 : vector<1x128xf32>
    %cst_4 = arith.constant 0.000000e+00 : f32
    %10 = vector.broadcast %cst_4 : f32 to vector<1x128xf32>
    %11 = arith.maximumf %9, %10 : vector<1x128xf32>
    %c0_5 = arith.constant 0 : index
    %c0_6 = arith.constant 0 : index
    %12 = vector.load %arg1[%c0_5, %c0_6] : memref<32x128xf32, #tpu.memory_space<vmem>>, vector<32x128xf32>
    %13 = vector.broadcast %4 : vector<1x128xf32> to vector<32x128xf32>
    %14 = arith.subf %12, %13 : vector<32x128xf32>
    %cst_7 = arith.constant 9.99999974E-6 : f32
    %15 = vector.broadcast %cst_7 : f32 to vector<1x128xf32>
    %16 = arith.addf %11, %15 : vector<1x128xf32>
    %17 = math.rsqrt %16 : vector<1x128xf32>
    %18 = vector.broadcast %17 : vector<1x128xf32> to vector<32x128xf32>
    %19 = arith.mulf %14, %18 : vector<32x128xf32>
    %cst_8 = arith.constant 0.000000e+00 : f32
    %20 = vector.broadcast %cst_8 : f32 to vector<32x128xf32>
    %21 = arith.maximumf %19, %20 : vector<32x128xf32>
    %c0_9 = arith.constant 0 : index
    %c0_10 = arith.constant 0 : index
    %22 = vector.load %arg3[%c0_9, %c0_10] : memref<32x128xf32, #tpu.memory_space<vmem>>, vector<32x128xf32>
    tpu.vector_store %arg3[%c0_9, %c0_10], %21 {strides = array<i32>} : memref<32x128xf32, #tpu.memory_space<vmem>>, vector<32x128xf32>,
    return
  }
  func.func @transform_0(%arg0: i32) -> (i32, i32) {
    %c0_i32 = arith.constant 0 : i32
    %c0_i32_0 = arith.constant 0 : i32
    return %arg0, %c0_i32 : i32, i32
  }
  func.func @transform_1(%arg0: i32) -> (i32, i32, i32) {
    %c0_i32 = arith.constant 0 : i32
    %c0_i32_0 = arith.constant 0 : i32
    %c0_i32_1 = arith.constant 0 : i32
    %c0_i32_2 = arith.constant 0 : i32
    return %c0_i32, %c0_i32_0, %c0_i32_1 : i32, i32, i32
  }
  func.func @transform_2(%arg0: i32) -> (i32, i32) {
    %c0_i32 = arith.constant 0 : i32
    %c0_i32_0 = arith.constant 0 : i32
    return %arg0, %c0_i32 : i32, i32
  }
}

</mosaic_0001>

<llo_original>
// kernel: vqvae_forward.20
$region0: #{vqvae_forward.20}
  #allocation0 [shape = 'u32[]', space=smem, size = 0x4, offset = 0x4, fixed_abs, tag = 'smem constant byte address 0x4 - core index']
  #allocation1 [shape = 'u32[144,128]{1,0:T(1,128)}', space=vmem, size = 0x12000, scoped, tag = 'internal scratch']
  %s0 = inlined_call_operand.vmem [shape: f32[128,32], index: 0, kind: input, shape index: {}]
  %s1 = inlined_call_operand.vmem [shape: f32[1,2,32], index: 1, kind: input, shape index: {}]
  %s2 = inlined_call_operand.vmem [shape: f32[128,32], index: 2, kind: output, shape index: {}]
  %s3 = sld [smem:[#allocation0]]
  $region18: #{vqvae_forward.20} parent=0
    _
  %s5 = ssub.s32 1, %s3
  %s6 = scalar_select 0, %s5, %s3
  // Predicated region
  $region2: #{vqvae_forward.20} parent=0 // pred_check
    _
  $region3: #{vqvae_forward.20} parent=0 // pred_check_branch
    %8 = sbr.rel (0) target = $region5
  $region4: #{vqvae_forward.20} parent=0 // pred_region
    _
  $region5: #{vqvae_forward.20} parent=0 // pred_fallthru
    _
  // Predicated region
  $region6: #{vqvae_forward.20} parent=0 // pred_check
    _
  $region7: #{vqvae_forward.20} parent=0 // pred_check_branch
    %10 = sbr.rel (0) target = $region9
  $region8: #{vqvae_forward.20} parent=0 // pred_region
    _
  $region9: #{vqvae_forward.20} parent=0 // pred_fallthru
    _
  %v11 = vld [vmem:[%s1] sm:$0x3]
  %v12 = vadd.f32 %v11, 0.0
  %v13 = vmul.f32 %v12, 0.0078125
  %v14 = vmul.f32 %v13, %v13
  %v16 = vrot.slane %v14, 7
  %v18 = vsub.f32 %v13, %v16
  %v19 = vmax.f32 %v18, 0.0
  %v20 = vld [vmem:[%s0] sm:$0xff]
  %v21 = vld [vmem:[%s0 + $0x8] sm:$0xff]
  %v22 = vld [vmem:[%s0 + $0x10] sm:$0xff]
  %v23 = vld [vmem:[%s0 + $0x18] sm:$0xff]
  %v24 = vld [vmem:[%s0 + $0x20] sm:$0xff]
  %v25 = vld [vmem:[%s0 + $0x28] sm:$0xff]
  %v26 = vld [vmem:[%s0 + $0x30] sm:$0xff]
  %v27 = vld [vmem:[%s0 + $0x38] sm:$0xff]
  %v28 = vld [vmem:[%s0 + $0x40] sm:$0xff]
  %v29 = vld [vmem:[%s0 + $0x48] sm:$0xff]
  %v30 = vld [vmem:[%s0 + $0x50] sm:$0xff]
  %v31 = vld [vmem:[%s0 + $0x58] sm:$0xff]
  %v32 = vld [vmem:[%s0 + $0x60] sm:$0xff]
  %v33 = vld [vmem:[%s0 + $0x68] sm:$0xff]
  %v34 = vld [vmem:[%s0 + $0x70] sm:$0xff]
  %v35 = vld [vmem:[%s0 + $0x78] sm:$0xff]
  %v36 = vlaneseq
  %v37 = vshrl.u32 %v36, 7
  %v38 = vsub.s32 0, %v37
  %v39 = vrot.slane %v13, %v38
  %v40 = vsub.f32 %v20, %v39
  %v41 = vsub.f32 %v21, %v39
  %v42 = vsub.f32 %v22, %v39
  %v43 = vsub.f32 %v23, %v39
  %v44 = vsub.f32 %v24, %v39
  %v45 = vsub.f32 %v25, %v39
  %v46 = vsub.f32 %v26, %v39
  %v47 = vsub.f32 %v27, %v39
  %v48 = vsub.f32 %v28, %v39
  %v49 = vsub.f32 %v29, %v39
  %v50 = vsub.f32 %v30, %v39
  %v51 = vsub.f32 %v31, %v39
  %v52 = vsub.f32 %v32, %v39
  %v53 = vsub.f32 %v33, %v39
  %v54 = vsub.f32 %v34, %v39
  %v55 = vsub.f32 %v35, %v39
  %v56 = vadd.f32 %v19, 1e-05
  %v57 = vrsqrt.pop %v56
  %v58 = vlaneseq
  %v59 = vshrl.u32 %v58, 7
  %v60 = vsub.s32 1, %v59
  %v61 = vrot.slane %v57, %v60
  %v62 = vmul.f32 %v40, %v61
  %v63 = vmul.f32 %v41, %v61
  %v64 = vmul.f32 %v42, %v61
  %v65 = vmul.f32 %v43, %v61
  %v66 = vmul.f32 %v44, %v61
  %v67 = vmul.f32 %v45, %v61
  %v68 = vmul.f32 %v46, %v61
  %v69 = vmul.f32 %v47, %v61
  %v70 = vmul.f32 %v48, %v61
  %v71 = vmul.f32 %v49, %v61
  %v72 = vmul.f32 %v50, %v61
  %v73 = vmul.f32 %v51, %v61
  %v74 = vmul.f32 %v52, %v61
  %v75 = vmul.f32 %v53, %v61
  %v76 = vmul.f32 %v54, %v61
  %v77 = vmul.f32 %v55, %v61
  %v78 = vmax.f32 %v62, 0.0
  %v79 = vmax.f32 %v63, 0.0
  %v80 = vmax.f32 %v64, 0.0
  %v81 = vmax.f32 %v65, 0.0
  %v82 = vmax.f32 %v66, 0.0
  %v83 = vmax.f32 %v67, 0.0
  %v84 = vmax.f32 %v68, 0.0
  %v85 = vmax.f32 %v69, 0.0
  %v86 = vmax.f32 %v70, 0.0
  %v87 = vmax.f32 %v71, 0.0
  %v88 = vmax.f32 %v72, 0.0
  %v89 = vmax.f32 %v73, 0.0
  %v90 = vmax.f32 %v74, 0.0
  %v91 = vmax.f32 %v75, 0.0
  %v92 = vmax.f32 %v76, 0.0
  %v93 = vmax.f32 %v77, 0.0
  %vm94 = vcmask 261120
  %95 = vst.msk [vmem:[%s2] sm:$0xff] %vm94, %v78
  %96 = vst.msk [vmem:[%s2 + $0x8] sm:$0xff] %vm94, %v79
  %97 = vst.msk [vmem:[%s2 + $0x10] sm:$0xff] %vm94, %v80
  %98 = vst.msk [vmem:[%s2 + $0x18] sm:$0xff] %vm94, %v81
  %99 = vst.msk [vmem:[%s2 + $0x20] sm:$0xff] %vm94, %v82
  %100 = vst.msk [vmem:[%s2 + $0x28] sm:$0xff] %vm94, %v83
  %101 = vst.msk [vmem:[%s2 + $0x30] sm:$0xff] %vm94, %v84
  %102 = vst.msk [vmem:[%s2 + $0x38] sm:$0xff] %vm94, %v85
  %103 = vst.msk [vmem:[%s2 + $0x40] sm:$0xff] %vm94, %v86
  %104 = vst.msk [vmem:[%s2 + $0x48] sm:$0xff] %vm94, %v87
  %105 = vst.msk [vmem:[%s2 + $0x50] sm:$0xff] %vm94, %v88
  %106 = vst.msk [vmem:[%s2 + $0x58] sm:$0xff] %vm94, %v89
  %107 = vst.msk [vmem:[%s2 + $0x60] sm:$0xff] %vm94, %v90
  %108 = vst.msk [vmem:[%s2 + $0x68] sm:$0xff] %vm94, %v91
  %109 = vst.msk [vmem:[%s2 + $0x70] sm:$0xff] %vm94, %v92
  %110 = vst.msk [vmem:[%s2 + $0x78] sm:$0xff] %vm94, %v93
  // Predicated region
  $region10: #{vqvae_forward.20} parent=0 // pred_check
    _
  $region11: #{vqvae_forward.20} parent=0 // pred_check_branch
    %112 = sbr.rel (0) target = $region13
  $region12: #{vqvae_forward.20} parent=0 // pred_region
    _
  $region13: #{vqvae_forward.20} parent=0 // pred_fallthru
    _
  // Predicated region
  $region14: #{vqvae_forward.20} parent=0 // pred_check
    _
  $region15: #{vqvae_forward.20} parent=0 // pred_check_branch
    %114 = sbr.rel (0) target = $region17
  $region16: #{vqvae_forward.20} parent=0 // pred_region
    _
  $region17: #{vqvae_forward.20} parent=0 // pred_fallthru
    _

// kernel: vqvae_forward.21
$region0: #{vqvae_forward.21}
  #allocation0 [shape = 'u32[]', space=smem, size = 0x4, offset = 0x4, fixed_abs, tag = 'smem constant byte address 0x4 - core index']
  #allocation1 [shape = 'u32[144,128]{1,0:T(1,128)}', space=vmem, size = 0x12000, scoped, tag = 'internal scratch']
  %s0 = inlined_call_operand.vmem [shape: bf16[32,512], index: 0, kind: input, shape index: {}]
  %s1 = inlined_call_operand.vmem [shape: bf16[512,128], index: 1, kind: input, shape index: {}]
  %s2 = inlined_call_operand.vmem [shape: f32[1,128], index: 2, kind: input, shape index: {}]
  %s3 = inlined_call_operand.vmem [shape: f32[32,128], index: 3, kind: output, shape index: {}]
  %s4 = sld [smem:[#allocation0]]
  $region22: #{vqvae_forward.21} parent=0
    _
  %s6 = ssub.s32 1, %s4
  %s7 = scalar_select 0, %s6, %s4
  // Predicated region
  $region2: #{vqvae_forward.21} parent=0 // pred_check
    _
  $region3: #{vqvae_forward.21} parent=0 // pred_check_branch
    %9 = sbr.rel (0) target = $region5
  $region4: #{vqvae_forward.21} parent=0 // pred_region
    _
  $region5: #{vqvae_forward.21} parent=0 // pred_fallthru
    _
  // Predicated region
  $region6: #{vqvae_forward.21} parent=0 // pred_check
    _
  $region7: #{vqvae_forward.21} parent=0 // pred_check_branch
    %11 = sbr.rel (0) target = $region9
  $region8: #{vqvae_forward.21} parent=0 // pred_region
    _
  $region9: #{vqvae_forward.21} parent=0 // pred_fallthru
    _
  // Predicated region
  $region10: #{vqvae_forward.21} parent=0 // pred_check
    _
  $region11: #{vqvae_forward.21} parent=0 // pred_check_branch
    %13 = sbr.rel (0) target = $region13
  $region12: #{vqvae_forward.21} parent=0 // pred_region
    _
  $region13: #{vqvae_forward.21} parent=0 // pred_fallthru
    _
  %v15 = vld [vmem:[%s0] sm:$0xff]
  %v16 = vld [vmem:[%s0 + $0x8] sm:$0xff]
  %v17 = vld [vmem:[%s0 + $0x10] sm:$0xff]
  %v18 = vld [vmem:[%s0 + $0x18] sm:$0xff]
  %v19 = vld [vmem:[%s0 + $0x20] sm:$0xff]
  %v20 = vld [vmem:[%s0 + $0x28] sm:$0xff]
  %v21 = vld [vmem:[%s0 + $0x30] sm:$0xff]
  %v22 = vld [vmem:[%s0 + $0x38] sm:$0xff]
  %v23 = vld [vmem:[%s1] sm:$0xf]
  %v24 = vld [vmem:[%s1 + $0x4] sm:$0xf]
  %v25 = vld [vmem:[%s1 + $0x8] sm:$0xf]
  %v26 = vld [vmem:[%s1 + $0xc] sm:$0xf]
  %v27 = vld [vmem:[%s1 + $0x10] sm:$0xf]
  %v28 = vld [vmem:[%s1 + $0x14] sm:$0xf]
  %v29 = vld [vmem:[%s1 + $0x18] sm:$0xf]
  %v30 = vld [vmem:[%s1 + $0x1c] sm:$0xf]
  %v31 = vld [vmem:[%s1 + $0x20] sm:$0xf]
  %v32 = vld [vmem:[%s1 + $0x24] sm:$0xf]
  %v33 = vld [vmem:[%s1 + $0x28] sm:$0xf]
  %v34 = vld [vmem:[%s1 + $0x2c] sm:$0xf]
  %v35 = vld [vmem:[%s1 + $0x30] sm:$0xf]
  %v36 = vld [vmem:[%s1 + $0x34] sm:$0xf]
  %v37 = vld [vmem:[%s1 + $0x38] sm:$0xf]
  %v38 = vld [vmem:[%s1 + $0x3c] sm:$0xf]
  %v39 = vld [vmem:[%s1 + $0x40] sm:$0xf]
  %v40 = vld [vmem:[%s1 + $0x44] sm:$0xf]
  %v41 = vld [vmem:[%s1 + $0x48] sm:$0xf]
  %v42 = vld [vmem:[%s1 + $0x4c] sm:$0xf]
  %v43 = vld [vmem:[%s1 + $0x50] sm:$0xf]
  %v44 = vld [vmem:[%s1 + $0x54] sm:$0xf]
  %v45 = vld [vmem:[%s1 + $0x58] sm:$0xf]
  %v46 = vld [vmem:[%s1 + $0x5c] sm:$0xf]
  %v47 = vld [vmem:[%s1 + $0x60] sm:$0xf]
  %v48 = vld [vmem:[%s1 + $0x64] sm:$0xf]
  %v49 = vld [vmem:[%s1 + $0x68] sm:$0xf]
  %v50 = vld [vmem:[%s1 + $0x6c] sm:$0xf]
  %v51 = vld [vmem:[%s1 + $0x70] sm:$0xf]
  %v52 = vld [vmem:[%s1 + $0x74] sm:$0xf]
  %v53 = vld [vmem:[%s1 + $0x78] sm:$0xf]
  %v54 = vld [vmem:[%s1 + $0x7c] sm:$0xf]
  %v55 = vld [vmem:[%s1 + $0x80] sm:$0xf]
  %v56 = vld [vmem:[%s1 + $0x84] sm:$0xf]
  %v57 = vld [vmem:[%s1 + $0x88] sm:$0xf]
  %v58 = vld [vmem:[%s1 + $0x8c] sm:$0xf]
  %v59 = vld [vmem:[%s1 + $0x90] sm:$0xf]
  %v60 = vld [vmem:[%s1 + $0x94] sm:$0xf]
  %v61 = vld [vmem:[%s1 + $0x98] sm:$0xf]
  %v62 = vld [vmem:[%s1 + $0x9c] sm:$0xf]
  %v63 = vld [vmem:[%s1 + $0xa0] sm:$0xf]
  %v64 = vld [vmem:[%s1 + $0xa4] sm:$0xf]
  %v65 = vld [vmem:[%s1 + $0xa8] sm:$0xf]
  %v66 = vld [vmem:[%s1 + $0xac] sm:$0xf]
  %v67 = vld [vmem:[%s1 + $0xb0] sm:$0xf]
  %v68 = vld [vmem:[%s1 + $0xb4] sm:$0xf]
  %v69 = vld [vmem:[%s1 + $0xb8] sm:$0xf]
  %v70 = vld [vmem:[%s1 + $0xbc] sm:$0xf]
  %v71 = vld [vmem:[%s1 + $0xc0] sm:$0xf]
  %v72 = vld [vmem:[%s1 + $0xc4] sm:$0xf]
  %v73 = vld [vmem:[%s1 + $0xc8] sm:$0xf]
  %v74 = vld [vmem:[%s1 + $0xcc] sm:$0xf]
  %v75 = vld [vmem:[%s1 + $0xd0] sm:$0xf]
  %v76 = vld [vmem:[%s1 + $0xd4] sm:$0xf]
  %v77 = vld [vmem:[%s1 + $0xd8] sm:$0xf]
  %v78 = vld [vmem:[%s1 + $0xdc] sm:$0xf]
  %v79 = vld [vmem:[%s1 + $0xe0] sm:$0xf]
  %v80 = vld [vmem:[%s1 + $0xe4] sm:$0xf]
  %v81 = vld [vmem:[%s1 + $0xe8] sm:$0xf]
  %v82 = vld [vmem:[%s1 + $0xec] sm:$0xf]
  %v83 = vld [vmem:[%s1 + $0xf0] sm:$0xf]
  %v84 = vld [vmem:[%s1 + $0xf4] sm:$0xf]
  %v85 = vld [vmem:[%s1 + $0xf8] sm:$0xf]
  %v86 = vld [vmem:[%s1 + $0xfc] sm:$0xf]
  %v87 = vld [vmem:[%s2] sm:$0x1]
  %v89 = vlaneseq
  %v90 = vshrl.u32 %v89, 7
  %v91 = vsub.s32 0, %v90
  %v92 = vrot.slane %v87, %v91
  %v102 = vunpack.c.l.b16 %v15
  %v103 = vunpack.c.h.b16 %v15
  %v104 = vunpack.c.l.b16 %v16
  %v105 = vunpack.c.h.b16 %v16
  %v106 = vunpack.c.l.b16 %v17
  %v107 = vunpack.c.h.b16 %v17
  %v108 = vunpack.c.l.b16 %v18
  %v109 = vunpack.c.h.b16 %v18
  %v110 = vunpack.c.l.b16 %v19
  %v111 = vunpack.c.h.b16 %v19
  %v112 = vunpack.c.l.b16 %v20
  %v113 = vunpack.c.h.b16 %v20
  %v114 = vunpack.c.l.b16 %v21
  %v115 = vunpack.c.h.b16 %v21
  %v116 = vunpack.c.l.b16 %v22
  %v117 = vunpack.c.h.b16 %v22
  %v118 = vpack.c.b16 %v106, %v102
  %v119 = vpack.c.b16 %v107, %v103
  %v120 = vpack.c.b16 %v108, %v104
  %v121 = vpack.c.b16 %v109, %v105
  %v122 = vpack.c.b16 %v114, %v110
  %v123 = vpack.c.b16 %v115, %v111
  %v124 = vpack.c.b16 %v116, %v112
  %v125 = vpack.c.b16 %v117, %v113
  %v198 = vunpack.c.l.b16 %v23
  %v199 = vunpack.c.l.b16 %v24
  %v200 = vunpack.c.l.b16 %v25
  %v201 = vunpack.c.l.b16 %v26
  %v202 = vunpack.c.l.b16 %v27
  %v203 = vunpack.c.l.b16 %v28
  %v204 = vunpack.c.l.b16 %v29
  %v205 = vunpack.c.l.b16 %v30
  %v206 = vunpack.c.l.b16 %v31
  %v207 = vunpack.c.l.b16 %v32
  %v208 = vunpack.c.l.b16 %v33
  %v209 = vunpack.c.l.b16 %v34
  %v210 = vunpack.c.l.b16 %v35
  %v211 = vunpack.c.l.b16 %v36
  %v212 = vunpack.c.l.b16 %v37
  %v213 = vunpack.c.l.b16 %v38
  %v214 = vunpack.c.l.b16 %v39
  %v215 = vunpack.c.l.b16 %v40
  %v216 = vunpack.c.l.b16 %v41
  %v217 = vunpack.c.l.b16 %v42
  %v218 = vunpack.c.l.b16 %v43
  %v219 = vunpack.c.l.b16 %v44
  %v220 = vunpack.c.l.b16 %v45
  %v221 = vunpack.c.l.b16 %v46
  %v222 = vunpack.c.l.b16 %v47
  %v223 = vunpack.c.l.b16 %v48
  %v224 = vunpack.c.l.b16 %v49
  %v225 = vunpack.c.l.b16 %v50
  %v226 = vunpack.c.l.b16 %v51
  %v227 = vunpack.c.l.b16 %v52
  %v228 = vunpack.c.l.b16 %v53
  %v229 = vunpack.c.l.b16 %v54
  %v230 = vunpack.c.l.b16 %v55
  %v231 = vunpack.c.l.b16 %v56
  %v232 = vunpack.c.l.b16 %v57
  %v233 = vunpack.c.l.b16 %v58
  %v234 = vunpack.c.l.b16 %v59
  %v235 = vunpack.c.l.b16 %v60
  %v236 = vunpack.c.l.b16 %v61
  %v237 = vunpack.c.l.b16 %v62
  %v238 = vunpack.c.l.b16 %v63
  %v239 = vunpack.c.l.b16 %v64
  %v240 = vunpack.c.l.b16 %v65
  %v241 = vunpack.c.l.b16 %v66
  %v242 = vunpack.c.l.b16 %v67
  %v243 = vunpack.c.l.b16 %v68
  %v244 = vunpack.c.l.b16 %v69
  %v245 = vunpack.c.l.b16 %v70
  %v246 = vunpack.c.l.b16 %v71
  %v247 = vunpack.c.l.b16 %v72
  %v248 = vunpack.c.l.b16 %v73
  %v249 = vunpack.c.l.b16 %v74
  %v250 = vunpack.c.l.b16 %v75
  %v251 = vunpack.c.l.b16 %v76
  %v252 = vunpack.c.l.b16 %v77
  %v253 = vunpack.c.l.b16 %v78
  %v254 = vunpack.c.l.b16 %v79
  %v255 = vunpack.c.l.b16 %v80
  %v256 = vunpack.c.l.b16 %v81
  %v257 = vunpack.c.l.b16 %v82
  %v258 = vunpack.c.l.b16 %v83
  %v259 = vunpack.c.l.b16 %v84
  %v260 = vunpack.c.l.b16 %v85
  %v261 = vunpack.c.l.b16 %v86
  %v262 = vpack.c.b16 %v199, %v198
  %v263 = vpack.c.b16 %v201, %v200
  %v264 = vpack.c.b16 %v203, %v202
  %v265 = vpack.c.b16 %v205, %v204
  %v266 = vpack.c.b16 %v207, %v206
  %v267 = vpack.c.b16 %v209, %v208
  %v268 = vpack.c.b16 %v211, %v210
  %v269 = vpack.c.b16 %v213, %v212
  %v270 = vpack.c.b16 %v215, %v214
  %v271 = vpack.c.b16 %v217, %v216
  %v272 = vpack.c.b16 %v219, %v218
  %v273 = vpack.c.b16 %v221, %v220
  %v274 = vpack.c.b16 %v223, %v222
  %v275 = vpack.c.b16 %v225, %v224
  %v276 = vpack.c.b16 %v227, %v226
  %v277 = vpack.c.b16 %v229, %v228
  %v278 = vpack.c.b16 %v231, %v230
  %v279 = vpack.c.b16 %v233, %v232
  %v280 = vpack.c.b16 %v235, %v234
  %v281 = vpack.c.b16 %v237, %v236
  %v282 = vpack.c.b16 %v239, %v238
  %v283 = vpack.c.b16 %v241, %v240
  %v284 = vpack.c.b16 %v243, %v242
  %v285 = vpack.c.b16 %v245, %v244
  %v286 = vpack.c.b16 %v247, %v246
  %v287 = vpack.c.b16 %v249, %v248
  %v288 = vpack.c.b16 %v251, %v250
  %v289 = vpack.c.b16 %v253, %v252
  %v290 = vpack.c.b16 %v255, %v254
  %v291 = vpack.c.b16 %v257, %v256
  %v292 = vpack.c.b16 %v259, %v258
  %v293 = vpack.c.b16 %v261, %v260
  %326 = vmatprep.subr.bf16.mxu0 0
  %327 = vmatpush1.bf16.msra.mxu0 %v262
  %328 = vmatprep.subr.bf16.mxu0 0
  %329 = vmatpush1.bf16.msra.mxu0 %v263
  %330 = vmatprep.subr.bf16.mxu0 0
  %331 = vmatpush1.bf16.msra.mxu0 %v264
  %332 = vmatprep.subr.bf16.mxu0 0
  %333 = vmatpush1.bf16.msra.mxu0 %v265
  %334 = vmatprep.subr.bf16.mxu0 0
  %335 = vmatpush1.bf16.msra.mxu0 %v266
  %336 = vmatprep.subr.bf16.mxu0 0
  %337 = vmatpush1.bf16.msra.mxu0 %v267
  %338 = vmatprep.subr.bf16.mxu0 0
  %339 = vmatpush1.bf16.msra.mxu0 %v268
  %340 = vmatprep.subr.bf16.mxu0 0
  %341 = vmatpush1.bf16.msra.mxu0 %v269
  %342 = vmatprep.subr.bf16.mxu0 0
  %343 = vmatpush1.bf16.msra.mxu0 %v270
  %344 = vmatprep.subr.bf16.mxu0 0
  %345 = vmatpush1.bf16.msra.mxu0 %v271
  %346 = vmatprep.subr.bf16.mxu0 0
  %347 = vmatpush1.bf16.msra.mxu0 %v272
  %348 = vmatprep.subr.bf16.mxu0 0
  %349 = vmatpush1.bf16.msra.mxu0 %v273
  %350 = vmatprep.subr.bf16.mxu0 0
  %351 = vmatpush1.bf16.msra.mxu0 %v274
  %352 = vmatprep.subr.bf16.mxu0 0
  %353 = vmatpush1.bf16.msra.mxu0 %v275
  %354 = vmatprep.subr.bf16.mxu0 0
  %355 = vmatpush1.bf16.msra.mxu0 %v276
  %356 = vmatprep.subr.bf16.mxu0 0
  %357 = vmatpush1.bf16.msra.mxu0 %v277
  %358 = vmatprep.mubr.bf16.mxu0 %v119
  %359 = vmatmul.mubr.bf16.gmra.mrb[0].mxu0 %v118
  %v360 = vpop.f32.mrb[0].mxu0
  %v361 = vadd.f32 %v92, %v360
  %v362 = vpop.f32.mrb[0].mxu0
  %v363 = vpop.f32.mrb[0].mxu0
  %v364 = vadd.f32 %v92, %v363
  %v365 = vpop.f32.mrb[0].mxu0
  %366 = vmatprep.mubr.bf16.mxu0 %v123
  %367 = vmatmul.mubr.bf16.gmra.mrb[0].mxu0 %v122
  %v368 = vpop.f32.mrb[0].mxu0
  %v369 = vadd.f32 %v92, %v368
  %v370 = vpop.f32.mrb[0].mxu0
  %v371 = vpop.f32.mrb[0].mxu0
  %v372 = vadd.f32 %v92, %v371
  %v373 = vpop.f32.mrb[0].mxu0
  %374 = vdwg.mxu0
  %375 = vmatprep.subr.bf16.mxu0 0
  %376 = vmatpush1.bf16.msra.mxu0 %v278
  %377 = vmatprep.subr.bf16.mxu0 0
  %378 = vmatpush1.bf16.msra.mxu0 %v279
  %379 = vmatprep.subr.bf16.mxu0 0
  %380 = vmatpush1.bf16.msra.mxu0 %v280
  %381 = vmatprep.subr.bf16.mxu0 0
  %382 = vmatpush1.bf16.msra.mxu0 %v281
  %383 = vmatprep.subr.bf16.mxu0 0
  %384 = vmatpush1.bf16.msra.mxu0 %v282
  %385 = vmatprep.subr.bf16.mxu0 0
  %386 = vmatpush1.bf16.msra.mxu0 %v283
  %387 = vmatprep.subr.bf16.mxu0 0
  %388 = vmatpush1.bf16.msra.mxu0 %v284
  %389 = vmatprep.subr.bf16.mxu0 0
  %390 = vmatpush1.bf16.msra.mxu0 %v285
  %391 = vmatprep.subr.bf16.mxu0 0
  %392 = vmatpush1.bf16.msra.mxu0 %v286
  %393 = vmatprep.subr.bf16.mxu0 0
  %394 = vmatpush1.bf16.msra.mxu0 %v287
  %395 = vmatprep.subr.bf16.mxu0 0
  %396 = vmatpush1.bf16.msra.mxu0 %v288
  %397 = vmatprep.subr.bf16.mxu0 0
  %398 = vmatpush1.bf16.msra.mxu0 %v289
  %399 = vmatprep.subr.bf16.mxu0 0
  %400 = vmatpush1.bf16.msra.mxu0 %v290
  %401 = vmatprep.subr.bf16.mxu0 0
  %402 = vmatpush1.bf16.msra.mxu0 %v291
  %403 = vmatprep.subr.bf16.mxu0 0
  %404 = vmatpush1.bf16.msra.mxu0 %v292
  %405 = vmatprep.subr.bf16.mxu0 0
  %406 = vmatpush1.bf16.msra.mxu0 %v293
  %407 = vmatprep.mubr.bf16.mxu0 %v121
  %408 = vmatmul.mubr.bf16.gmra.mrb[0].mxu0 %v120
  %v409 = vpop.f32.mrb[0].mxu0
  %v410 = vadd.f32 %v361, %v409
  %v411 = vpop.f32.mrb[0].mxu0
  %v412 = vpop.f32.mrb[0].mxu0
  %v413 = vadd.f32 %v364, %v412
  %v414 = vpop.f32.mrb[0].mxu0
  %415 = vmatprep.mubr.bf16.mxu0 %v125
  %416 = vmatmul.mubr.bf16.gmra.mrb[0].mxu0 %v124
  %v417 = vpop.f32.mrb[0].mxu0
  %v418 = vadd.f32 %v369, %v417
  %v419 = vpop.f32.mrb[0].mxu0
  %v420 = vpop.f32.mrb[0].mxu0
  %v421 = vadd.f32 %v372, %v420
  %v422 = vpop.f32.mrb[0].mxu0
  %423 = vdwg.mxu0
  %424 = vst [vmem:[%s3] sm:$0xff] %v410
  %425 = vst [vmem:[%s3 + $0x8] sm:$0xff] %v413
  %426 = vst [vmem:[%s3 + $0x10] sm:$0xff] %v418
  %427 = vst [vmem:[%s3 + $0x18] sm:$0xff] %v421
  // Predicated region
  $region14: #{vqvae_forward.21} parent=0 // pred_check
    _
  $region15: #{vqvae_forward.21} parent=0 // pred_check_branch
    %429 = sbr.rel (0) target = $region17
  $region16: #{vqvae_forward.21} parent=0 // pred_region
    _
  $region17: #{vqvae_forward.21} parent=0 // pred_fallthru
    _
  // Predicated region
  $region18: #{vqvae_forward.21} parent=0 // pred_check
    _
  $region19: #{vqvae_forward.21} parent=0 // pred_check_branch
    %431 = sbr.rel (0) target = $region21
  $region20: #{vqvae_forward.21} parent=0 // pred_region
    _
  $region21: #{vqvae_forward.21} parent=0 // pred_fallthru
    _

// kernel: vqvae_forward.19
$region0: #{vqvae_forward.19}
  #allocation0 [shape = 'u32[]', space=smem, size = 0x4, offset = 0x4, fixed_abs, tag = 'smem constant byte address 0x4 - core index']
  #allocation1 [shape = 'u32[144,128]{1,0:T(1,128)}', space=vmem, size = 0x12000, scoped, tag = 'internal scratch']
  %s0 = inlined_call_operand.vmem [shape: bf16[128,48], index: 0, kind: input, shape index: {}]
  %s1 = inlined_call_operand.vmem [shape: bf16[48,128], index: 1, kind: input, shape index: {}]
  %s2 = inlined_call_operand.vmem [shape: f32[1,128], index: 2, kind: input, shape index: {}]
  %s3 = inlined_call_operand.vmem [shape: f32[128,128], index: 3, kind: output, shape index: {0}]
  %s4 = inlined_call_operand.vmem [shape: f32[1,2,128], index: 4, kind: output, shape index: {1}]
  %5 = xla_tuple %s3, %s4
  %s6 = sld [smem:[#allocation0]]
  $region30: #{vqvae_forward.19} parent=0
    _
  %s8 = ssub.s32 1, %s6
  %s9 = scalar_select 0, %s8, %s6
  // Predicated region
  $region2: #{vqvae_forward.19} parent=0 // pred_check
    _
  $region3: #{vqvae_forward.19} parent=0 // pred_check_branch
    %11 = sbr.rel (0) target = $region5
  $region4: #{vqvae_forward.19} parent=0 // pred_region
    _
  $region5: #{vqvae_forward.19} parent=0 // pred_fallthru
    _
  // Predicated region
  $region6: #{vqvae_forward.19} parent=0 // pred_check
    _
  $region7: #{vqvae_forward.19} parent=0 // pred_check_branch
    %13 = sbr.rel (0) target = $region9
  $region8: #{vqvae_forward.19} parent=0 // pred_region
    _
  $region9: #{vqvae_forward.19} parent=0 // pred_fallthru
    _
  // Predicated region
  $region10: #{vqvae_forward.19} parent=0 // pred_check
    _
  $region11: #{vqvae_forward.19} parent=0 // pred_check_branch
    %15 = sbr.rel (0) target = $region13
  $region12: #{vqvae_forward.19} parent=0 // pred_region
    _
  $region13: #{vqvae_forward.19} parent=0 // pred_fallthru
    _
  %v17 = vld [vmem:[%s0] sm:$0xf]
  %v18 = vld [vmem:[%s0 + $0x4] sm:$0xf]
  %v19 = vld [vmem:[%s0 + $0x8] sm:$0xf]
  %v20 = vld [vmem:[%s0 + $0xc] sm:$0xf]
  %v21 = vld [vmem:[%s0 + $0x10] sm:$0xf]
  %v22 = vld [vmem:[%s0 + $0x14] sm:$0xf]
  %v23 = vld [vmem:[%s0 + $0x18] sm:$0xf]
  %v24 = vld [vmem:[%s0 + $0x1c] sm:$0xf]
  %v25 = vld [vmem:[%s0 + $0x20] sm:$0xf]
  %v26 = vld [vmem:[%s0 + $0x24] sm:$0xf]
  %v27 = vld [vmem:[%s0 + $0x28] sm:$0xf]
  %v28 = vld [vmem:[%s0 + $0x2c] sm:$0xf]
  %v29 = vld [vmem:[%s0 + $0x30] sm:$0xf]
  %v30 = vld [vmem:[%s0 + $0x34] sm:$0xf]
  %v31 = vld [vmem:[%s0 + $0x38] sm:$0xf]
  %v32 = vld [vmem:[%s0 + $0x3c] sm:$0xf]
  %v33 = vld [vmem:[%s1] sm:$0xf]
  %v34 = vld [vmem:[%s1 + $0x4] sm:$0xf]
  %v35 = vld [vmem:[%s1 + $0x8] sm:$0xf]
  %v36 = vld [vmem:[%s1 + $0xc] sm:$0xf]
  %v37 = vld [vmem:[%s1 + $0x10] sm:$0xf]
  %v38 = vld [vmem:[%s1 + $0x14] sm:$0xf]
  %v39 = vld [vmem:[%s2] sm:$0x1]
  %v41 = vlaneseq
  %v42 = vshrl.u32 %v41, 7
  %v43 = vsub.s32 0, %v42
  %v44 = vrot.slane %v39, %v43
  %v62 = vunpack.c.l.b16 %v17
  %v63 = vunpack.c.l.b16 %v18
  %v64 = vunpack.c.l.b16 %v19
  %v65 = vunpack.c.l.b16 %v20
  %v66 = vunpack.c.l.b16 %v21
  %v67 = vunpack.c.l.b16 %v22
  %v68 = vunpack.c.l.b16 %v23
  %v69 = vunpack.c.l.b16 %v24
  %v70 = vunpack.c.l.b16 %v25
  %v71 = vunpack.c.l.b16 %v26
  %v72 = vunpack.c.l.b16 %v27
  %v73 = vunpack.c.l.b16 %v28
  %v74 = vunpack.c.l.b16 %v29
  %v75 = vunpack.c.l.b16 %v30
  %v76 = vunpack.c.l.b16 %v31
  %v77 = vunpack.c.l.b16 %v32
  %v78 = vpack.c.b16 %v63, %v62
  %v79 = vpack.c.b16 %v65, %v64
  %v80 = vpack.c.b16 %v67, %v66
  %v81 = vpack.c.b16 %v69, %v68
  %v82 = vpack.c.b16 %v71, %v70
  %v83 = vpack.c.b16 %v73, %v72
  %v84 = vpack.c.b16 %v75, %v74
  %v85 = vpack.c.b16 %v77, %v76
  %v92 = vunpack.c.l.b16 %v33
  %v93 = vunpack.c.l.b16 %v34
  %v94 = vunpack.c.l.b16 %v35
  %v95 = vunpack.c.l.b16 %v36
  %v96 = vunpack.c.l.b16 %v37
  %v97 = vunpack.c.l.b16 %v38
  %v98 = vpack.c.b16 %v93, %v92
  %v99 = vpack.c.b16 %v95, %v94
  %v100 = vpack.c.b16 %v97, %v96
  %vm104 = vcmask 392192
  %v106 = vsel %vm104, %v78, 0
  %v109 = vsel %vm104, %v79, 0
  %v112 = vsel %vm104, %v80, 0
  %v115 = vsel %vm104, %v81, 0
  %v118 = vsel %vm104, %v82, 0
  %v121 = vsel %vm104, %v83, 0
  %v124 = vsel %vm104, %v84, 0
  %v127 = vsel %vm104, %v85, 0
  %129 = vmatprep.subr.bf16.mxu0 0
  %130 = vmatpush1.bf16.msra.mxu0 %v98
  %131 = vmatprep.subr.bf16.mxu0 0
  %132 = vmatpush1.bf16.msra.mxu0 %v99
  %133 = vmatprep.subr.bf16.mxu0 0
  %134 = vmatpush1.bf16.msra.mxu0 %v100
  %135 = vmatprep.subr.bf16.mxu0 0
  %136 = vmatpush1.bf16.msra.mxu0 0
  %137 = vmatprep.subr.bf16.mxu0 0
  %138 = vmatpush1.bf16.msra.mxu0 0
  %139 = vmatprep.subr.bf16.mxu0 0
  %140 = vmatpush1.bf16.msra.mxu0 0
  %141 = vmatprep.subr.bf16.mxu0 0
  %142 = vmatpush1.bf16.msra.mxu0 0
  %143 = vmatprep.subr.bf16.mxu0 0
  %144 = vmatpush1.bf16.msra.mxu0 0
  %145 = vmatprep.subr.bf16.mxu0 0
  %146 = vmatpush1.bf16.msra.mxu0 0
  %147 = vmatprep.subr.bf16.mxu0 0
  %148 = vmatpush1.bf16.msra.mxu0 0
  %149 = vmatprep.subr.bf16.mxu0 0
  %150 = vmatpush1.bf16.msra.mxu0 0
  %151 = vmatprep.subr.bf16.mxu0 0
  %152 = vmatpush1.bf16.msra.mxu0 0
  %153 = vmatprep.subr.bf16.mxu0 0
  %154 = vmatpush1.bf16.msra.mxu0 0
  %155 = vmatprep.subr.bf16.mxu0 0
  %156 = vmatpush1.bf16.msra.mxu0 0
  %157 = vmatprep.subr.bf16.mxu0 0
  %158 = vmatpush1.bf16.msra.mxu0 0
  %159 = vmatprep.subr.bf16.mxu0 0
  %160 = vmatpush1.bf16.msra.mxu0 0
  %161 = vmatprep.mubr.bf16.mxu0 0
  %162 = vmatmul.mubr.bf16.gmra.mrb[0].mxu0 %v106
  %v163 = vpop.f32.mrb[0].mxu0
  %v164 = vadd.f32 %v44, %v163
  %v165 = vpop.f32.mrb[0].mxu0
  %v166 = vpop.f32.mrb[0].mxu0
  %v167 = vadd.f32 %v44, %v166
  %v168 = vpop.f32.mrb[0].mxu0
  %169 = vmatprep.mubr.bf16.mxu0 0
  %170 = vmatmul.mubr.bf16.gmra.mrb[0].mxu0 %v109
  %v171 = vpop.f32.mrb[0].mxu0
  %v172 = vadd.f32 %v44, %v171
  %v173 = vpop.f32.mrb[0].mxu0
  %v174 = vpop.f32.mrb[0].mxu0
  %v175 = vadd.f32 %v44, %v174
  %v176 = vpop.f32.mrb[0].mxu0
  %177 = vmatprep.mubr.bf16.mxu0 0
  %178 = vmatmul.mubr.bf16.gmra.mrb[0].mxu0 %v112
  %v179 = vpop.f32.mrb[0].mxu0
  %v180 = vadd.f32 %v44, %v179
  %v181 = vpop.f32.mrb[0].mxu0
  %v182 = vpop.f32.mrb[0].mxu0
  %v183 = vadd.f32 %v44, %v182
  %v184 = vpop.f32.mrb[0].mxu0
  %185 = vmatprep.mubr.bf16.mxu0 0
  %186 = vmatmul.mubr.bf16.gmra.mrb[0].mxu0 %v115
  %v187 = vpop.f32.mrb[0].mxu0
  %v188 = vadd.f32 %v44, %v187
  %v189 = vpop.f32.mrb[0].mxu0
  %v190 = vpop.f32.mrb[0].mxu0
  %v191 = vadd.f32 %v44, %v190
  %v192 = vpop.f32.mrb[0].mxu0
  %193 = vmatprep.mubr.bf16.mxu0 0
  %194 = vmatmul.mubr.bf16.gmra.mrb[0].mxu0 %v118
  %v195 = vpop.f32.mrb[0].mxu0
  %v196 = vadd.f32 %v44, %v195
  %v197 = vpop.f32.mrb[0].mxu0
  %v198 = vpop.f32.mrb[0].mxu0
  %v199 = vadd.f32 %v44, %v198
  %v200 = vpop.f32.mrb[0].mxu0
  %201 = vmatprep.mubr.bf16.mxu0 0
  %202 = vmatmul.mubr.bf16.gmra.mrb[0].mxu0 %v121
  %v203 = vpop.f32.mrb[0].mxu0
  %v204 = vadd.f32 %v44, %v203
  %v205 = vpop.f32.mrb[0].mxu0
  %v206 = vpop.f32.mrb[0].mxu0
  %v207 = vadd.f32 %v44, %v206
  %v208 = vpop.f32.mrb[0].mxu0
  %209 = vmatprep.mubr.bf16.mxu0 0
  %210 = vmatmul.mubr.bf16.gmra.mrb[0].mxu0 %v124
  %v211 = vpop.f32.mrb[0].mxu0
  %v212 = vadd.f32 %v44, %v211
  %v213 = vpop.f32.mrb[0].mxu0
  %v214 = vpop.f32.mrb[0].mxu0
  %v215 = vadd.f32 %v44, %v214
  %v216 = vpop.f32.mrb[0].mxu0
  %217 = vmatprep.mubr.bf16.mxu0 0
  %218 = vmatmul.mubr.bf16.gmra.mrb[0].mxu0 %v127
  %v219 = vpop.f32.mrb[0].mxu0
  %v220 = vadd.f32 %v44, %v219
  %v221 = vpop.f32.mrb[0].mxu0
  %v222 = vpop.f32.mrb[0].mxu0
  %v223 = vadd.f32 %v44, %v222
  %v224 = vpop.f32.mrb[0].mxu0
  %225 = vdwg.mxu0
  %226 = vst [vmem:[%s3] sm:$0xff] %v164
  %227 = vst [vmem:[%s3 + $0x8] sm:$0xff] %v167
  %228 = vst [vmem:[%s3 + $0x10] sm:$0xff] %v172
  %229 = vst [vmem:[%s3 + $0x18] sm:$0xff] %v175
  %230 = vst [vmem:[%s3 + $0x20] sm:$0xff] %v180
  %231 = vst [vmem:[%s3 + $0x28] sm:$0xff] %v183
  %232 = vst [vmem:[%s3 + $0x30] sm:$0xff] %v188
  %233 = vst [vmem:[%s3 + $0x38] sm:$0xff] %v191
  %234 = vst [vmem:[%s3 + $0x40] sm:$0xff] %v196
  %235 = vst [vmem:[%s3 + $0x48] sm:$0xff] %v199
  %236 = vst [vmem:[%s3 + $0x50] sm:$0xff] %v204
  %237 = vst [vmem:[%s3 + $0x58] sm:$0xff] %v207
  %238 = vst [vmem:[%s3 + $0x60] sm:$0xff] %v212
  %239 = vst [vmem:[%s3 + $0x68] sm:$0xff] %v215
  %240 = vst [vmem:[%s3 + $0x70] sm:$0xff] %v220
  %241 = vst [vmem:[%s3 + $0x78] sm:$0xff] %v223
  %s242 = smul.u32 0, 128
  %v243 = vlaneseq
  %v244 = vshrl.u32 %v243, 7
  %v245 = vadd.s32 %v244, 8
  %v246 = vadd.s32 %v244, 16
  %v247 = vadd.s32 %v244, 24
  %v248 = vadd.s32 %v244, 32
  %v249 = vadd.s32 %v244, 40
  %v250 = vadd.s32 %v244, 48
  %v251 = vadd.s32 %v244, 56
  %v252 = vadd.s32 %v244, 64
  %v253 = vadd.s32 %v244, 72
  %v254 = vadd.s32 %v244, 80
  %v255 = vadd.s32 %v244, 88
  %v256 = vadd.s32 %v244, 96
  %v257 = vadd.s32 %v244, 104
  %v258 = vadd.s32 %v244, 112
  %v259 = vadd.s32 %v244, 120
  %v260 = vstv %s242
  %v261 = vadd.s32 %v260, %v244
  %v262 = vadd.s32 %v260, %v245
  %v263 = vadd.s32 %v260, %v246
  %v264 = vadd.s32 %v260, %v247
  %v265 = vadd.s32 %v260, %v248
  %v266 = vadd.s32 %v260, %v249
  %v267 = vadd.s32 %v260, %v250
  %v268 = vadd.s32 %v260, %v251
  %v269 = vadd.s32 %v260, %v252
  %v270 = vadd.s32 %v260, %v253
  %v271 = vadd.s32 %v260, %v254
  %v272 = vadd.s32 %v260, %v255
  %v273 = vadd.s32 %v260, %v256
  %v274 = vadd.s32 %v260, %v257
  %v275 = vadd.s32 %v260, %v258
  %v276 = vadd.s32 %v260, %v259
  %vm277 = vcmp.lt.s32.totalorder %v261, 128
  %vm278 = vcmp.lt.s32.totalorder %v262, 128
  %vm279 = vcmp.lt.s32.totalorder %v263, 128
  %vm280 = vcmp.lt.s32.totalorder %v264, 128
  %vm281 = vcmp.lt.s32.totalorder %v265, 128
  %vm282 = vcmp.lt.s32.totalorder %v266, 128
  %vm283 = vcmp.lt.s32.totalorder %v267, 128
  %vm284 = vcmp.lt.s32.totalorder %v268, 128
  %vm285 = vcmp.lt.s32.totalorder %v269, 128
  %vm286 = vcmp.lt.s32.totalorder %v270, 128
  %vm287 = vcmp.lt.s32.totalorder %v271, 128
  %vm288 = vcmp.lt.s32.totalorder %v272, 128
  %vm289 = vcmp.lt.s32.totalorder %v273, 128
  %vm290 = vcmp.lt.s32.totalorder %v274, 128
  %vm291 = vcmp.lt.s32.totalorder %v275, 128
  %vm292 = vcmp.lt.s32.totalorder %v276, 128
  %v293 = vsel %vm277, 1, 0
  %v294 = vsel %vm278, 1, 0
  %v295 = vsel %vm279, 1, 0
  %v296 = vsel %vm280, 1, 0
  %v297 = vsel %vm281, 1, 0
  %v298 = vsel %vm282, 1, 0
  %v299 = vsel %vm283, 1, 0
  %v300 = vsel %vm284, 1, 0
  %v301 = vsel %vm285, 1, 0
  %v302 = vsel %vm286, 1, 0
  %v303 = vsel %vm287, 1, 0
  %v304 = vsel %vm288, 1, 0
  %v305 = vsel %vm289, 1, 0
  %v306 = vsel %vm290, 1, 0
  %v307 = vsel %vm291, 1, 0
  %v308 = vsel %vm292, 1, 0
  %vm309 = vcmp.eq.s32.totalorder %v293, 1
  %vm310 = vcmp.eq.s32.totalorder %v294, 1
  %vm311 = vcmp.eq.s32.totalorder %v295, 1
  %vm312 = vcmp.eq.s32.totalorder %v296, 1
  %vm313 = vcmp.eq.s32.totalorder %v297, 1
  %vm314 = vcmp.eq.s32.totalorder %v298, 1
  %vm315 = vcmp.eq.s32.totalorder %v299, 1
  %vm316 = vcmp.eq.s32.totalorder %v300, 1
  %vm317 = vcmp.eq.s32.totalorder %v301, 1
  %vm318 = vcmp.eq.s32.totalorder %v302, 1
  %vm319 = vcmp.eq.s32.totalorder %v303, 1
  %vm320 = vcmp.eq.s32.totalorder %v304, 1
  %vm321 = vcmp.eq.s32.totalorder %v305, 1
  %vm322 = vcmp.eq.s32.totalorder %v306, 1
  %vm323 = vcmp.eq.s32.totalorder %v307, 1
  %vm324 = vcmp.eq.s32.totalorder %v308, 1
  %v325 = vsel %vm309, %v164, 0.0
  %v326 = vsel %vm310, %v167, 0.0
  %v327 = vsel %vm311, %v172, 0.0
  %v328 = vsel %vm312, %v175, 0.0
  %v329 = vsel %vm313, %v180, 0.0
  %v330 = vsel %vm314, %v183, 0.0
  %v331 = vsel %vm315, %v188, 0.0
  %v332 = vsel %vm316, %v191, 0.0
  %v333 = vsel %vm317, %v196, 0.0
  %v334 = vsel %vm318, %v199, 0.0
  %v335 = vsel %vm319, %v204, 0.0
  %v336 = vsel %vm320, %v207, 0.0
  %v337 = vsel %vm321, %v212, 0.0
  %v338 = vsel %vm322, %v215, 0.0
  %v339 = vsel %vm323, %v220, 0.0
  %v340 = vsel %vm324, %v223, 0.0
  %v341 = vadd.f32 %v325, %v326
  %v342 = vadd.f32 %v341, %v327
  %v343 = vadd.f32 %v342, %v328
  %v344 = vadd.f32 %v343, %v329
  %v345 = vadd.f32 %v344, %v330
  %v346 = vadd.f32 %v345, %v331
  %v347 = vadd.f32 %v346, %v332
  %v348 = vadd.f32 %v347, %v333
  %v349 = vadd.f32 %v348, %v334
  %v350 = vadd.f32 %v349, %v335
  %v351 = vadd.f32 %v350, %v336
  %v352 = vadd.f32 %v351, %v337
  %v353 = vadd.f32 %v352, %v338
  %v354 = vadd.f32 %v353, %v339
  %v355 = vadd.f32 %v354, %v340
  %v356 = vrot.slane %v355, 4
  %v357 = vadd.f32 %v355, %v356
  %v358 = vrot.slane %v357, 2
  %v359 = vadd.f32 %v357, %v358
  %v360 = vrot.slane %v359, 1
  %v361 = vadd.f32 %v359, %v360
  %v362 = vmul.f32 %v325, %v325
  %v363 = vmul.f32 %v326, %v326
  %v364 = vmul.f32 %v327, %v327
  %v365 = vmul.f32 %v328, %v328
  %v366 = vmul.f32 %v329, %v329
  %v367 = vmul.f32 %v330, %v330
  %v368 = vmul.f32 %v331, %v331
  %v369 = vmul.f32 %v332, %v332
  %v370 = vmul.f32 %v333, %v333
  %v371 = vmul.f32 %v334, %v334
  %v372 = vmul.f32 %v335, %v335
  %v373 = vmul.f32 %v336, %v336
  %v374 = vmul.f32 %v337, %v337
  %v375 = vmul.f32 %v338, %v338
  %v376 = vmul.f32 %v339, %v339
  %v377 = vmul.f32 %v340, %v340
  %v378 = vadd.f32 %v362, %v363
  %v379 = vadd.f32 %v378, %v364
  %v380 = vadd.f32 %v379, %v365
  %v381 = vadd.f32 %v380, %v366
  %v382 = vadd.f32 %v381, %v367
  %v383 = vadd.f32 %v382, %v368
  %v384 = vadd.f32 %v383, %v369
  %v385 = vadd.f32 %v384, %v370
  %v386 = vadd.f32 %v385, %v371
  %v387 = vadd.f32 %v386, %v372
  %v388 = vadd.f32 %v387, %v373
  %v389 = vadd.f32 %v388, %v374
  %v390 = vadd.f32 %v389, %v375
  %v391 = vadd.f32 %v390, %v376
  %v392 = vadd.f32 %v391, %v377
  %v393 = vrot.slane %v392, 4
  %v394 = vadd.f32 %v392, %v393
  %v395 = vrot.slane %v394, 2
  %v396 = vadd.f32 %v394, %v395
  %v397 = vrot.slane %v396, 1
  %v398 = vadd.f32 %v396, %v397
  %vm399 = vcmask 1040384
  %v400 = vsel %vm399, %v361, %v398
  %401 = vst [vmem:[%s4] sm:$0x3] %v400
  // Predicated region
  $region14: #{vqvae_forward.19} parent=0 // pred_check
    _
  $region15: #{vqvae_forward.19} parent=0 // pred_check_branch
    %403 = sbr.rel (0) target = $region17
  $region16: #{vqvae_forward.19} parent=0 // pred_region
    _
  $region17: #{vqvae_forward.19} parent=0 // pred_fallthru
    _
  // Predicated region
  $region18: #{vqvae_forward.19} parent=0 // pred_check
    _
  $region19: #{vqvae_forward.19} parent=0 // pred_check_branch
    %405 = sbr.rel (0) target = $region21
  $region20: #{vqvae_forward.19} parent=0 // pred_region
    _
  $region21: #{vqvae_forward.19} parent=0 // pred_fallthru
    _
  // Predicated region
  $region22: #{vqvae_forward.19} parent=0 // pred_check
    _
  $region23: #{vqvae_forward.19} parent=0 // pred_check_branch
    %407 = sbr.rel (0) target = $region25
  $region24: #{vqvae_forward.19} parent=0 // pred_region
    _
  $region25: #{vqvae_forward.19} parent=0 // pred_fallthru
    _
  // Predicated region
  $region26: #{vqvae_forward.19} parent=0 // pred_check
    _
  $region27: #{vqvae_forward.19} parent=0 // pred_check_branch
    %409 = sbr.rel (0) target = $region29
  $region28: #{vqvae_forward.19} parent=0 // pred_region
    _
  $region29: #{vqvae_forward.19} parent=0 // pred_fallthru
    _

// kernel: vqvae_forward.24
$region0: #{vqvae_forward.24}
  #allocation0 [shape = 'u32[]', space=smem, size = 0x4, offset = 0x4, fixed_abs, tag = 'smem constant byte address 0x4 - core index']
  #allocation1 [shape = 'u32[144,128]{1,0:T(1,128)}', space=vmem, size = 0x12000, scoped, tag = 'internal scratch']
  %s0 = inlined_call_operand.vmem [shape: f32[32,32], index: 0, kind: input, shape index: {}]
  %s1 = inlined_call_operand.vmem [shape: f32[1,2,32], index: 1, kind: input, shape index: {}]
  %s2 = inlined_call_operand.vmem [shape: f32[32,32], index: 2, kind: input, shape index: {}]
  %s3 = inlined_call_operand.vmem [shape: f32[32,32], index: 3, kind: output, shape index: {}]
  %s4 = sld [smem:[#allocation0]]
  $region22: #{vqvae_forward.24} parent=0
    _
  %s6 = ssub.s32 1, %s4
  %s7 = scalar_select 0, %s6, %s4
  // Predicated region
  $region2: #{vqvae_forward.24} parent=0 // pred_check
    _
  $region3: #{vqvae_forward.24} parent=0 // pred_check_branch
    %9 = sbr.rel (0) target = $region5
  $region4: #{vqvae_forward.24} parent=0 // pred_region
    _
  $region5: #{vqvae_forward.24} parent=0 // pred_fallthru
    _
  // Predicated region
  $region6: #{vqvae_forward.24} parent=0 // pred_check
    _
  $region7: #{vqvae_forward.24} parent=0 // pred_check_branch
    %11 = sbr.rel (0) target = $region9
  $region8: #{vqvae_forward.24} parent=0 // pred_region
    _
  $region9: #{vqvae_forward.24} parent=0 // pred_fallthru
    _
  // Predicated region
  $region10: #{vqvae_forward.24} parent=0 // pred_check
    _
  $region11: #{vqvae_forward.24} parent=0 // pred_check_branch
    %13 = sbr.rel (0) target = $region13
  $region12: #{vqvae_forward.24} parent=0 // pred_region
    _
  $region13: #{vqvae_forward.24} parent=0 // pred_fallthru
    _
  %v14 = vld [vmem:[%s1] sm:$0x3]
  %v15 = vadd.f32 %v14, 0.0
  %v16 = vmul.f32 %v15, 0.03125
  %v17 = vmul.f32 %v16, %v16
  %v19 = vrot.slane %v17, 7
  %v21 = vsub.f32 %v16, %v19
  %v22 = vmax.f32 %v21, 0.0
  %v23 = vld [vmem:[%s0] sm:$0xff]
  %v24 = vld [vmem:[%s0 + $0x8] sm:$0xff]
  %v25 = vld [vmem:[%s0 + $0x10] sm:$0xff]
  %v26 = vld [vmem:[%s0 + $0x18] sm:$0xff]
  %v27 = vlaneseq
  %v28 = vshrl.u32 %v27, 7
  %v29 = vsub.s32 0, %v28
  %v30 = vrot.slane %v16, %v29
  %v31 = vsub.f32 %v23, %v30
  %v32 = vsub.f32 %v24, %v30
  %v33 = vsub.f32 %v25, %v30
  %v34 = vsub.f32 %v26, %v30
  %v35 = vadd.f32 %v22, 1e-05
  %v36 = vrsqrt.pop %v35
  %v37 = vlaneseq
  %v38 = vshrl.u32 %v37, 7
  %v39 = vsub.s32 1, %v38
  %v40 = vrot.slane %v36, %v39
  %v41 = vmul.f32 %v31, %v40
  %v42 = vmul.f32 %v32, %v40
  %v43 = vmul.f32 %v33, %v40
  %v44 = vmul.f32 %v34, %v40
  %v45 = vld [vmem:[%s2] sm:$0xff]
  %v46 = vld [vmem:[%s2 + $0x8] sm:$0xff]
  %v47 = vld [vmem:[%s2 + $0x10] sm:$0xff]
  %v48 = vld [vmem:[%s2 + $0x18] sm:$0xff]
  %v49 = vadd.f32 %v41, %v45
  %v50 = vadd.f32 %v42, %v46
  %v51 = vadd.f32 %v43, %v47
  %v52 = vadd.f32 %v44, %v48
  %vm53 = vcmask 261120
  %54 = vst.msk [vmem:[%s3] sm:$0xff] %vm53, %v49
  %55 = vst.msk [vmem:[%s3 + $0x8] sm:$0xff] %vm53, %v50
  %56 = vst.msk [vmem:[%s3 + $0x10] sm:$0xff] %vm53, %v51
  %57 = vst.msk [vmem:[%s3 + $0x18] sm:$0xff] %vm53, %v52
  // Predicated region
  $region14: #{vqvae_forward.24} parent=0 // pred_check
    _
  $region15: #{vqvae_forward.24} parent=0 // pred_check_branch
    %59 = sbr.rel (0) target = $region17
  $region16: #{vqvae_forward.24} parent=0 // pred_region
    _
  $region17: #{vqvae_forward.24} parent=0 // pred_fallthru
    _
  // Predicated region
  $region18: #{vqvae_forward.24} parent=0 // pred_check
    _
  $region19: #{vqvae_forward.24} parent=0 // pred_check_branch
    %61 = sbr.rel (0) target = $region21
  $region20: #{vqvae_forward.24} parent=0 // pred_region
    _
  $region21: #{vqvae_forward.24} parent=0 // pred_fallthru
    _

// kernel: vqvae_forward.23
$region0: #{vqvae_forward.23}
  #allocation0 [shape = 'u32[]', space=smem, size = 0x4, offset = 0x4, fixed_abs, tag = 'smem constant byte address 0x4 - core index']
  #allocation1 [shape = 'u32[144,128]{1,0:T(1,128)}', space=vmem, size = 0x12000, scoped, tag = 'internal scratch']
  %s0 = inlined_call_operand.vmem [shape: f32[32,32], index: 0, kind: input, shape index: {}]
  %s1 = inlined_call_operand.vmem [shape: bf16[32,128], index: 1, kind: input, shape index: {}]
  %s2 = inlined_call_operand.vmem [shape: f32[1,128], index: 2, kind: input, shape index: {}]
  %s3 = inlined_call_operand.vmem [shape: f32[1,2,32], index: 3, kind: input, shape index: {}]
  %s4 = inlined_call_operand.vmem [shape: f32[32,128], index: 4, kind: output, shape index: {0}]
  %s5 = inlined_call_operand.vmem [shape: f32[1,2,128], index: 5, kind: output, shape index: {1}]
  %6 = xla_tuple %s4, %s5
  %s7 = sld [smem:[#allocation0]]
  $region34: #{vqvae_forward.23} parent=0
    _
  %s9 = ssub.s32 1, %s7
  %s10 = scalar_select 0, %s9, %s7
  // Predicated region
  $region2: #{vqvae_forward.23} parent=0 // pred_check
    _
  $region3: #{vqvae_forward.23} parent=0 // pred_check_branch
    %12 = sbr.rel (0) target = $region5
  $region4: #{vqvae_forward.23} parent=0 // pred_region
    _
  $region5: #{vqvae_forward.23} parent=0 // pred_fallthru
    _
  // Predicated region
  $region6: #{vqvae_forward.23} parent=0 // pred_check
    _
  $region7: #{vqvae_forward.23} parent=0 // pred_check_branch
    %14 = sbr.rel (0) target = $region9
  $region8: #{vqvae_forward.23} parent=0 // pred_region
    _
  $region9: #{vqvae_forward.23} parent=0 // pred_fallthru
    _
  // Predicated region
  $region10: #{vqvae_forward.23} parent=0 // pred_check
    _
  $region11: #{vqvae_forward.23} parent=0 // pred_check_branch
    %16 = sbr.rel (0) target = $region13
  $region12: #{vqvae_forward.23} parent=0 // pred_region
    _
  $region13: #{vqvae_forward.23} parent=0 // pred_fallthru
    _
  // Predicated region
  $region14: #{vqvae_forward.23} parent=0 // pred_check
    _
  $region15: #{vqvae_forward.23} parent=0 // pred_check_branch
    %18 = sbr.rel (0) target = $region17
  $region16: #{vqvae_forward.23} parent=0 // pred_region
    _
  $region17: #{vqvae_forward.23} parent=0 // pred_fallthru
    _
  %v20 = vld [vmem:[%s0] sm:$0xff]
  %v21 = vld [vmem:[%s0 + $0x8] sm:$0xff]
  %v22 = vld [vmem:[%s0 + $0x10] sm:$0xff]
  %v23 = vld [vmem:[%s0 + $0x18] sm:$0xff]
  %v24 = vld [vmem:[%s3] sm:$0x3]
  %v25 = vadd.f32 %v24, 0.0
  %v26 = vmul.f32 %v25, 0.03125
  %v27 = vmul.f32 %v26, %v26
  %v29 = vrot.slane %v27, 7
  %v31 = vsub.f32 %v26, %v29
  %v32 = vmax.f32 %v31, 0.0
  %v33 = vlaneseq
  %v34 = vshrl.u32 %v33, 7
  %v35 = vsub.s32 0, %v34
  %v36 = vrot.slane %v26, %v35
  %v37 = vsub.f32 %v20, %v36
  %v38 = vsub.f32 %v21, %v36
  %v39 = vsub.f32 %v22, %v36
  %v40 = vsub.f32 %v23, %v36
  %v41 = vadd.f32 %v32, 1e-05
  %v42 = vrsqrt.pop %v41
  %v43 = vlaneseq
  %v44 = vshrl.u32 %v43, 7
  %v45 = vsub.s32 1, %v44
  %v46 = vrot.slane %v42, %v45
  %v47 = vmul.f32 %v37, %v46
  %v48 = vmul.f32 %v38, %v46
  %v49 = vmul.f32 %v39, %v46
  %v50 = vmul.f32 %v40, %v46
  %v51 = vmax.f32 %v47, 0.0
  %v52 = vmax.f32 %v48, 0.0
  %v53 = vmax.f32 %v49, 0.0
  %v54 = vmax.f32 %v50, 0.0
  %v55 = vpack.c.bf16 %v52, %v51
  %v56 = vpack.c.bf16 %v54, %v53
  %v57 = vld [vmem:[%s1] sm:$0xf]
  %v58 = vld [vmem:[%s1 + $0x4] sm:$0xf]
  %v59 = vld [vmem:[%s1 + $0x8] sm:$0xf]
  %v60 = vld [vmem:[%s1 + $0xc] sm:$0xf]
  %v61 = vld [vmem:[%s2] sm:$0x1]
  %v63 = vlaneseq
  %v64 = vshrl.u32 %v63, 7
  %v65 = vsub.s32 0, %v64
  %v66 = vrot.slane %v61, %v65
  %v72 = vunpack.c.l.b16 %v57
  %v73 = vunpack.c.l.b16 %v58
  %v74 = vunpack.c.l.b16 %v59
  %v75 = vunpack.c.l.b16 %v60
  %v76 = vpack.c.b16 %v73, %v72
  %v77 = vpack.c.b16 %v75, %v74
  %vm80 = vcmask 261120
  %v82 = vsel %vm80, %v55, 0
  %v85 = vsel %vm80, %v56, 0
  %87 = vmatprep.subr.bf16.mxu0 0
  %88 = vmatpush1.bf16.msra.mxu0 %v76
  %89 = vmatprep.subr.bf16.mxu0 0
  %90 = vmatpush1.bf16.msra.mxu0 %v77
  %91 = vmatprep.subr.bf16.mxu0 0
  %92 = vmatpush1.bf16.msra.mxu0 0
  %93 = vmatprep.subr.bf16.mxu0 0
  %94 = vmatpush1.bf16.msra.mxu0 0
  %95 = vmatprep.subr.bf16.mxu0 0
  %96 = vmatpush1.bf16.msra.mxu0 0
  %97 = vmatprep.subr.bf16.mxu0 0
  %98 = vmatpush1.bf16.msra.mxu0 0
  %99 = vmatprep.subr.bf16.mxu0 0
  %100 = vmatpush1.bf16.msra.mxu0 0
  %101 = vmatprep.subr.bf16.mxu0 0
  %102 = vmatpush1.bf16.msra.mxu0 0
  %103 = vmatprep.subr.bf16.mxu0 0
  %104 = vmatpush1.bf16.msra.mxu0 0
  %105 = vmatprep.subr.bf16.mxu0 0
  %106 = vmatpush1.bf16.msra.mxu0 0
  %107 = vmatprep.subr.bf16.mxu0 0
  %108 = vmatpush1.bf16.msra.mxu0 0
  %109 = vmatprep.subr.bf16.mxu0 0
  %110 = vmatpush1.bf16.msra.mxu0 0
  %111 = vmatprep.subr.bf16.mxu0 0
  %112 = vmatpush1.bf16.msra.mxu0 0
  %113 = vmatprep.subr.bf16.mxu0 0
  %114 = vmatpush1.bf16.msra.mxu0 0
  %115 = vmatprep.subr.bf16.mxu0 0
  %116 = vmatpush1.bf16.msra.mxu0 0
  %117 = vmatprep.subr.bf16.mxu0 0
  %118 = vmatpush1.bf16.msra.mxu0 0
  %119 = vmatprep.mubr.bf16.mxu0 0
  %120 = vmatmul.mubr.bf16.gmra.mrb[0].mxu0 %v82
  %v121 = vpop.f32.mrb[0].mxu0
  %v122 = vadd.f32 %v66, %v121
  %v123 = vpop.f32.mrb[0].mxu0
  %v124 = vpop.f32.mrb[0].mxu0
  %v125 = vadd.f32 %v66, %v124
  %v126 = vpop.f32.mrb[0].mxu0
  %127 = vmatprep.mubr.bf16.mxu0 0
  %128 = vmatmul.mubr.bf16.gmra.mrb[0].mxu0 %v85
  %v129 = vpop.f32.mrb[0].mxu0
  %v130 = vadd.f32 %v66, %v129
  %v131 = vpop.f32.mrb[0].mxu0
  %v132 = vpop.f32.mrb[0].mxu0
  %v133 = vadd.f32 %v66, %v132
  %v134 = vpop.f32.mrb[0].mxu0
  %135 = vdwg.mxu0
  %136 = vst [vmem:[%s4] sm:$0xff] %v122
  %137 = vst [vmem:[%s4 + $0x8] sm:$0xff] %v125
  %138 = vst [vmem:[%s4 + $0x10] sm:$0xff] %v130
  %139 = vst [vmem:[%s4 + $0x18] sm:$0xff] %v133
  %s140 = smul.u32 0, 32
  %v141 = vlaneseq
  %v142 = vshrl.u32 %v141, 7
  %v143 = vadd.s32 %v142, 8
  %v144 = vadd.s32 %v142, 16
  %v145 = vadd.s32 %v142, 24
  %v146 = vstv %s140
  %v147 = vadd.s32 %v146, %v142
  %v148 = vadd.s32 %v146, %v143
  %v149 = vadd.s32 %v146, %v144
  %v150 = vadd.s32 %v146, %v145
  %vm151 = vcmp.lt.s32.totalorder %v147, 32
  %vm152 = vcmp.lt.s32.totalorder %v148, 32
  %vm153 = vcmp.lt.s32.totalorder %v149, 32
  %vm154 = vcmp.lt.s32.totalorder %v150, 32
  %v155 = vsel %vm151, 1, 0
  %v156 = vsel %vm152, 1, 0
  %v157 = vsel %vm153, 1, 0
  %v158 = vsel %vm154, 1, 0
  %vm159 = vcmp.eq.s32.totalorder %v155, 1
  %vm160 = vcmp.eq.s32.totalorder %v156, 1
  %vm161 = vcmp.eq.s32.totalorder %v157, 1
  %vm162 = vcmp.eq.s32.totalorder %v158, 1
  %v163 = vsel %vm159, %v122, 0.0
  %v164 = vsel %vm160, %v125, 0.0
  %v165 = vsel %vm161, %v130, 0.0
  %v166 = vsel %vm162, %v133, 0.0
  %v167 = vadd.f32 %v163, %v164
  %v168 = vadd.f32 %v167, %v165
  %v169 = vadd.f32 %v168, %v166
  %v170 = vrot.slane %v169, 4
  %v171 = vadd.f32 %v169, %v170
  %v172 = vrot.slane %v171, 2
  %v173 = vadd.f32 %v171, %v172
  %v174 = vrot.slane %v173, 1
  %v175 = vadd.f32 %v173, %v174
  %v176 = vmul.f32 %v163, %v163
  %v177 = vmul.f32 %v164, %v164
  %v178 = vmul.f32 %v165, %v165
  %v179 = vmul.f32 %v166, %v166
  %v180 = vadd.f32 %v176, %v177
  %v181 = vadd.f32 %v180, %v178
  %v182 = vadd.f32 %v181, %v179
  %v183 = vrot.slane %v182, 4
  %v184 = vadd.f32 %v182, %v183
  %v185 = vrot.slane %v184, 2
  %v186 = vadd.f32 %v184, %v185
  %v187 = vrot.slane %v186, 1
  %v188 = vadd.f32 %v186, %v187
  %vm189 = vcmask 1040384
  %v190 = vsel %vm189, %v175, %v188
  %191 = vst [vmem:[%s5] sm:$0x3] %v190
  // Predicated region
  $region18: #{vqvae_forward.23} parent=0 // pred_check
    _
  $region19: #{vqvae_forward.23} parent=0 // pred_check_branch
    %193 = sbr.rel (0) target = $region21
  $region20: #{vqvae_forward.23} parent=0 // pred_region
    _
  $region21: #{vqvae_forward.23} parent=0 // pred_fallthru
    _
  // Predicated region
  $region22: #{vqvae_forward.23} parent=0 // pred_check
    _
  $region23: #{vqvae_forward.23} parent=0 // pred_check_branch
    %195 = sbr.rel (0) target = $region25
  $region24: #{vqvae_forward.23} parent=0 // pred_region
    _
  $region25: #{vqvae_forward.23} parent=0 // pred_fallthru
    _
  // Predicated region
  $region26: #{vqvae_forward.23} parent=0 // pred_check
    _
  $region27: #{vqvae_forward.23} parent=0 // pred_check_branch
    %197 = sbr.rel (0) target = $region29
  $region28: #{vqvae_forward.23} parent=0 // pred_region
    _
  $region29: #{vqvae_forward.23} parent=0 // pred_fallthru
    _
  // Predicated region
  $region30: #{vqvae_forward.23} parent=0 // pred_check
    _
  $region31: #{vqvae_forward.23} parent=0 // pred_check_branch
    %199 = sbr.rel (0) target = $region33
  $region32: #{vqvae_forward.23} parent=0 // pred_region
    _
  $region33: #{vqvae_forward.23} parent=0 // pred_fallthru
    _

// kernel: vqvae_forward.22
$region0: #{vqvae_forward.22}
  #allocation0 [shape = 'u32[]', space=smem, size = 0x4, offset = 0x4, fixed_abs, tag = 'smem constant byte address 0x4 - core index']
  #allocation1 [shape = 'u32[144,128]{1,0:T(1,128)}', space=vmem, size = 0x12000, scoped, tag = 'internal scratch']
  %s0 = inlined_call_operand.vmem [shape: bf16[32,288], index: 0, kind: input, shape index: {}]
  %s1 = inlined_call_operand.vmem [shape: bf16[288,128], index: 1, kind: input, shape index: {}]
  %s2 = inlined_call_operand.vmem [shape: f32[1,128], index: 2, kind: input, shape index: {}]
  %s3 = inlined_call_operand.vmem [shape: f32[32,128], index: 3, kind: output, shape index: {0}]
  %s4 = inlined_call_operand.vmem [shape: f32[1,2,128], index: 4, kind: output, shape index: {1}]
  %5 = xla_tuple %s3, %s4
  %s6 = sld [smem:[#allocation0]]
  $region30: #{vqvae_forward.22} parent=0
    _
  %s8 = ssub.s32 1, %s6
  %s9 = scalar_select 0, %s8, %s6
  // Predicated region
  $region2: #{vqvae_forward.22} parent=0 // pred_check
    _
  $region3: #{vqvae_forward.22} parent=0 // pred_check_branch
    %11 = sbr.rel (0) target = $region5
  $region4: #{vqvae_forward.22} parent=0 // pred_region
    _
  $region5: #{vqvae_forward.22} parent=0 // pred_fallthru
    _
  // Predicated region
  $region6: #{vqvae_forward.22} parent=0 // pred_check
    _
  $region7: #{vqvae_forward.22} parent=0 // pred_check_branch
    %13 = sbr.rel (0) target = $region9
  $region8: #{vqvae_forward.22} parent=0 // pred_region
    _
  $region9: #{vqvae_forward.22} parent=0 // pred_fallthru
    _
  // Predicated region
  $region10: #{vqvae_forward.22} parent=0 // pred_check
    _
  $region11: #{vqvae_forward.22} parent=0 // pred_check_branch
    %15 = sbr.rel (0) target = $region13
  $region12: #{vqvae_forward.22} parent=0 // pred_region
    _
  $region13: #{vqvae_forward.22} parent=0 // pred_fallthru
    _
  %v17 = vld [vmem:[%s0] sm:$0xff]
  %v18 = vld [vmem:[%s0 + $0x8] sm:$0xf]
  %v19 = vld [vmem:[%s0 + $0xc] sm:$0xff]
  %v20 = vld [vmem:[%s0 + $0x14] sm:$0xf]
  %v21 = vld [vmem:[%s0 + $0x18] sm:$0xff]
  %v22 = vld [vmem:[%s0 + $0x20] sm:$0xf]
  %v23 = vld [vmem:[%s0 + $0x24] sm:$0xff]
  %v24 = vld [vmem:[%s0 + $0x2c] sm:$0xf]
  %v25 = vld [vmem:[%s1] sm:$0xf]
  %v26 = vld [vmem:[%s1 + $0x4] sm:$0xf]
  %v27 = vld [vmem:[%s1 + $0x8] sm:$0xf]
  %v28 = vld [vmem:[%s1 + $0xc] sm:$0xf]
  %v29 = vld [vmem:[%s1 + $0x10] sm:$0xf]
  %v30 = vld [vmem:[%s1 + $0x14] sm:$0xf]
  %v31 = vld [vmem:[%s1 + $0x18] sm:$0xf]
  %v32 = vld [vmem:[%s1 + $0x1c] sm:$0xf]
  %v33 = vld [vmem:[%s1 + $0x20] sm:$0xf]
  %v34 = vld [vmem:[%s1 + $0x24] sm:$0xf]
  %v35 = vld [vmem:[%s1 + $0x28] sm:$0xf]
  %v36 = vld [vmem:[%s1 + $0x2c] sm:$0xf]
  %v37 = vld [vmem:[%s1 + $0x30] sm:$0xf]
  %v38 = vld [vmem:[%s1 + $0x34] sm:$0xf]
  %v39 = vld [vmem:[%s1 + $0x38] sm:$0xf]
  %v40 = vld [vmem:[%s1 + $0x3c] sm:$0xf]
  %v41 = vld [vmem:[%s1 + $0x40] sm:$0xf]
  %v42 = vld [vmem:[%s1 + $0x44] sm:$0xf]
  %v43 = vld [vmem:[%s1 + $0x48] sm:$0xf]
  %v44 = vld [vmem:[%s1 + $0x4c] sm:$0xf]
  %v45 = vld [vmem:[%s1 + $0x50] sm:$0xf]
  %v46 = vld [vmem:[%s1 + $0x54] sm:$0xf]
  %v47 = vld [vmem:[%s1 + $0x58] sm:$0xf]
  %v48 = vld [vmem:[%s1 + $0x5c] sm:$0xf]
  %v49 = vld [vmem:[%s1 + $0x60] sm:$0xf]
  %v50 = vld [vmem:[%s1 + $0x64] sm:$0xf]
  %v51 = vld [vmem:[%s1 + $0x68] sm:$0xf]
  %v52 = vld [vmem:[%s1 + $0x6c] sm:$0xf]
  %v53 = vld [vmem:[%s1 + $0x70] sm:$0xf]
  %v54 = vld [vmem:[%s1 + $0x74] sm:$0xf]
  %v55 = vld [vmem:[%s1 + $0x78] sm:$0xf]
  %v56 = vld [vmem:[%s1 + $0x7c] sm:$0xf]
  %v57 = vld [vmem:[%s1 + $0x80] sm:$0xf]
  %v58 = vld [vmem:[%s1 + $0x84] sm:$0xf]
  %v59 = vld [vmem:[%s1 + $0x88] sm:$0xf]
  %v60 = vld [vmem:[%s1 + $0x8c] sm:$0xf]
  %v61 = vld [vmem:[%s2] sm:$0x1]
  %v63 = vlaneseq
  %v64 = vshrl.u32 %v63, 7
  %v65 = vsub.s32 0, %v64
  %v66 = vrot.slane %v61, %v65
  %v76 = vunpack.c.l.b16 %v17
  %v77 = vunpack.c.h.b16 %v17
  %v78 = vunpack.c.l.b16 %v18
  %v79 = vunpack.c.l.b16 %v19
  %v80 = vunpack.c.h.b16 %v19
  %v81 = vunpack.c.l.b16 %v20
  %v82 = vunpack.c.l.b16 %v21
  %v83 = vunpack.c.h.b16 %v21
  %v84 = vunpack.c.l.b16 %v22
  %v85 = vunpack.c.l.b16 %v23
  %v86 = vunpack.c.h.b16 %v23
  %v87 = vunpack.c.l.b16 %v24
  %v88 = vpack.c.b16 %v79, %v76
  %v89 = vpack.c.b16 %v80, %v77
  %v90 = vpack.c.b16 %v81, %v78
  %v91 = vpack.c.b16 %v85, %v82
  %v92 = vpack.c.b16 %v86, %v83
  %v93 = vpack.c.b16 %v87, %v84
  %v134 = vunpack.c.l.b16 %v25
  %v135 = vunpack.c.l.b16 %v26
  %v136 = vunpack.c.l.b16 %v27
  %v137 = vunpack.c.l.b16 %v28
  %v138 = vunpack.c.l.b16 %v29
  %v139 = vunpack.c.l.b16 %v30
  %v140 = vunpack.c.l.b16 %v31
  %v141 = vunpack.c.l.b16 %v32
  %v142 = vunpack.c.l.b16 %v33
  %v143 = vunpack.c.l.b16 %v34
  %v144 = vunpack.c.l.b16 %v35
  %v145 = vunpack.c.l.b16 %v36
  %v146 = vunpack.c.l.b16 %v37
  %v147 = vunpack.c.l.b16 %v38
  %v148 = vunpack.c.l.b16 %v39
  %v149 = vunpack.c.l.b16 %v40
  %v150 = vunpack.c.l.b16 %v41
  %v151 = vunpack.c.l.b16 %v42
  %v152 = vunpack.c.l.b16 %v43
  %v153 = vunpack.c.l.b16 %v44
  %v154 = vunpack.c.l.b16 %v45
  %v155 = vunpack.c.l.b16 %v46
  %v156 = vunpack.c.l.b16 %v47
  %v157 = vunpack.c.l.b16 %v48
  %v158 = vunpack.c.l.b16 %v49
  %v159 = vunpack.c.l.b16 %v50
  %v160 = vunpack.c.l.b16 %v51
  %v161 = vunpack.c.l.b16 %v52
  %v162 = vunpack.c.l.b16 %v53
  %v163 = vunpack.c.l.b16 %v54
  %v164 = vunpack.c.l.b16 %v55
  %v165 = vunpack.c.l.b16 %v56
  %v166 = vunpack.c.l.b16 %v57
  %v167 = vunpack.c.l.b16 %v58
  %v168 = vunpack.c.l.b16 %v59
  %v169 = vunpack.c.l.b16 %v60
  %v170 = vpack.c.b16 %v135, %v134
  %v171 = vpack.c.b16 %v137, %v136
  %v172 = vpack.c.b16 %v139, %v138
  %v173 = vpack.c.b16 %v141, %v140
  %v174 = vpack.c.b16 %v143, %v142
  %v175 = vpack.c.b16 %v145, %v144
  %v176 = vpack.c.b16 %v147, %v146
  %v177 = vpack.c.b16 %v149, %v148
  %v178 = vpack.c.b16 %v151, %v150
  %v179 = vpack.c.b16 %v153, %v152
  %v180 = vpack.c.b16 %v155, %v154
  %v181 = vpack.c.b16 %v157, %v156
  %v182 = vpack.c.b16 %v159, %v158
  %v183 = vpack.c.b16 %v161, %v160
  %v184 = vpack.c.b16 %v163, %v162
  %v185 = vpack.c.b16 %v165, %v164
  %v186 = vpack.c.b16 %v167, %v166
  %v187 = vpack.c.b16 %v169, %v168
  %vm206 = vcmask 261120
  %v208 = vsel %vm206, %v90, 0
  %v211 = vsel %vm206, %v93, 0
  %213 = vmatprep.subr.bf16.mxu0 0
  %214 = vmatpush1.bf16.msra.mxu0 %v170
  %215 = vmatprep.subr.bf16.mxu0 0
  %216 = vmatpush1.bf16.msra.mxu0 %v171
  %217 = vmatprep.subr.bf16.mxu0 0
  %218 = vmatpush1.bf16.msra.mxu0 %v172
  %219 = vmatprep.subr.bf16.mxu0 0
  %220 = vmatpush1.bf16.msra.mxu0 %v173
  %221 = vmatprep.subr.bf16.mxu0 0
  %222 = vmatpush1.bf16.msra.mxu0 %v174
  %223 = vmatprep.subr.bf16.mxu0 0
  %224 = vmatpush1.bf16.msra.mxu0 %v175
  %225 = vmatprep.subr.bf16.mxu0 0
  %226 = vmatpush1.bf16.msra.mxu0 %v176
  %227 = vmatprep.subr.bf16.mxu0 0
  %228 = vmatpush1.bf16.msra.mxu0 %v177
  %229 = vmatprep.subr.bf16.mxu0 0
  %230 = vmatpush1.bf16.msra.mxu0 %v178
  %231 = vmatprep.subr.bf16.mxu0 0
  %232 = vmatpush1.bf16.msra.mxu0 %v179
  %233 = vmatprep.subr.bf16.mxu0 0
  %234 = vmatpush1.bf16.msra.mxu0 %v180
  %235 = vmatprep.subr.bf16.mxu0 0
  %236 = vmatpush1.bf16.msra.mxu0 %v181
  %237 = vmatprep.subr.bf16.mxu0 0
  %238 = vmatpush1.bf16.msra.mxu0 %v182
  %239 = vmatprep.subr.bf16.mxu0 0
  %240 = vmatpush1.bf16.msra.mxu0 %v183
  %241 = vmatprep.subr.bf16.mxu0 0
  %242 = vmatpush1.bf16.msra.mxu0 %v184
  %243 = vmatprep.subr.bf16.mxu0 0
  %244 = vmatpush1.bf16.msra.mxu0 %v185
  %245 = vmatprep.mubr.bf16.mxu0 %v89
  %246 = vmatmul.mubr.bf16.gmra.mrb[0].mxu0 %v88
  %v247 = vpop.f32.mrb[0].mxu0
  %v248 = vadd.f32 %v66, %v247
  %v249 = vpop.f32.mrb[0].mxu0
  %v250 = vpop.f32.mrb[0].mxu0
  %v251 = vadd.f32 %v66, %v250
  %v252 = vpop.f32.mrb[0].mxu0
  %253 = vmatprep.mubr.bf16.mxu0 %v92
  %254 = vmatmul.mubr.bf16.gmra.mrb[0].mxu0 %v91
  %v255 = vpop.f32.mrb[0].mxu0
  %v256 = vadd.f32 %v66, %v255
  %v257 = vpop.f32.mrb[0].mxu0
  %v258 = vpop.f32.mrb[0].mxu0
  %v259 = vadd.f32 %v66, %v258
  %v260 = vpop.f32.mrb[0].mxu0
  %261 = vdwg.mxu0
  %262 = vmatprep.subr.bf16.mxu0 0
  %263 = vmatpush1.bf16.msra.mxu0 %v186
  %264 = vmatprep.subr.bf16.mxu0 0
  %265 = vmatpush1.bf16.msra.mxu0 %v187
  %266 = vmatprep.subr.bf16.mxu0 0
  %267 = vmatpush1.bf16.msra.mxu0 0
  %268 = vmatprep.subr.bf16.mxu0 0
  %269 = vmatpush1.bf16.msra.mxu0 0
  %270 = vmatprep.subr.bf16.mxu0 0
  %271 = vmatpush1.bf16.msra.mxu0 0
  %272 = vmatprep.subr.bf16.mxu0 0
  %273 = vmatpush1.bf16.msra.mxu0 0
  %274 = vmatprep.subr.bf16.mxu0 0
  %275 = vmatpush1.bf16.msra.mxu0 0
  %276 = vmatprep.subr.bf16.mxu0 0
  %277 = vmatpush1.bf16.msra.mxu0 0
  %278 = vmatprep.subr.bf16.mxu0 0
  %279 = vmatpush1.bf16.msra.mxu0 0
  %280 = vmatprep.subr.bf16.mxu0 0
  %281 = vmatpush1.bf16.msra.mxu0 0
  %282 = vmatprep.subr.bf16.mxu0 0
  %283 = vmatpush1.bf16.msra.mxu0 0
  %284 = vmatprep.subr.bf16.mxu0 0
  %285 = vmatpush1.bf16.msra.mxu0 0
  %286 = vmatprep.subr.bf16.mxu0 0
  %287 = vmatpush1.bf16.msra.mxu0 0
  %288 = vmatprep.subr.bf16.mxu0 0
  %289 = vmatpush1.bf16.msra.mxu0 0
  %290 = vmatprep.subr.bf16.mxu0 0
  %291 = vmatpush1.bf16.msra.mxu0 0
  %292 = vmatprep.subr.bf16.mxu0 0
  %293 = vmatpush1.bf16.msra.mxu0 0
  %294 = vmatprep.mubr.bf16.mxu0 0
  %295 = vmatmul.mubr.bf16.gmra.mrb[0].mxu0 %v208
  %v296 = vpop.f32.mrb[0].mxu0
  %v297 = vadd.f32 %v248, %v296
  %v298 = vpop.f32.mrb[0].mxu0
  %v299 = vpop.f32.mrb[0].mxu0
  %v300 = vadd.f32 %v251, %v299
  %v301 = vpop.f32.mrb[0].mxu0
  %302 = vmatprep.mubr.bf16.mxu0 0
  %303 = vmatmul.mubr.bf16.gmra.mrb[0].mxu0 %v211
  %v304 = vpop.f32.mrb[0].mxu0
  %v305 = vadd.f32 %v256, %v304
  %v306 = vpop.f32.mrb[0].mxu0
  %v307 = vpop.f32.mrb[0].mxu0
  %v308 = vadd.f32 %v259, %v307
  %v309 = vpop.f32.mrb[0].mxu0
  %310 = vdwg.mxu0
  %311 = vst [vmem:[%s3] sm:$0xff] %v297
  %312 = vst [vmem:[%s3 + $0x8] sm:$0xff] %v300
  %313 = vst [vmem:[%s3 + $0x10] sm:$0xff] %v305
  %314 = vst [vmem:[%s3 + $0x18] sm:$0xff] %v308
  %s315 = smul.u32 0, 32
  %v316 = vlaneseq
  %v317 = vshrl.u32 %v316, 7
  %v318 = vadd.s32 %v317, 8
  %v319 = vadd.s32 %v317, 16
  %v320 = vadd.s32 %v317, 24
  %v321 = vstv %s315
  %v322 = vadd.s32 %v321, %v317
  %v323 = vadd.s32 %v321, %v318
  %v324 = vadd.s32 %v321, %v319
  %v325 = vadd.s32 %v321, %v320
  %vm326 = vcmp.lt.s32.totalorder %v322, 32
  %vm327 = vcmp.lt.s32.totalorder %v323, 32
  %vm328 = vcmp.lt.s32.totalorder %v324, 32
  %vm329 = vcmp.lt.s32.totalorder %v325, 32
  %v330 = vsel %vm326, 1, 0
  %v331 = vsel %vm327, 1, 0
  %v332 = vsel %vm328, 1, 0
  %v333 = vsel %vm329, 1, 0
  %vm334 = vcmp.eq.s32.totalorder %v330, 1
  %vm335 = vcmp.eq.s32.totalorder %v331, 1
  %vm336 = vcmp.eq.s32.totalorder %v332, 1
  %vm337 = vcmp.eq.s32.totalorder %v333, 1
  %v338 = vsel %vm334, %v297, 0.0
  %v339 = vsel %vm335, %v300, 0.0
  %v340 = vsel %vm336, %v305, 0.0
  %v341 = vsel %vm337, %v308, 0.0
  %v342 = vadd.f32 %v338, %v339
  %v343 = vadd.f32 %v342, %v340
  %v344 = vadd.f32 %v343, %v341
  %v345 = vrot.slane %v344, 4
  %v346 = vadd.f32 %v344, %v345
  %v347 = vrot.slane %v346, 2
  %v348 = vadd.f32 %v346, %v347
  %v349 = vrot.slane %v348, 1
  %v350 = vadd.f32 %v348, %v349
  %v351 = vmul.f32 %v338, %v338
  %v352 = vmul.f32 %v339, %v339
  %v353 = vmul.f32 %v340, %v340
  %v354 = vmul.f32 %v341, %v341
  %v355 = vadd.f32 %v351, %v352
  %v356 = vadd.f32 %v355, %v353
  %v357 = vadd.f32 %v356, %v354
  %v358 = vrot.slane %v357, 4
  %v359 = vadd.f32 %v357, %v358
  %v360 = vrot.slane %v359, 2
  %v361 = vadd.f32 %v359, %v360
  %v362 = vrot.slane %v361, 1
  %v363 = vadd.f32 %v361, %v362
  %vm364 = vcmask 1040384
  %v365 = vsel %vm364, %v350, %v363
  %366 = vst [vmem:[%s4] sm:$0x3] %v365
  // Predicated region
  $region14: #{vqvae_forward.22} parent=0 // pred_check
    _
  $region15: #{vqvae_forward.22} parent=0 // pred_check_branch
    %368 = sbr.rel (0) target = $region17
  $region16: #{vqvae_forward.22} parent=0 // pred_region
    _
  $region17: #{vqvae_forward.22} parent=0 // pred_fallthru
    _
  // Predicated region
  $region18: #{vqvae_forward.22} parent=0 // pred_check
    _
  $region19: #{vqvae_forward.22} parent=0 // pred_check_branch
    %370 = sbr.rel (0) target = $region21
  $region20: #{vqvae_forward.22} parent=0 // pred_region
    _
  $region21: #{vqvae_forward.22} parent=0 // pred_fallthru
    _
  // Predicated region
  $region22: #{vqvae_forward.22} parent=0 // pred_check
    _
  $region23: #{vqvae_forward.22} parent=0 // pred_check_branch
    %372 = sbr.rel (0) target = $region25
  $region24: #{vqvae_forward.22} parent=0 // pred_region
    _
  $region25: #{vqvae_forward.22} parent=0 // pred_fallthru
    _
  // Predicated region
  $region26: #{vqvae_forward.22} parent=0 // pred_check
    _
  $region27: #{vqvae_forward.22} parent=0 // pred_check_branch
    %374 = sbr.rel (0) target = $region29
  $region28: #{vqvae_forward.22} parent=0 // pred_region
    _
  $region29: #{vqvae_forward.22} parent=0 // pred_fallthru
    _

// kernel: tile.13
$region0: #{tile.13}
  #allocation0 [shape = 's32[1]{0}', space=sflag, size = 0x4, scoped, tag = 'scoped memory for tile.13']
  %s0 = inlined_call_operand.vmem [shape: f32[32], index: 0, kind: input, shape index: {}]
  %s1 = inlined_call_operand.vmem [shape: f32[4,32], index: 1, kind: output, shape index: {}]
  // Predicated region
  $region2: #{tile.13} parent=0 // pred_check
    _
  $region3: #{tile.13} parent=0 // pred_check_branch
    %3 = sbr.rel (0) target = $region5
  $region4: #{tile.13} parent=0 // pred_region
    _
  $region5: #{tile.13} parent=0 // pred_fallthru
    _
  %v4 = vld [vmem:[%s0] ss:$0 sm:$0xff]
  %5 = vst [vmem:[%s1] sm:$0xf] %v4

// kernel: vqvae_forward.28
$region0: #{vqvae_forward.28}
  #allocation0 [shape = 'u32[]', space=smem, size = 0x4, offset = 0x4, fixed_abs, tag = 'smem constant byte address 0x4 - core index']
  #allocation1 [shape = 'u32[144,128]{1,0:T(1,128)}', space=vmem, size = 0x12000, scoped, tag = 'internal scratch']
  %s0 = inlined_call_operand.vmem [shape: f32[32,32], index: 0, kind: input, shape index: {}]
  %s1 = inlined_call_operand.vmem [shape: f32[32,512], index: 1, kind: input, shape index: {}]
  %s2 = inlined_call_operand.vmem [shape: f32[1,512], index: 2, kind: input, shape index: {}]
  %s3 = inlined_call_operand.vmem [shape: f32[512,32], index: 3, kind: input, shape index: {}]
  %s4 = inlined_call_operand.vmem [shape: f32[32,32], index: 4, kind: output, shape index: {}]
  %s5 = sld [smem:[#allocation0]]
  $region26: #{vqvae_forward.28} parent=0
    _
  %s7 = ssub.s32 1, %s5
  %s8 = scalar_select 0, %s7, %s5
  // Predicated region
  $region2: #{vqvae_forward.28} parent=0 // pred_check
    _
  $region3: #{vqvae_forward.28} parent=0 // pred_check_branch
    %10 = sbr.rel (0) target = $region5
  $region4: #{vqvae_forward.28} parent=0 // pred_region
    _
  $region5: #{vqvae_forward.28} parent=0 // pred_fallthru
    _
  // Predicated region
  $region6: #{vqvae_forward.28} parent=0 // pred_check
    _
  $region7: #{vqvae_forward.28} parent=0 // pred_check_branch
    %12 = sbr.rel (0) target = $region9
  $region8: #{vqvae_forward.28} parent=0 // pred_region
    _
  $region9: #{vqvae_forward.28} parent=0 // pred_fallthru
    _
  // Predicated region
  $region10: #{vqvae_forward.28} parent=0 // pred_check
    _
  $region11: #{vqvae_forward.28} parent=0 // pred_check_branch
    %14 = sbr.rel (0) target = $region13
  $region12: #{vqvae_forward.28} parent=0 // pred_region
    _
  $region13: #{vqvae_forward.28} parent=0 // pred_fallthru
    _
  // Predicated region
  $region14: #{vqvae_forward.28} parent=0 // pred_check
    _
  $region15: #{vqvae_forward.28} parent=0 // pred_check_branch
    %16 = sbr.rel (0) target = $region17
  $region16: #{vqvae_forward.28} parent=0 // pred_region
    _
  $region17: #{vqvae_forward.28} parent=0 // pred_fallthru
    _
  %v17 = vld [vmem:[%s0] sm:$0xff]
  %v18 = vld [vmem:[%s0 + $0x8] sm:$0xff]
  %v19 = vld [vmem:[%s0 + $0x10] sm:$0xff]
  %v20 = vld [vmem:[%s0 + $0x18] sm:$0xff]
  %v21 = vld [vmem:[%s2] sm:$0xf]
  %v22 = vld [vmem:[%s1] sm:$0xff]
  %v23 = vld [vmem:[%s1 + $0x8] sm:$0xff]
  %v24 = vld [vmem:[%s1 + $0x10] sm:$0xff]
  %v25 = vld [vmem:[%s1 + $0x18] sm:$0xff]
  %v26 = vld [vmem:[%s1 + $0x20] sm:$0xff]
  %v27 = vld [vmem:[%s1 + $0x28] sm:$0xff]
  %v28 = vld [vmem:[%s1 + $0x30] sm:$0xff]
  %v29 = vld [vmem:[%s1 + $0x38] sm:$0xff]
  %v30 = vld [vmem:[%s1 + $0x40] sm:$0xff]
  %v31 = vld [vmem:[%s1 + $0x48] sm:$0xff]
  %v32 = vld [vmem:[%s1 + $0x50] sm:$0xff]
  %v33 = vld [vmem:[%s1 + $0x58] sm:$0xff]
  %v34 = vld [vmem:[%s1 + $0x60] sm:$0xff]
  %v35 = vld [vmem:[%s1 + $0x68] sm:$0xff]
  %v36 = vld [vmem:[%s1 + $0x70] sm:$0xff]
  %v37 = vld [vmem:[%s1 + $0x78] sm:$0xff]
  %vm38 = vcmask 261120
  %v40 = vsel %vm38, %v17, 0
  %v43 = vsel %vm38, %v18, 0
  %v46 = vsel %vm38, %v19, 0
  %v49 = vsel %vm38, %v20, 0
  %51 = vmatprep.subr.mxu0 %v23
  %52 = vmatpush1.msra.mxu0 %v22
  %53 = vmatprep.subr.mxu0 %v27
  %54 = vmatpush1.msra.mxu0 %v26
  %55 = vmatprep.subr.mxu0 %v31
  %56 = vmatpush1.msra.mxu0 %v30
  %57 = vmatprep.subr.mxu0 %v35
  %58 = vmatpush1.msra.mxu0 %v34
  %59 = vmatprep.subr.mxu0 0.0
  %60 = vmatpush1.msra.mxu0 0.0
  %61 = vmatprep.subr.mxu0 0.0
  %62 = vmatpush1.msra.mxu0 0.0
  %63 = vmatprep.subr.mxu0 0.0
  %64 = vmatpush1.msra.mxu0 0.0
  %65 = vmatprep.subr.mxu0 0.0
  %66 = vmatpush1.msra.mxu0 0.0
  %67 = vmatprep.subr.mxu0 0.0
  %68 = vmatpush1.msra.mxu0 0.0
  %69 = vmatprep.subr.mxu0 0.0
  %70 = vmatpush1.msra.mxu0 0.0
  %71 = vmatprep.subr.mxu0 0.0
  %72 = vmatpush1.msra.mxu0 0.0
  %73 = vmatprep.subr.mxu0 0.0
  %74 = vmatpush1.msra.mxu0 0.0
  %75 = vmatprep.subr.mxu0 0.0
  %76 = vmatpush1.msra.mxu0 0.0
  %77 = vmatprep.subr.mxu0 0.0
  %78 = vmatpush1.msra.mxu0 0.0
  %79 = vmatprep.subr.mxu0 0.0
  %80 = vmatpush1.msra.mxu0 0.0
  %81 = vmatprep.subr.mxu0 0.0
  %82 = vmatpush1.msra.mxu0 0.0
  %83 = vmatprep.subr.mxu0 0.0
  %84 = vmatpush1.msra.mxu0 0.0
  %85 = vmatprep.subr.mxu0 0.0
  %86 = vmatpush1.msra.mxu0 0.0
  %87 = vmatprep.subr.mxu0 0.0
  %88 = vmatpush1.msra.mxu0 0.0
  %89 = vmatprep.subr.mxu0 0.0
  %90 = vmatpush1.msra.mxu0 0.0
  %91 = vmatprep.subr.mxu0 0.0
  %92 = vmatpush1.msra.mxu0 0.0
  %93 = vmatprep.subr.mxu0 0.0
  %94 = vmatpush1.msra.mxu0 0.0
  %95 = vmatprep.subr.mxu0 0.0
  %96 = vmatpush1.msra.mxu0 0.0
  %97 = vmatprep.subr.mxu0 0.0
  %98 = vmatpush1.msra.mxu0 0.0
  %99 = vmatprep.subr.mxu0 0.0
  %100 = vmatpush1.msra.mxu0 0.0
  %101 = vmatprep.subr.mxu0 0.0
  %102 = vmatpush1.msra.mxu0 0.0
  %103 = vmatprep.subr.mxu0 0.0
  %104 = vmatpush1.msra.mxu0 0.0
  %105 = vmatprep.subr.mxu0 0.0
  %106 = vmatpush1.msra.mxu0 0.0
  %107 = vmatprep.subr.mxu0 0.0
  %108 = vmatpush1.msra.mxu0 0.0
  %109 = vmatprep.subr.mxu0 0.0
  %110 = vmatpush1.msra.mxu0 0.0
  %111 = vmatprep.subr.mxu0 0.0
  %112 = vmatpush1.msra.mxu0 0.0
  %113 = vmatprep.subr.mxu0 0.0
  %114 = vmatpush1.msra.mxu0 0.0
  %115 = vmatprep.mubr.f32.mxu0 0.0
  %116 = vmatmul.mubr.f32.gmra.mrb[0].mxu0 %v40
  %v117 = vpop.f32.mrb[0].mxu0
  %v118 = vadd.f32 0.0, %v117
  %v119 = vpop.f32.mrb[0].mxu0
  %v120 = vadd.f32 0.0, %v119
  %121 = vmatprep.mubr.f32.mxu0 0.0
  %122 = vmatmul.mubr.f32.gmra.mrb[0].mxu0 %v43
  %v123 = vpop.f32.mrb[0].mxu0
  %v124 = vadd.f32 0.0, %v123
  %v125 = vpop.f32.mrb[0].mxu0
  %v126 = vadd.f32 0.0, %v125
  %127 = vmatprep.mubr.f32.mxu0 0.0
  %128 = vmatmul.mubr.f32.gmra.mrb[0].mxu0 %v46
  %v129 = vpop.f32.mrb[0].mxu0
  %v130 = vadd.f32 0.0, %v129
  %v131 = vpop.f32.mrb[0].mxu0
  %v132 = vadd.f32 0.0, %v131
  %133 = vmatprep.mubr.f32.mxu0 0.0
  %134 = vmatmul.mubr.f32.gmra.mrb[0].mxu0 %v49
  %v135 = vpop.f32.mrb[0].mxu0
  %v136 = vadd.f32 0.0, %v135
  %v137 = vpop.f32.mrb[0].mxu0
  %v138 = vadd.f32 0.0, %v137
  %139 = vdwg.mxu0
  %140 = vmatprep.subr.mxu0 %v25
  %141 = vmatpush1.msra.mxu0 %v24
  %142 = vmatprep.subr.mxu0 %v29
  %143 = vmatpush1.msra.mxu0 %v28
  %144 = vmatprep.subr.mxu0 %v33
  %145 = vmatpush1.msra.mxu0 %v32
  %146 = vmatprep.subr.mxu0 %v37
  %147 = vmatpush1.msra.mxu0 %v36
  %148 = vmatprep.subr.mxu0 0.0
  %149 = vmatpush1.msra.mxu0 0.0
  %150 = vmatprep.subr.mxu0 0.0
  %151 = vmatpush1.msra.mxu0 0.0
  %152 = vmatprep.subr.mxu0 0.0
  %153 = vmatpush1.msra.mxu0 0.0
  %154 = vmatprep.subr.mxu0 0.0
  %155 = vmatpush1.msra.mxu0 0.0
  %156 = vmatprep.subr.mxu0 0.0
  %157 = vmatpush1.msra.mxu0 0.0
  %158 = vmatprep.subr.mxu0 0.0
  %159 = vmatpush1.msra.mxu0 0.0
  %160 = vmatprep.subr.mxu0 0.0
  %161 = vmatpush1.msra.mxu0 0.0
  %162 = vmatprep.subr.mxu0 0.0
  %163 = vmatpush1.msra.mxu0 0.0
  %164 = vmatprep.subr.mxu0 0.0
  %165 = vmatpush1.msra.mxu0 0.0
  %166 = vmatprep.subr.mxu0 0.0
  %167 = vmatpush1.msra.mxu0 0.0
  %168 = vmatprep.subr.mxu0 0.0
  %169 = vmatpush1.msra.mxu0 0.0
  %170 = vmatprep.subr.mxu0 0.0
  %171 = vmatpush1.msra.mxu0 0.0
  %172 = vmatprep.subr.mxu0 0.0
  %173 = vmatpush1.msra.mxu0 0.0
  %174 = vmatprep.subr.mxu0 0.0
  %175 = vmatpush1.msra.mxu0 0.0
  %176 = vmatprep.subr.mxu0 0.0
  %177 = vmatpush1.msra.mxu0 0.0
  %178 = vmatprep.subr.mxu0 0.0
  %179 = vmatpush1.msra.mxu0 0.0
  %180 = vmatprep.subr.mxu0 0.0
  %181 = vmatpush1.msra.mxu0 0.0
  %182 = vmatprep.subr.mxu0 0.0
  %183 = vmatpush1.msra.mxu0 0.0
  %184 = vmatprep.subr.mxu0 0.0
  %185 = vmatpush1.msra.mxu0 0.0
  %186 = vmatprep.subr.mxu0 0.0
  %187 = vmatpush1.msra.mxu0 0.0
  %188 = vmatprep.subr.mxu0 0.0
  %189 = vmatpush1.msra.mxu0 0.0
  %190 = vmatprep.subr.mxu0 0.0
  %191 = vmatpush1.msra.mxu0 0.0
  %192 = vmatprep.subr.mxu0 0.0
  %193 = vmatpush1.msra.mxu0 0.0
  %194 = vmatprep.subr.mxu0 0.0
  %195 = vmatpush1.msra.mxu0 0.0
  %196 = vmatprep.subr.mxu0 0.0
  %197 = vmatpush1.msra.mxu0 0.0
  %198 = vmatprep.subr.mxu0 0.0
  %199 = vmatpush1.msra.mxu0 0.0
  %200 = vmatprep.subr.mxu0 0.0
  %201 = vmatpush1.msra.mxu0 0.0
  %202 = vmatprep.subr.mxu0 0.0
  %203 = vmatpush1.msra.mxu0 0.0
  %204 = vmatprep.mubr.f32.mxu0 0.0
  %205 = vmatmul.mubr.f32.gmra.mrb[0].mxu0 %v40
  %v206 = vpop.f32.mrb[0].mxu0
  %v207 = vadd.f32 0.0, %v206
  %v208 = vpop.f32.mrb[0].mxu0
  %v209 = vadd.f32 0.0, %v208
  %210 = vmatprep.mubr.f32.mxu0 0.0
  %211 = vmatmul.mubr.f32.gmra.mrb[0].mxu0 %v43
  %v212 = vpop.f32.mrb[0].mxu0
  %v213 = vadd.f32 0.0, %v212
  %v214 = vpop.f32.mrb[0].mxu0
  %v215 = vadd.f32 0.0, %v214
  %216 = vmatprep.mubr.f32.mxu0 0.0
  %217 = vmatmul.mubr.f32.gmra.mrb[0].mxu0 %v46
  %v218 = vpop.f32.mrb[0].mxu0
  %v219 = vadd.f32 0.0, %v218
  %v220 = vpop.f32.mrb[0].mxu0
  %v221 = vadd.f32 0.0, %v220
  %222 = vmatprep.mubr.f32.mxu0 0.0
  %223 = vmatmul.mubr.f32.gmra.mrb[0].mxu0 %v49
  %v224 = vpop.f32.mrb[0].mxu0
  %v225 = vadd.f32 0.0, %v224
  %v226 = vpop.f32.mrb[0].mxu0
  %v227 = vadd.f32 0.0, %v226
  %228 = vdwg.mxu0
  %v229 = vmul.f32 %v118, 2.0
  %v230 = vmul.f32 %v120, 2.0
  %v231 = vmul.f32 %v207, 2.0
  %v232 = vmul.f32 %v209, 2.0
  %v233 = vmul.f32 %v124, 2.0
  %v234 = vmul.f32 %v126, 2.0
  %v235 = vmul.f32 %v213, 2.0
  %v236 = vmul.f32 %v215, 2.0
  %v237 = vmul.f32 %v130, 2.0
  %v238 = vmul.f32 %v132, 2.0
  %v239 = vmul.f32 %v219, 2.0
  %v240 = vmul.f32 %v221, 2.0
  %v241 = vmul.f32 %v136, 2.0
  %v242 = vmul.f32 %v138, 2.0
  %v243 = vmul.f32 %v225, 2.0
  %v244 = vmul.f32 %v227, 2.0
  %v246 = vlaneseq
  %v247 = vshrl.u32 %v246, 7
  %v248 = vsub.s32 0, %v247
  %v249 = vrot.slane %v21, %v248
  %v250 = vlaneseq
  %v251 = vshrl.u32 %v250, 7
  %v252 = vsub.s32 1, %v251
  %v253 = vrot.slane %v21, %v252
  %v254 = vlaneseq
  %v255 = vshrl.u32 %v254, 7
  %v256 = vsub.s32 2, %v255
  %v257 = vrot.slane %v21, %v256
  %v258 = vlaneseq
  %v259 = vshrl.u32 %v258, 7
  %v260 = vsub.s32 3, %v259
  %v261 = vrot.slane %v21, %v260
  %v266 = vsub.f32 %v249, %v229
  %v267 = vsub.f32 %v253, %v230
  %v268 = vsub.f32 %v257, %v231
  %v269 = vsub.f32 %v261, %v232
  %v270 = vsub.f32 %v249, %v233
  %v271 = vsub.f32 %v253, %v234
  %v272 = vsub.f32 %v257, %v235
  %v273 = vsub.f32 %v261, %v236
  %v274 = vsub.f32 %v249, %v237
  %v275 = vsub.f32 %v253, %v238
  %v276 = vsub.f32 %v257, %v239
  %v277 = vsub.f32 %v261, %v240
  %v278 = vsub.f32 %v249, %v241
  %v279 = vsub.f32 %v253, %v242
  %v280 = vsub.f32 %v257, %v243
  %v281 = vsub.f32 %v261, %v244
  %v282 = vmin.f32 %v266, %v267
  %v283 = vmin.f32 %v282, %v268
  %v284 = vmin.f32 %v283, %v269
  %285 = vmin.xlane.f32.xlu0 %v284
  %v286 = vpop.xlane.xlu0 %285
  %v287 = vmin.f32 %v270, %v271
  %v288 = vmin.f32 %v287, %v272
  %v289 = vmin.f32 %v288, %v273
  %290 = vmin.xlane.f32.xlu0 %v289
  %v291 = vpop.xlane.xlu0 %290
  %v292 = vmin.f32 %v274, %v275
  %v293 = vmin.f32 %v292, %v276
  %v294 = vmin.f32 %v293, %v277
  %295 = vmin.xlane.f32.xlu0 %v294
  %v296 = vpop.xlane.xlu0 %295
  %v297 = vmin.f32 %v278, %v279
  %v298 = vmin.f32 %v297, %v280
  %v299 = vmin.f32 %v298, %v281
  %300 = vmin.xlane.f32.xlu0 %v299
  %v301 = vpop.xlane.xlu0 %300
  %v302 = vlaneseq
  %v303 = vand.u32 %v302, 127
  %v304 = vadd.s32 %v303, 128
  %v305 = vadd.s32 %v303, 256
  %v306 = vadd.s32 %v303, 384
  %vm307 = vcmp.le.f32.partialorder %v266, %v286
  %vm308 = vcmp.le.f32.partialorder %v267, %v286
  %vm309 = vcmp.le.f32.partialorder %v268, %v286
  %vm310 = vcmp.le.f32.partialorder %v269, %v286
  %vm311 = vcmp.le.f32.partialorder %v270, %v291
  %vm312 = vcmp.le.f32.partialorder %v271, %v291
  %vm313 = vcmp.le.f32.partialorder %v272, %v291
  %vm314 = vcmp.le.f32.partialorder %v273, %v291
  %vm315 = vcmp.le.f32.partialorder %v274, %v296
  %vm316 = vcmp.le.f32.partialorder %v275, %v296
  %vm317 = vcmp.le.f32.partialorder %v276, %v296
  %vm318 = vcmp.le.f32.partialorder %v277, %v296
  %vm319 = vcmp.le.f32.partialorder %v278, %v301
  %vm320 = vcmp.le.f32.partialorder %v279, %v301
  %vm321 = vcmp.le.f32.partialorder %v280, %v301
  %vm322 = vcmp.le.f32.partialorder %v281, %v301
  %v323 = vsel %vm307, %v303, 512
  %v324 = vsel %vm308, %v304, 512
  %v325 = vsel %vm309, %v305, 512
  %v326 = vsel %vm310, %v306, 512
  %v327 = vsel %vm311, %v303, 512
  %v328 = vsel %vm312, %v304, 512
  %v329 = vsel %vm313, %v305, 512
  %v330 = vsel %vm314, %v306, 512
  %v331 = vsel %vm315, %v303, 512
  %v332 = vsel %vm316, %v304, 512
  %v333 = vsel %vm317, %v305, 512
  %v334 = vsel %vm318, %v306, 512
  %v335 = vsel %vm319, %v303, 512
  %v336 = vsel %vm320, %v304, 512
  %v337 = vsel %vm321, %v305, 512
  %v338 = vsel %vm322, %v306, 512
  %vm339 = vcmp.lt.s32.totalorder %v323, %v324
  %v340 = vsel %vm339, %v323, %v324
  %vm341 = vcmp.lt.s32.totalorder %v340, %v325
  %v342 = vsel %vm341, %v340, %v325
  %vm343 = vcmp.lt.s32.totalorder %v342, %v326
  %v344 = vsel %vm343, %v342, %v326
  %v345 = vand.u32 %v344, 65535
  %v346 = vshra.s32 %v344, 16
  %v347 = vcvt.s32.f32 %v345
  %v348 = vcvt.s32.f32 %v346
  %349 = vmin.xlane.f32.xlu0 %v348
  %v350 = vpop.xlane.xlu0 %349
  %vm351 = vcmp.eq.f32.partialorder %v348, %v350
  %v352 = vsel %vm351, %v347, inf
  %353 = vmin.xlane.f32.xlu0 %v352
  %v354 = vpop.xlane.xlu0 %353
  %v355 = vcvt.f32.s32 %v354
  %v356 = vcvt.f32.s32 %v350
  %v357 = vshll.u32 %v356, 16
  %v358 = vadd.s32 %v357, %v355
  %vm359 = vcmp.lt.s32.totalorder %v327, %v328
  %v360 = vsel %vm359, %v327, %v328
  %vm361 = vcmp.lt.s32.totalorder %v360, %v329
  %v362 = vsel %vm361, %v360, %v329
  %vm363 = vcmp.lt.s32.totalorder %v362, %v330
  %v364 = vsel %vm363, %v362, %v330
  %v365 = vand.u32 %v364, 65535
  %v366 = vshra.s32 %v364, 16
  %v367 = vcvt.s32.f32 %v365
  %v368 = vcvt.s32.f32 %v366
  %369 = vmin.xlane.f32.xlu0 %v368
  %v370 = vpop.xlane.xlu0 %369
  %vm371 = vcmp.eq.f32.partialorder %v368, %v370
  %v372 = vsel %vm371, %v367, inf
  %373 = vmin.xlane.f32.xlu0 %v372
  %v374 = vpop.xlane.xlu0 %373
  %v375 = vcvt.f32.s32 %v374
  %v376 = vcvt.f32.s32 %v370
  %v377 = vshll.u32 %v376, 16
  %v378 = vadd.s32 %v377, %v375
  %vm379 = vcmp.lt.s32.totalorder %v331, %v332
  %v380 = vsel %vm379, %v331, %v332
  %vm381 = vcmp.lt.s32.totalorder %v380, %v333
  %v382 = vsel %vm381, %v380, %v333
  %vm383 = vcmp.lt.s32.totalorder %v382, %v334
  %v384 = vsel %vm383, %v382, %v334
  %v385 = vand.u32 %v384, 65535
  %v386 = vshra.s32 %v384, 16
  %v387 = vcvt.s32.f32 %v385
  %v388 = vcvt.s32.f32 %v386
  %389 = vmin.xlane.f32.xlu0 %v388
  %v390 = vpop.xlane.xlu0 %389
  %vm391 = vcmp.eq.f32.partialorder %v388, %v390
  %v392 = vsel %vm391, %v387, inf
  %393 = vmin.xlane.f32.xlu0 %v392
  %v394 = vpop.xlane.xlu0 %393
  %v395 = vcvt.f32.s32 %v394
  %v396 = vcvt.f32.s32 %v390
  %v397 = vshll.u32 %v396, 16
  %v398 = vadd.s32 %v397, %v395
  %vm399 = vcmp.lt.s32.totalorder %v335, %v336
  %v400 = vsel %vm399, %v335, %v336
  %vm401 = vcmp.lt.s32.totalorder %v400, %v337
  %v402 = vsel %vm401, %v400, %v337
  %vm403 = vcmp.lt.s32.totalorder %v402, %v338
  %v404 = vsel %vm403, %v402, %v338
  %v405 = vand.u32 %v404, 65535
  %v406 = vshra.s32 %v404, 16
  %v407 = vcvt.s32.f32 %v405
  %v408 = vcvt.s32.f32 %v406
  %409 = vmin.xlane.f32.xlu0 %v408
  %v410 = vpop.xlane.xlu0 %409
  %vm411 = vcmp.eq.f32.partialorder %v408, %v410
  %v412 = vsel %vm411, %v407, inf
  %413 = vmin.xlane.f32.xlu0 %v412
  %v414 = vpop.xlane.xlu0 %413
  %v415 = vcvt.f32.s32 %v414
  %v416 = vcvt.f32.s32 %v410
  %v417 = vshll.u32 %v416, 16
  %v418 = vadd.s32 %v417, %v415
  %vm419 = vcmp.eq.s32.totalorder %v303, %v358
  %vm420 = vcmp.eq.s32.totalorder %v304, %v358
  %vm421 = vcmp.eq.s32.totalorder %v305, %v358
  %vm422 = vcmp.eq.s32.totalorder %v306, %v358
  %vm423 = vcmp.eq.s32.totalorder %v303, %v378
  %vm424 = vcmp.eq.s32.totalorder %v304, %v378
  %vm425 = vcmp.eq.s32.totalorder %v305, %v378
  %vm426 = vcmp.eq.s32.totalorder %v306, %v378
  %vm427 = vcmp.eq.s32.totalorder %v303, %v398
  %vm428 = vcmp.eq.s32.totalorder %v304, %v398
  %vm429 = vcmp.eq.s32.totalorder %v305, %v398
  %vm430 = vcmp.eq.s32.totalorder %v306, %v398
  %vm431 = vcmp.eq.s32.totalorder %v303, %v418
  %vm432 = vcmp.eq.s32.totalorder %v304, %v418
  %vm433 = vcmp.eq.s32.totalorder %v305, %v418
  %vm434 = vcmp.eq.s32.totalorder %v306, %v418
  %v435 = vsel %vm419, 1, 0
  %v436 = vsel %vm420, 1, 0
  %v437 = vsel %vm421, 1, 0
  %v438 = vsel %vm422, 1, 0
  %v439 = vsel %vm423, 1, 0
  %v440 = vsel %vm424, 1, 0
  %v441 = vsel %vm425, 1, 0
  %v442 = vsel %vm426, 1, 0
  %v443 = vsel %vm427, 1, 0
  %v444 = vsel %vm428, 1, 0
  %v445 = vsel %vm429, 1, 0
  %v446 = vsel %vm430, 1, 0
  %v447 = vsel %vm431, 1, 0
  %v448 = vsel %vm432, 1, 0
  %v449 = vsel %vm433, 1, 0
  %v450 = vsel %vm434, 1, 0
  %v451 = vcvt.s32.f32 %v435
  %v452 = vcvt.s32.f32 %v436
  %v453 = vcvt.s32.f32 %v437
  %v454 = vcvt.s32.f32 %v438
  %v455 = vcvt.s32.f32 %v439
  %v456 = vcvt.s32.f32 %v440
  %v457 = vcvt.s32.f32 %v441
  %v458 = vcvt.s32.f32 %v442
  %v459 = vcvt.s32.f32 %v443
  %v460 = vcvt.s32.f32 %v444
  %v461 = vcvt.s32.f32 %v445
  %v462 = vcvt.s32.f32 %v446
  %v463 = vcvt.s32.f32 %v447
  %v464 = vcvt.s32.f32 %v448
  %v465 = vcvt.s32.f32 %v449
  %v466 = vcvt.s32.f32 %v450
  %v467 = vld [vmem:[%s3] sm:$0xff]
  %v468 = vld [vmem:[%s3 + $0x8] sm:$0xff]
  %v469 = vld [vmem:[%s3 + $0x10] sm:$0xff]
  %v470 = vld [vmem:[%s3 + $0x18] sm:$0xff]
  %v471 = vld [vmem:[%s3 + $0x20] sm:$0xff]
  %v472 = vld [vmem:[%s3 + $0x28] sm:$0xff]
  %v473 = vld [vmem:[%s3 + $0x30] sm:$0xff]
  %v474 = vld [vmem:[%s3 + $0x38] sm:$0xff]
  %v475 = vld [vmem:[%s3 + $0x40] sm:$0xff]
  %v476 = vld [vmem:[%s3 + $0x48] sm:$0xff]
  %v477 = vld [vmem:[%s3 + $0x50] sm:$0xff]
  %v478 = vld [vmem:[%s3 + $0x58] sm:$0xff]
  %v479 = vld [vmem:[%s3 + $0x60] sm:$0xff]
  %v480 = vld [vmem:[%s3 + $0x68] sm:$0xff]
  %v481 = vld [vmem:[%s3 + $0x70] sm:$0xff]
  %v482 = vld [vmem:[%s3 + $0x78] sm:$0xff]
  %v483 = vld [vmem:[%s3 + $0x80] sm:$0xff]
  %v484 = vld [vmem:[%s3 + $0x88] sm:$0xff]
  %v485 = vld [vmem:[%s3 + $0x90] sm:$0xff]
  %v486 = vld [vmem:[%s3 + $0x98] sm:$0xff]
  %v487 = vld [vmem:[%s3 + $0xa0] sm:$0xff]
  %v488 = vld [vmem:[%s3 + $0xa8] sm:$0xff]
  %v489 = vld [vmem:[%s3 + $0xb0] sm:$0xff]
  %v490 = vld [vmem:[%s3 + $0xb8] sm:$0xff]
  %v491 = vld [vmem:[%s3 + $0xc0] sm:$0xff]
  %v492 = vld [vmem:[%s3 + $0xc8] sm:$0xff]
  %v493 = vld [vmem:[%s3 + $0xd0] sm:$0xff]
  %v494 = vld [vmem:[%s3 + $0xd8] sm:$0xff]
  %v495 = vld [vmem:[%s3 + $0xe0] sm:$0xff]
  %v496 = vld [vmem:[%s3 + $0xe8] sm:$0xff]
  %v497 = vld [vmem:[%s3 + $0xf0] sm:$0xff]
  %v498 = vld [vmem:[%s3 + $0xf8] sm:$0xff]
  %v499 = vld [vmem:[%s3 + $0x100] sm:$0xff]
  %v500 = vld [vmem:[%s3 + $0x108] sm:$0xff]
  %v501 = vld [vmem:[%s3 + $0x110] sm:$0xff]
  %v502 = vld [vmem:[%s3 + $0x118] sm:$0xff]
  %v503 = vld [vmem:[%s3 + $0x120] sm:$0xff]
  %v504 = vld [vmem:[%s3 + $0x128] sm:$0xff]
  %v505 = vld [vmem:[%s3 + $0x130] sm:$0xff]
  %v506 = vld [vmem:[%s3 + $0x138] sm:$0xff]
  %v507 = vld [vmem:[%s3 + $0x140] sm:$0xff]
  %v508 = vld [vmem:[%s3 + $0x148] sm:$0xff]
  %v509 = vld [vmem:[%s3 + $0x150] sm:$0xff]
  %v510 = vld [vmem:[%s3 + $0x158] sm:$0xff]
  %v511 = vld [vmem:[%s3 + $0x160] sm:$0xff]
  %v512 = vld [vmem:[%s3 + $0x168] sm:$0xff]
  %v513 = vld [vmem:[%s3 + $0x170] sm:$0xff]
  %v514 = vld [vmem:[%s3 + $0x178] sm:$0xff]
  %v515 = vld [vmem:[%s3 + $0x180] sm:$0xff]
  %v516 = vld [vmem:[%s3 + $0x188] sm:$0xff]
  %v517 = vld [vmem:[%s3 + $0x190] sm:$0xff]
  %v518 = vld [vmem:[%s3 + $0x198] sm:$0xff]
  %v519 = vld [vmem:[%s3 + $0x1a0] sm:$0xff]
  %v520 = vld [vmem:[%s3 + $0x1a8] sm:$0xff]
  %v521 = vld [vmem:[%s3 + $0x1b0] sm:$0xff]
  %v522 = vld [vmem:[%s3 + $0x1b8] sm:$0xff]
  %v523 = vld [vmem:[%s3 + $0x1c0] sm:$0xff]
  %v524 = vld [vmem:[%s3 + $0x1c8] sm:$0xff]
  %v525 = vld [vmem:[%s3 + $0x1d0] sm:$0xff]
  %v526 = vld [vmem:[%s3 + $0x1d8] sm:$0xff]
  %v527 = vld [vmem:[%s3 + $0x1e0] sm:$0xff]
  %v528 = vld [vmem:[%s3 + $0x1e8] sm:$0xff]
  %v529 = vld [vmem:[%s3 + $0x1f0] sm:$0xff]
  %v530 = vld [vmem:[%s3 + $0x1f8] sm:$0xff]
  %531 = vmatprep.subr.mxu0 0.0
  %532 = vmatpush1.msra.mxu0 %v467
  %533 = vmatprep.subr.mxu0 0.0
  %534 = vmatpush1.msra.mxu0 %v468
  %535 = vmatprep.subr.mxu0 0.0
  %536 = vmatpush1.msra.mxu0 %v469
  %537 = vmatprep.subr.mxu0 0.0
  %538 = vmatpush1.msra.mxu0 %v470
  %539 = vmatprep.subr.mxu0 0.0
  %540 = vmatpush1.msra.mxu0 %v471
  %541 = vmatprep.subr.mxu0 0.0
  %542 = vmatpush1.msra.mxu0 %v472
  %543 = vmatprep.subr.mxu0 0.0
  %544 = vmatpush1.msra.mxu0 %v473
  %545 = vmatprep.subr.mxu0 0.0
  %546 = vmatpush1.msra.mxu0 %v474
  %547 = vmatprep.subr.mxu0 0.0
  %548 = vmatpush1.msra.mxu0 %v475
  %549 = vmatprep.subr.mxu0 0.0
  %550 = vmatpush1.msra.mxu0 %v476
  %551 = vmatprep.subr.mxu0 0.0
  %552 = vmatpush1.msra.mxu0 %v477
  %553 = vmatprep.subr.mxu0 0.0
  %554 = vmatpush1.msra.mxu0 %v478
  %555 = vmatprep.subr.mxu0 0.0
  %556 = vmatpush1.msra.mxu0 %v479
  %557 = vmatprep.subr.mxu0 0.0
  %558 = vmatpush1.msra.mxu0 %v480
  %559 = vmatprep.subr.mxu0 0.0
  %560 = vmatpush1.msra.mxu0 %v481
  %561 = vmatprep.subr.mxu0 0.0
  %562 = vmatpush1.msra.mxu0 %v482
  %563 = vmatprep.subr.mxu0 0.0
  %564 = vmatpush1.msra.mxu0 %v483
  %565 = vmatprep.subr.mxu0 0.0
  %566 = vmatpush1.msra.mxu0 %v484
  %567 = vmatprep.subr.mxu0 0.0
  %568 = vmatpush1.msra.mxu0 %v485
  %569 = vmatprep.subr.mxu0 0.0
  %570 = vmatpush1.msra.mxu0 %v486
  %571 = vmatprep.subr.mxu0 0.0
  %572 = vmatpush1.msra.mxu0 %v487
  %573 = vmatprep.subr.mxu0 0.0
  %574 = vmatpush1.msra.mxu0 %v488
  %575 = vmatprep.subr.mxu0 0.0
  %576 = vmatpush1.msra.mxu0 %v489
  %577 = vmatprep.subr.mxu0 0.0
  %578 = vmatpush1.msra.mxu0 %v490
  %579 = vmatprep.subr.mxu0 0.0
  %580 = vmatpush1.msra.mxu0 %v491
  %581 = vmatprep.subr.mxu0 0.0
  %582 = vmatpush1.msra.mxu0 %v492
  %583 = vmatprep.subr.mxu0 0.0
  %584 = vmatpush1.msra.mxu0 %v493
  %585 = vmatprep.subr.mxu0 0.0
  %586 = vmatpush1.msra.mxu0 %v494
  %587 = vmatprep.subr.mxu0 0.0
  %588 = vmatpush1.msra.mxu0 %v495
  %589 = vmatprep.subr.mxu0 0.0
  %590 = vmatpush1.msra.mxu0 %v496
  %591 = vmatprep.subr.mxu0 0.0
  %592 = vmatpush1.msra.mxu0 %v497
  %593 = vmatprep.subr.mxu0 0.0
  %594 = vmatpush1.msra.mxu0 %v498
  %595 = vmatprep.mubr.f32.mxu0 %v452
  %596 = vmatmul.mubr.f32.gmra.mrb[0].mxu0 %v451
  %v597 = vpop.f32.mrb[0].mxu0
  %v598 = vadd.f32 0.0, %v597
  %v599 = vpop.f32.mrb[0].mxu0
  %600 = vmatprep.mubr.f32.mxu0 %v456
  %601 = vmatmul.mubr.f32.gmra.mrb[0].mxu0 %v455
  %v602 = vpop.f32.mrb[0].mxu0
  %v603 = vadd.f32 0.0, %v602
  %v604 = vpop.f32.mrb[0].mxu0
  %605 = vmatprep.mubr.f32.mxu0 %v460
  %606 = vmatmul.mubr.f32.gmra.mrb[0].mxu0 %v459
  %v607 = vpop.f32.mrb[0].mxu0
  %v608 = vadd.f32 0.0, %v607
  %v609 = vpop.f32.mrb[0].mxu0
  %610 = vmatprep.mubr.f32.mxu0 %v464
  %611 = vmatmul.mubr.f32.gmra.mrb[0].mxu0 %v463
  %v612 = vpop.f32.mrb[0].mxu0
  %v613 = vadd.f32 0.0, %v612
  %v614 = vpop.f32.mrb[0].mxu0
  %615 = vdwg.mxu0
  %616 = vmatprep.subr.mxu0 0.0
  %617 = vmatpush1.msra.mxu0 %v499
  %618 = vmatprep.subr.mxu0 0.0
  %619 = vmatpush1.msra.mxu0 %v500
  %620 = vmatprep.subr.mxu0 0.0
  %621 = vmatpush1.msra.mxu0 %v501
  %622 = vmatprep.subr.mxu0 0.0
  %623 = vmatpush1.msra.mxu0 %v502
  %624 = vmatprep.subr.mxu0 0.0
  %625 = vmatpush1.msra.mxu0 %v503
  %626 = vmatprep.subr.mxu0 0.0
  %627 = vmatpush1.msra.mxu0 %v504
  %628 = vmatprep.subr.mxu0 0.0
  %629 = vmatpush1.msra.mxu0 %v505
  %630 = vmatprep.subr.mxu0 0.0
  %631 = vmatpush1.msra.mxu0 %v506
  %632 = vmatprep.subr.mxu0 0.0
  %633 = vmatpush1.msra.mxu0 %v507
  %634 = vmatprep.subr.mxu0 0.0
  %635 = vmatpush1.msra.mxu0 %v508
  %636 = vmatprep.subr.mxu0 0.0
  %637 = vmatpush1.msra.mxu0 %v509
  %638 = vmatprep.subr.mxu0 0.0
  %639 = vmatpush1.msra.mxu0 %v510
  %640 = vmatprep.subr.mxu0 0.0
  %641 = vmatpush1.msra.mxu0 %v511
  %642 = vmatprep.subr.mxu0 0.0
  %643 = vmatpush1.msra.mxu0 %v512
  %644 = vmatprep.subr.mxu0 0.0
  %645 = vmatpush1.msra.mxu0 %v513
  %646 = vmatprep.subr.mxu0 0.0
  %647 = vmatpush1.msra.mxu0 %v514
  %648 = vmatprep.subr.mxu0 0.0
  %649 = vmatpush1.msra.mxu0 %v515
  %650 = vmatprep.subr.mxu0 0.0
  %651 = vmatpush1.msra.mxu0 %v516
  %652 = vmatprep.subr.mxu0 0.0
  %653 = vmatpush1.msra.mxu0 %v517
  %654 = vmatprep.subr.mxu0 0.0
  %655 = vmatpush1.msra.mxu0 %v518
  %656 = vmatprep.subr.mxu0 0.0
  %657 = vmatpush1.msra.mxu0 %v519
  %658 = vmatprep.subr.mxu0 0.0
  %659 = vmatpush1.msra.mxu0 %v520
  %660 = vmatprep.subr.mxu0 0.0
  %661 = vmatpush1.msra.mxu0 %v521
  %662 = vmatprep.subr.mxu0 0.0
  %663 = vmatpush1.msra.mxu0 %v522
  %664 = vmatprep.subr.mxu0 0.0
  %665 = vmatpush1.msra.mxu0 %v523
  %666 = vmatprep.subr.mxu0 0.0
  %667 = vmatpush1.msra.mxu0 %v524
  %668 = vmatprep.subr.mxu0 0.0
  %669 = vmatpush1.msra.mxu0 %v525
  %670 = vmatprep.subr.mxu0 0.0
  %671 = vmatpush1.msra.mxu0 %v526
  %672 = vmatprep.subr.mxu0 0.0
  %673 = vmatpush1.msra.mxu0 %v527
  %674 = vmatprep.subr.mxu0 0.0
  %675 = vmatpush1.msra.mxu0 %v528
  %676 = vmatprep.subr.mxu0 0.0
  %677 = vmatpush1.msra.mxu0 %v529
  %678 = vmatprep.subr.mxu0 0.0
  %679 = vmatpush1.msra.mxu0 %v530
  %680 = vmatprep.mubr.f32.mxu0 %v454
  %681 = vmatmul.mubr.f32.gmra.mrb[0].mxu0 %v453
  %v682 = vpop.f32.mrb[0].mxu0
  %v683 = vadd.f32 %v598, %v682
  %v684 = vpop.f32.mrb[0].mxu0
  %685 = vmatprep.mubr.f32.mxu0 %v458
  %686 = vmatmul.mubr.f32.gmra.mrb[0].mxu0 %v457
  %v687 = vpop.f32.mrb[0].mxu0
  %v688 = vadd.f32 %v603, %v687
  %v689 = vpop.f32.mrb[0].mxu0
  %690 = vmatprep.mubr.f32.mxu0 %v462
  %691 = vmatmul.mubr.f32.gmra.mrb[0].mxu0 %v461
  %v692 = vpop.f32.mrb[0].mxu0
  %v693 = vadd.f32 %v608, %v692
  %v694 = vpop.f32.mrb[0].mxu0
  %695 = vmatprep.mubr.f32.mxu0 %v466
  %696 = vmatmul.mubr.f32.gmra.mrb[0].mxu0 %v465
  %v697 = vpop.f32.mrb[0].mxu0
  %v698 = vadd.f32 %v613, %v697
  %v699 = vpop.f32.mrb[0].mxu0
  %700 = vdwg.mxu0
  %701 = vst.msk [vmem:[%s4] sm:$0xff] %vm38, %v683
  %702 = vst.msk [vmem:[%s4 + $0x8] sm:$0xff] %vm38, %v688
  %703 = vst.msk [vmem:[%s4 + $0x10] sm:$0xff] %vm38, %v693
  %704 = vst.msk [vmem:[%s4 + $0x18] sm:$0xff] %vm38, %v698
  // Predicated region
  $region18: #{vqvae_forward.28} parent=0 // pred_check
    _
  $region19: #{vqvae_forward.28} parent=0 // pred_check_branch
    %706 = sbr.rel (0) target = $region21
  $region20: #{vqvae_forward.28} parent=0 // pred_region
    _
  $region21: #{vqvae_forward.28} parent=0 // pred_fallthru
    _
  // Predicated region
  $region22: #{vqvae_forward.28} parent=0 // pred_check
    _
  $region23: #{vqvae_forward.28} parent=0 // pred_check_branch
    %708 = sbr.rel (0) target = $region25
  $region24: #{vqvae_forward.28} parent=0 // pred_region
    _
  $region25: #{vqvae_forward.28} parent=0 // pred_fallthru
    _

// kernel: tile.18
$region0: #{tile.18}
  #allocation0 [shape = 's32[1]{0}', space=sflag, size = 0x4, scoped, tag = 'scoped memory for tile.18']
  %s0 = inlined_call_operand.vmem [shape: f32[3], index: 0, kind: input, shape index: {}]
  %s1 = inlined_call_operand.vmem [shape: f32[4,3], index: 1, kind: output, shape index: {}]
  // Predicated region
  $region2: #{tile.18} parent=0 // pred_check
    _
  $region3: #{tile.18} parent=0 // pred_check_branch
    %3 = sbr.rel (0) target = $region5
  $region4: #{tile.18} parent=0 // pred_region
    _
  $region5: #{tile.18} parent=0 // pred_fallthru
    _
  %v4 = vld [vmem:[%s0] ss:$0 sm:$0xff]
  %5 = vst [vmem:[%s1] sm:$0xf] %v4

// kernel: tile.19
$region0: #{tile.19}
  %s0 = inlined_call_operand.vmem [shape: f32[4,3], index: 0, kind: input, shape index: {}]
  %s1 = inlined_call_operand.vmem [shape: f32[12], index: 1, kind: output, shape index: {}]
  $region1: #{tile.19} parent=0
    #allocation0 [shape = 'u8[4096]{0}', space=vmem, size = 0x1000, scoped, tag = 'scoped mem for output reshape']
    #allocation1 [shape = 'u8[4096]{0}', space=vmem, size = 0x1000, scoped, tag = 'scoped mem for input reshape']
    %s3 = sshllo.u32 0, 4
    %v4 = vld [vmem:[%s0] sm:%s3]
    %5 = vst [vmem:[#allocation1] sm:%s3] %v4
    %v6 = vld [vmem:[#allocation1] sm:$0x1]
    %vm7 = vcmask 23552
    %8 = vst.msk [vmem:[#allocation0] sm:$0x1] %vm7, %v6
    %s9 = scalar_lea.vmem [#allocation1], 3
    %v10 = vld [vmem:[%s9] sm:$0x1]
    %11 = vrot.lane.b32.xlu0 %v10, 9
    %v12 = vpop.permute.xlu0 %11
    %vm13 = vcmask 97352
    %14 = vst.msk [vmem:[#allocation0] sm:$0x1] %vm13, %v12
    %s15 = scalar_lea.vmem [#allocation1], 2
    %v16 = vld [vmem:[%s15] sm:$0x1]
    %17 = vrot.lane.b32.xlu0 %v16, 6
    %v18 = vpop.permute.xlu0 %17
    %vm19 = vcmask 72752
    %20 = vst.msk [vmem:[#allocation0] sm:$0x1] %vm19, %v18
    %s21 = scalar_lea.vmem [#allocation1], 1
    %v22 = vld [vmem:[%s21] sm:$0x1]
    %23 = vrot.lane.b32.xlu0 %v22, 3
    %v24 = vpop.permute.xlu0 %23
    %vm25 = vcmask 48152
    %26 = vst.msk [vmem:[#allocation0] sm:$0x1] %vm25, %v24
    %s28 = sshllo.u32 0, 1
    %v30 = vld [vmem:[#allocation0] sm:%s28]
    %s31 = sshllo.u32 0, 1
    %32 = vst [vmem:[%s1] sm:%s31] %v30

// kernel: vqvae_forward.36
$region0: #{vqvae_forward.36}
  #allocation0 [shape = 'u32[]', space=smem, size = 0x4, offset = 0x4, fixed_abs, tag = 'smem constant byte address 0x4 - core index']
  #allocation1 [shape = 'u32[144,128]{1,0:T(1,128)}', space=vmem, size = 0x12000, scoped, tag = 'internal scratch']
  %s0 = inlined_call_operand.vmem [shape: f32[32,128], index: 0, kind: input, shape index: {}]
  %s1 = inlined_call_operand.vmem [shape: f32[1,2,128], index: 1, kind: input, shape index: {}]
  %s2 = inlined_call_operand.vmem [shape: f32[32,128], index: 2, kind: output, shape index: {}]
  %s3 = sld [smem:[#allocation0]]
  $region18: #{vqvae_forward.36} parent=0
    _
  %s5 = ssub.s32 1, %s3
  %s6 = scalar_select 0, %s5, %s3
  // Predicated region
  $region2: #{vqvae_forward.36} parent=0 // pred_check
    _
  $region3: #{vqvae_forward.36} parent=0 // pred_check_branch
    %8 = sbr.rel (0) target = $region5
  $region4: #{vqvae_forward.36} parent=0 // pred_region
    _
  $region5: #{vqvae_forward.36} parent=0 // pred_fallthru
    _
  // Predicated region
  $region6: #{vqvae_forward.36} parent=0 // pred_check
    _
  $region7: #{vqvae_forward.36} parent=0 // pred_check_branch
    %10 = sbr.rel (0) target = $region9
  $region8: #{vqvae_forward.36} parent=0 // pred_region
    _
  $region9: #{vqvae_forward.36} parent=0 // pred_fallthru
    _
  %v11 = vld [vmem:[%s1] sm:$0x3]
  %v12 = vadd.f32 %v11, 0.0
  %v13 = vmul.f32 %v12, 0.0078125
  %v14 = vmul.f32 %v13, %v13
  %v16 = vrot.slane %v14, 7
  %v18 = vsub.f32 %v13, %v16
  %v19 = vmax.f32 %v18, 0.0
  %v20 = vld [vmem:[%s0] sm:$0xff]
  %v21 = vld [vmem:[%s0 + $0x8] sm:$0xff]
  %v22 = vld [vmem:[%s0 + $0x10] sm:$0xff]
  %v23 = vld [vmem:[%s0 + $0x18] sm:$0xff]
  %v24 = vlaneseq
  %v25 = vshrl.u32 %v24, 7
  %v26 = vsub.s32 0, %v25
  %v27 = vrot.slane %v13, %v26
  %v28 = vsub.f32 %v20, %v27
  %v29 = vsub.f32 %v21, %v27
  %v30 = vsub.f32 %v22, %v27
  %v31 = vsub.f32 %v23, %v27
  %v32 = vadd.f32 %v19, 1e-05
  %v33 = vrsqrt.pop %v32
  %v34 = vlaneseq
  %v35 = vshrl.u32 %v34, 7
  %v36 = vsub.s32 1, %v35
  %v37 = vrot.slane %v33, %v36
  %v38 = vmul.f32 %v28, %v37
  %v39 = vmul.f32 %v29, %v37
  %v40 = vmul.f32 %v30, %v37
  %v41 = vmul.f32 %v31, %v37
  %v42 = vmax.f32 %v38, 0.0
  %v43 = vmax.f32 %v39, 0.0
  %v44 = vmax.f32 %v40, 0.0
  %v45 = vmax.f32 %v41, 0.0
  %46 = vst [vmem:[%s2] sm:$0xff] %v42
  %47 = vst [vmem:[%s2 + $0x8] sm:$0xff] %v43
  %48 = vst [vmem:[%s2 + $0x10] sm:$0xff] %v44
  %49 = vst [vmem:[%s2 + $0x18] sm:$0xff] %v45
  // Predicated region
  $region10: #{vqvae_forward.36} parent=0 // pred_check
    _
  $region11: #{vqvae_forward.36} parent=0 // pred_check_branch
    %51 = sbr.rel (0) target = $region13
  $region12: #{vqvae_forward.36} parent=0 // pred_region
    _
  $region13: #{vqvae_forward.36} parent=0 // pred_fallthru
    _
  // Predicated region
  $region14: #{vqvae_forward.36} parent=0 // pred_check
    _
  $region15: #{vqvae_forward.36} parent=0 // pred_check_branch
    %53 = sbr.rel (0) target = $region17
  $region16: #{vqvae_forward.36} parent=0 // pred_region
    _
  $region17: #{vqvae_forward.36} parent=0 // pred_fallthru
    _

// kernel: vqvae_forward.37
$region0: #{vqvae_forward.37}
  #allocation0 [shape = 'u32[]', space=smem, size = 0x4, offset = 0x4, fixed_abs, tag = 'smem constant byte address 0x4 - core index']
  #allocation1 [shape = 'u32[144,128]{1,0:T(1,128)}', space=vmem, size = 0x12000, scoped, tag = 'internal scratch']
  %s0 = inlined_call_operand.vmem [shape: bf16[128,288], index: 0, kind: input, shape index: {}]
  %s1 = inlined_call_operand.vmem [shape: bf16[288,128], index: 1, kind: input, shape index: {}]
  %s2 = inlined_call_operand.vmem [shape: f32[1,128], index: 2, kind: input, shape index: {}]
  %s3 = inlined_call_operand.vmem [shape: f32[128,128], index: 3, kind: output, shape index: {}]
  %s4 = sld [smem:[#allocation0]]
  $region22: #{vqvae_forward.37} parent=0
    _
  %s6 = ssub.s32 1, %s4
  %s7 = scalar_select 0, %s6, %s4
  // Predicated region
  $region2: #{vqvae_forward.37} parent=0 // pred_check
    _
  $region3: #{vqvae_forward.37} parent=0 // pred_check_branch
    %9 = sbr.rel (0) target = $region5
  $region4: #{vqvae_forward.37} parent=0 // pred_region
    _
  $region5: #{vqvae_forward.37} parent=0 // pred_fallthru
    _
  // Predicated region
  $region6: #{vqvae_forward.37} parent=0 // pred_check
    _
  $region7: #{vqvae_forward.37} parent=0 // pred_check_branch
    %11 = sbr.rel (0) target = $region9
  $region8: #{vqvae_forward.37} parent=0 // pred_region
    _
  $region9: #{vqvae_forward.37} parent=0 // pred_fallthru
    _
  // Predicated region
  $region10: #{vqvae_forward.37} parent=0 // pred_check
    _
  $region11: #{vqvae_forward.37} parent=0 // pred_check_branch
    %13 = sbr.rel (0) target = $region13
  $region12: #{vqvae_forward.37} parent=0 // pred_region
    _
  $region13: #{vqvae_forward.37} parent=0 // pred_fallthru
    _
  %v15 = vld [vmem:[%s0] sm:$0xff]
  %v16 = vld [vmem:[%s0 + $0x8] sm:$0xf]
  %v17 = vld [vmem:[%s0 + $0xc] sm:$0xff]
  %v18 = vld [vmem:[%s0 + $0x14] sm:$0xf]
  %v19 = vld [vmem:[%s0 + $0x18] sm:$0xff]
  %v20 = vld [vmem:[%s0 + $0x20] sm:$0xf]
  %v21 = vld [vmem:[%s0 + $0x24] sm:$0xff]
  %v22 = vld [vmem:[%s0 + $0x2c] sm:$0xf]
  %v23 = vld [vmem:[%s0 + $0x30] sm:$0xff]
  %v24 = vld [vmem:[%s0 + $0x38] sm:$0xf]
  %v25 = vld [vmem:[%s0 + $0x3c] sm:$0xff]
  %v26 = vld [vmem:[%s0 + $0x44] sm:$0xf]
  %v27 = vld [vmem:[%s0 + $0x48] sm:$0xff]
  %v28 = vld [vmem:[%s0 + $0x50] sm:$0xf]
  %v29 = vld [vmem:[%s0 + $0x54] sm:$0xff]
  %v30 = vld [vmem:[%s0 + $0x5c] sm:$0xf]
  %v31 = vld [vmem:[%s0 + $0x60] sm:$0xff]
  %v32 = vld [vmem:[%s0 + $0x68] sm:$0xf]
  %v33 = vld [vmem:[%s0 + $0x6c] sm:$0xff]
  %v34 = vld [vmem:[%s0 + $0x74] sm:$0xf]
  %v35 = vld [vmem:[%s0 + $0x78] sm:$0xff]
  %v36 = vld [vmem:[%s0 + $0x80] sm:$0xf]
  %v37 = vld [vmem:[%s0 + $0x84] sm:$0xff]
  %v38 = vld [vmem:[%s0 + $0x8c] sm:$0xf]
  %v39 = vld [vmem:[%s0 + $0x90] sm:$0xff]
  %v40 = vld [vmem:[%s0 + $0x98] sm:$0xf]
  %v41 = vld [vmem:[%s0 + $0x9c] sm:$0xff]
  %v42 = vld [vmem:[%s0 + $0xa4] sm:$0xf]
  %v43 = vld [vmem:[%s0 + $0xa8] sm:$0xff]
  %v44 = vld [vmem:[%s0 + $0xb0] sm:$0xf]
  %v45 = vld [vmem:[%s0 + $0xb4] sm:$0xff]
  %v46 = vld [vmem:[%s0 + $0xbc] sm:$0xf]
  %v47 = vld [vmem:[%s1] sm:$0xf]
  %v48 = vld [vmem:[%s1 + $0x4] sm:$0xf]
  %v49 = vld [vmem:[%s1 + $0x8] sm:$0xf]
  %v50 = vld [vmem:[%s1 + $0xc] sm:$0xf]
  %v51 = vld [vmem:[%s1 + $0x10] sm:$0xf]
  %v52 = vld [vmem:[%s1 + $0x14] sm:$0xf]
  %v53 = vld [vmem:[%s1 + $0x18] sm:$0xf]
  %v54 = vld [vmem:[%s1 + $0x1c] sm:$0xf]
  %v55 = vld [vmem:[%s1 + $0x20] sm:$0xf]
  %v56 = vld [vmem:[%s1 + $0x24] sm:$0xf]
  %v57 = vld [vmem:[%s1 + $0x28] sm:$0xf]
  %v58 = vld [vmem:[%s1 + $0x2c] sm:$0xf]
  %v59 = vld [vmem:[%s1 + $0x30] sm:$0xf]
  %v60 = vld [vmem:[%s1 + $0x34] sm:$0xf]
  %v61 = vld [vmem:[%s1 + $0x38] sm:$0xf]
  %v62 = vld [vmem:[%s1 + $0x3c] sm:$0xf]
  %v63 = vld [vmem:[%s1 + $0x40] sm:$0xf]
  %v64 = vld [vmem:[%s1 + $0x44] sm:$0xf]
  %v65 = vld [vmem:[%s1 + $0x48] sm:$0xf]
  %v66 = vld [vmem:[%s1 + $0x4c] sm:$0xf]
  %v67 = vld [vmem:[%s1 + $0x50] sm:$0xf]
  %v68 = vld [vmem:[%s1 + $0x54] sm:$0xf]
  %v69 = vld [vmem:[%s1 + $0x58] sm:$0xf]
  %v70 = vld [vmem:[%s1 + $0x5c] sm:$0xf]
  %v71 = vld [vmem:[%s1 + $0x60] sm:$0xf]
  %v72 = vld [vmem:[%s1 + $0x64] sm:$0xf]
  %v73 = vld [vmem:[%s1 + $0x68] sm:$0xf]
  %v74 = vld [vmem:[%s1 + $0x6c] sm:$0xf]
  %v75 = vld [vmem:[%s1 + $0x70] sm:$0xf]
  %v76 = vld [vmem:[%s1 + $0x74] sm:$0xf]
  %v77 = vld [vmem:[%s1 + $0x78] sm:$0xf]
  %v78 = vld [vmem:[%s1 + $0x7c] sm:$0xf]
  %v79 = vld [vmem:[%s1 + $0x80] sm:$0xf]
  %v80 = vld [vmem:[%s1 + $0x84] sm:$0xf]
  %v81 = vld [vmem:[%s1 + $0x88] sm:$0xf]
  %v82 = vld [vmem:[%s1 + $0x8c] sm:$0xf]
  %v83 = vld [vmem:[%s2] sm:$0x1]
  %v85 = vlaneseq
  %v86 = vshrl.u32 %v85, 7
  %v87 = vsub.s32 0, %v86
  %v88 = vrot.slane %v83, %v87
  %v122 = vunpack.c.l.b16 %v15
  %v123 = vunpack.c.h.b16 %v15
  %v124 = vunpack.c.l.b16 %v16
  %v125 = vunpack.c.l.b16 %v17
  %v126 = vunpack.c.h.b16 %v17
  %v127 = vunpack.c.l.b16 %v18
  %v128 = vunpack.c.l.b16 %v19
  %v129 = vunpack.c.h.b16 %v19
  %v130 = vunpack.c.l.b16 %v20
  %v131 = vunpack.c.l.b16 %v21
  %v132 = vunpack.c.h.b16 %v21
  %v133 = vunpack.c.l.b16 %v22
  %v134 = vunpack.c.l.b16 %v23
  %v135 = vunpack.c.h.b16 %v23
  %v136 = vunpack.c.l.b16 %v24
  %v137 = vunpack.c.l.b16 %v25
  %v138 = vunpack.c.h.b16 %v25
  %v139 = vunpack.c.l.b16 %v26
  %v140 = vunpack.c.l.b16 %v27
  %v141 = vunpack.c.h.b16 %v27
  %v142 = vunpack.c.l.b16 %v28
  %v143 = vunpack.c.l.b16 %v29
  %v144 = vunpack.c.h.b16 %v29
  %v145 = vunpack.c.l.b16 %v30
  %v146 = vunpack.c.l.b16 %v31
  %v147 = vunpack.c.h.b16 %v31
  %v148 = vunpack.c.l.b16 %v32
  %v149 = vunpack.c.l.b16 %v33
  %v150 = vunpack.c.h.b16 %v33
  %v151 = vunpack.c.l.b16 %v34
  %v152 = vunpack.c.l.b16 %v35
  %v153 = vunpack.c.h.b16 %v35
  %v154 = vunpack.c.l.b16 %v36
  %v155 = vunpack.c.l.b16 %v37
  %v156 = vunpack.c.h.b16 %v37
  %v157 = vunpack.c.l.b16 %v38
  %v158 = vunpack.c.l.b16 %v39
  %v159 = vunpack.c.h.b16 %v39
  %v160 = vunpack.c.l.b16 %v40
  %v161 = vunpack.c.l.b16 %v41
  %v162 = vunpack.c.h.b16 %v41
  %v163 = vunpack.c.l.b16 %v42
  %v164 = vunpack.c.l.b16 %v43
  %v165 = vunpack.c.h.b16 %v43
  %v166 = vunpack.c.l.b16 %v44
  %v167 = vunpack.c.l.b16 %v45
  %v168 = vunpack.c.h.b16 %v45
  %v169 = vunpack.c.l.b16 %v46
  %v170 = vpack.c.b16 %v125, %v122
  %v171 = vpack.c.b16 %v126, %v123
  %v172 = vpack.c.b16 %v127, %v124
  %v173 = vpack.c.b16 %v131, %v128
  %v174 = vpack.c.b16 %v132, %v129
  %v175 = vpack.c.b16 %v133, %v130
  %v176 = vpack.c.b16 %v137, %v134
  %v177 = vpack.c.b16 %v138, %v135
  %v178 = vpack.c.b16 %v139, %v136
  %v179 = vpack.c.b16 %v143, %v140
  %v180 = vpack.c.b16 %v144, %v141
  %v181 = vpack.c.b16 %v145, %v142
  %v182 = vpack.c.b16 %v149, %v146
  %v183 = vpack.c.b16 %v150, %v147
  %v184 = vpack.c.b16 %v151, %v148
  %v185 = vpack.c.b16 %v155, %v152
  %v186 = vpack.c.b16 %v156, %v153
  %v187 = vpack.c.b16 %v157, %v154
  %v188 = vpack.c.b16 %v161, %v158
  %v189 = vpack.c.b16 %v162, %v159
  %v190 = vpack.c.b16 %v163, %v160
  %v191 = vpack.c.b16 %v167, %v164
  %v192 = vpack.c.b16 %v168, %v165
  %v193 = vpack.c.b16 %v169, %v166
  %v246 = vunpack.c.l.b16 %v47
  %v247 = vunpack.c.l.b16 %v48
  %v248 = vunpack.c.l.b16 %v49
  %v249 = vunpack.c.l.b16 %v50
  %v250 = vunpack.c.l.b16 %v51
  %v251 = vunpack.c.l.b16 %v52
  %v252 = vunpack.c.l.b16 %v53
  %v253 = vunpack.c.l.b16 %v54
  %v254 = vunpack.c.l.b16 %v55
  %v255 = vunpack.c.l.b16 %v56
  %v256 = vunpack.c.l.b16 %v57
  %v257 = vunpack.c.l.b16 %v58
  %v258 = vunpack.c.l.b16 %v59
  %v259 = vunpack.c.l.b16 %v60
  %v260 = vunpack.c.l.b16 %v61
  %v261 = vunpack.c.l.b16 %v62
  %v262 = vunpack.c.l.b16 %v63
  %v263 = vunpack.c.l.b16 %v64
  %v264 = vunpack.c.l.b16 %v65
  %v265 = vunpack.c.l.b16 %v66
  %v266 = vunpack.c.l.b16 %v67
  %v267 = vunpack.c.l.b16 %v68
  %v268 = vunpack.c.l.b16 %v69
  %v269 = vunpack.c.l.b16 %v70
  %v270 = vunpack.c.l.b16 %v71
  %v271 = vunpack.c.l.b16 %v72
  %v272 = vunpack.c.l.b16 %v73
  %v273 = vunpack.c.l.b16 %v74
  %v274 = vunpack.c.l.b16 %v75
  %v275 = vunpack.c.l.b16 %v76
  %v276 = vunpack.c.l.b16 %v77
  %v277 = vunpack.c.l.b16 %v78
  %v278 = vunpack.c.l.b16 %v79
  %v279 = vunpack.c.l.b16 %v80
  %v280 = vunpack.c.l.b16 %v81
  %v281 = vunpack.c.l.b16 %v82
  %v282 = vpack.c.b16 %v247, %v246
  %v283 = vpack.c.b16 %v249, %v248
  %v284 = vpack.c.b16 %v251, %v250
  %v285 = vpack.c.b16 %v253, %v252
  %v286 = vpack.c.b16 %v255, %v254
  %v287 = vpack.c.b16 %v257, %v256
  %v288 = vpack.c.b16 %v259, %v258
  %v289 = vpack.c.b16 %v261, %v260
  %v290 = vpack.c.b16 %v263, %v262
  %v291 = vpack.c.b16 %v265, %v264
  %v292 = vpack.c.b16 %v267, %v266
  %v293 = vpack.c.b16 %v269, %v268
  %v294 = vpack.c.b16 %v271, %v270
  %v295 = vpack.c.b16 %v273, %v272
  %v296 = vpack.c.b16 %v275, %v274
  %v297 = vpack.c.b16 %v277, %v276
  %v298 = vpack.c.b16 %v279, %v278
  %v299 = vpack.c.b16 %v281, %v280
  %vm318 = vcmask 261120
  %v320 = vsel %vm318, %v172, 0
  %v323 = vsel %vm318, %v175, 0
  %v326 = vsel %vm318, %v178, 0
  %v329 = vsel %vm318, %v181, 0
  %v332 = vsel %vm318, %v184, 0
  %v335 = vsel %vm318, %v187, 0
  %v338 = vsel %vm318, %v190, 0
  %v341 = vsel %vm318, %v193, 0
  %343 = vmatprep.subr.bf16.mxu0 0
  %344 = vmatpush1.bf16.msra.mxu0 %v282
  %345 = vmatprep.subr.bf16.mxu0 0
  %346 = vmatpush1.bf16.msra.mxu0 %v283
  %347 = vmatprep.subr.bf16.mxu0 0
  %348 = vmatpush1.bf16.msra.mxu0 %v284
  %349 = vmatprep.subr.bf16.mxu0 0
  %350 = vmatpush1.bf16.msra.mxu0 %v285
  %351 = vmatprep.subr.bf16.mxu0 0
  %352 = vmatpush1.bf16.msra.mxu0 %v286
  %353 = vmatprep.subr.bf16.mxu0 0
  %354 = vmatpush1.bf16.msra.mxu0 %v287
  %355 = vmatprep.subr.bf16.mxu0 0
  %356 = vmatpush1.bf16.msra.mxu0 %v288
  %357 = vmatprep.subr.bf16.mxu0 0
  %358 = vmatpush1.bf16.msra.mxu0 %v289
  %359 = vmatprep.subr.bf16.mxu0 0
  %360 = vmatpush1.bf16.msra.mxu0 %v290
  %361 = vmatprep.subr.bf16.mxu0 0
  %362 = vmatpush1.bf16.msra.mxu0 %v291
  %363 = vmatprep.subr.bf16.mxu0 0
  %364 = vmatpush1.bf16.msra.mxu0 %v292
  %365 = vmatprep.subr.bf16.mxu0 0
  %366 = vmatpush1.bf16.msra.mxu0 %v293
  %367 = vmatprep.subr.bf16.mxu0 0
  %368 = vmatpush1.bf16.msra.mxu0 %v294
  %369 = vmatprep.subr.bf16.mxu0 0
  %370 = vmatpush1.bf16.msra.mxu0 %v295
  %371 = vmatprep.subr.bf16.mxu0 0
  %372 = vmatpush1.bf16.msra.mxu0 %v296
  %373 = vmatprep.subr.bf16.mxu0 0
  %374 = vmatpush1.bf16.msra.mxu0 %v297
  %375 = vmatprep.mubr.bf16.mxu0 %v171
  %376 = vmatmul.mubr.bf16.gmra.mrb[0].mxu0 %v170
  %v377 = vpop.f32.mrb[0].mxu0
  %v378 = vadd.f32 %v88, %v377
  %v379 = vpop.f32.mrb[0].mxu0
  %v380 = vpop.f32.mrb[0].mxu0
  %v381 = vadd.f32 %v88, %v380
  %v382 = vpop.f32.mrb[0].mxu0
  %383 = vmatprep.mubr.bf16.mxu0 %v174
  %384 = vmatmul.mubr.bf16.gmra.mrb[0].mxu0 %v173
  %v385 = vpop.f32.mrb[0].mxu0
  %v386 = vadd.f32 %v88, %v385
  %v387 = vpop.f32.mrb[0].mxu0
  %v388 = vpop.f32.mrb[0].mxu0
  %v389 = vadd.f32 %v88, %v388
  %v390 = vpop.f32.mrb[0].mxu0
  %391 = vmatprep.mubr.bf16.mxu0 %v177
  %392 = vmatmul.mubr.bf16.gmra.mrb[0].mxu0 %v176
  %v393 = vpop.f32.mrb[0].mxu0
  %v394 = vadd.f32 %v88, %v393
  %v395 = vpop.f32.mrb[0].mxu0
  %v396 = vpop.f32.mrb[0].mxu0
  %v397 = vadd.f32 %v88, %v396
  %v398 = vpop.f32.mrb[0].mxu0
  %399 = vmatprep.mubr.bf16.mxu0 %v180
  %400 = vmatmul.mubr.bf16.gmra.mrb[0].mxu0 %v179
  %v401 = vpop.f32.mrb[0].mxu0
  %v402 = vadd.f32 %v88, %v401
  %v403 = vpop.f32.mrb[0].mxu0
  %v404 = vpop.f32.mrb[0].mxu0
  %v405 = vadd.f32 %v88, %v404
  %v406 = vpop.f32.mrb[0].mxu0
  %407 = vmatprep.mubr.bf16.mxu0 %v183
  %408 = vmatmul.mubr.bf16.gmra.mrb[0].mxu0 %v182
  %v409 = vpop.f32.mrb[0].mxu0
  %v410 = vadd.f32 %v88, %v409
  %v411 = vpop.f32.mrb[0].mxu0
  %v412 = vpop.f32.mrb[0].mxu0
  %v413 = vadd.f32 %v88, %v412
  %v414 = vpop.f32.mrb[0].mxu0
  %415 = vmatprep.mubr.bf16.mxu0 %v186
  %416 = vmatmul.mubr.bf16.gmra.mrb[0].mxu0 %v185
  %v417 = vpop.f32.mrb[0].mxu0
  %v418 = vadd.f32 %v88, %v417
  %v419 = vpop.f32.mrb[0].mxu0
  %v420 = vpop.f32.mrb[0].mxu0
  %v421 = vadd.f32 %v88, %v420
  %v422 = vpop.f32.mrb[0].mxu0
  %423 = vmatprep.mubr.bf16.mxu0 %v189
  %424 = vmatmul.mubr.bf16.gmra.mrb[0].mxu0 %v188
  %v425 = vpop.f32.mrb[0].mxu0
  %v426 = vadd.f32 %v88, %v425
  %v427 = vpop.f32.mrb[0].mxu0
  %v428 = vpop.f32.mrb[0].mxu0
  %v429 = vadd.f32 %v88, %v428
  %v430 = vpop.f32.mrb[0].mxu0
  %431 = vmatprep.mubr.bf16.mxu0 %v192
  %432 = vmatmul.mubr.bf16.gmra.mrb[0].mxu0 %v191
  %v433 = vpop.f32.mrb[0].mxu0
  %v434 = vadd.f32 %v88, %v433
  %v435 = vpop.f32.mrb[0].mxu0
  %v436 = vpop.f32.mrb[0].mxu0
  %v437 = vadd.f32 %v88, %v436
  %v438 = vpop.f32.mrb[0].mxu0
  %439 = vdwg.mxu0
  %440 = vmatprep.subr.bf16.mxu0 0
  %441 = vmatpush1.bf16.msra.mxu0 %v298
  %442 = vmatprep.subr.bf16.mxu0 0
  %443 = vmatpush1.bf16.msra.mxu0 %v299
  %444 = vmatprep.subr.bf16.mxu0 0
  %445 = vmatpush1.bf16.msra.mxu0 0
  %446 = vmatprep.subr.bf16.mxu0 0
  %447 = vmatpush1.bf16.msra.mxu0 0
  %448 = vmatprep.subr.bf16.mxu0 0
  %449 = vmatpush1.bf16.msra.mxu0 0
  %450 = vmatprep.subr.bf16.mxu0 0
  %451 = vmatpush1.bf16.msra.mxu0 0
  %452 = vmatprep.subr.bf16.mxu0 0
  %453 = vmatpush1.bf16.msra.mxu0 0
  %454 = vmatprep.subr.bf16.mxu0 0
  %455 = vmatpush1.bf16.msra.mxu0 0
  %456 = vmatprep.subr.bf16.mxu0 0
  %457 = vmatpush1.bf16.msra.mxu0 0
  %458 = vmatprep.subr.bf16.mxu0 0
  %459 = vmatpush1.bf16.msra.mxu0 0
  %460 = vmatprep.subr.bf16.mxu0 0
  %461 = vmatpush1.bf16.msra.mxu0 0
  %462 = vmatprep.subr.bf16.mxu0 0
  %463 = vmatpush1.bf16.msra.mxu0 0
  %464 = vmatprep.subr.bf16.mxu0 0
  %465 = vmatpush1.bf16.msra.mxu0 0
  %466 = vmatprep.subr.bf16.mxu0 0
  %467 = vmatpush1.bf16.msra.mxu0 0
  %468 = vmatprep.subr.bf16.mxu0 0
  %469 = vmatpush1.bf16.msra.mxu0 0
  %470 = vmatprep.subr.bf16.mxu0 0
  %471 = vmatpush1.bf16.msra.mxu0 0
  %472 = vmatprep.mubr.bf16.mxu0 0
  %473 = vmatmul.mubr.bf16.gmra.mrb[0].mxu0 %v320
  %v474 = vpop.f32.mrb[0].mxu0
  %v475 = vadd.f32 %v378, %v474
  %v476 = vpop.f32.mrb[0].mxu0
  %v477 = vpop.f32.mrb[0].mxu0
  %v478 = vadd.f32 %v381, %v477
  %v479 = vpop.f32.mrb[0].mxu0
  %480 = vmatprep.mubr.bf16.mxu0 0
  %481 = vmatmul.mubr.bf16.gmra.mrb[0].mxu0 %v323
  %v482 = vpop.f32.mrb[0].mxu0
  %v483 = vadd.f32 %v386, %v482
  %v484 = vpop.f32.mrb[0].mxu0
  %v485 = vpop.f32.mrb[0].mxu0
  %v486 = vadd.f32 %v389, %v485
  %v487 = vpop.f32.mrb[0].mxu0
  %488 = vmatprep.mubr.bf16.mxu0 0
  %489 = vmatmul.mubr.bf16.gmra.mrb[0].mxu0 %v326
  %v490 = vpop.f32.mrb[0].mxu0
  %v491 = vadd.f32 %v394, %v490
  %v492 = vpop.f32.mrb[0].mxu0
  %v493 = vpop.f32.mrb[0].mxu0
  %v494 = vadd.f32 %v397, %v493
  %v495 = vpop.f32.mrb[0].mxu0
  %496 = vmatprep.mubr.bf16.mxu0 0
  %497 = vmatmul.mubr.bf16.gmra.mrb[0].mxu0 %v329
  %v498 = vpop.f32.mrb[0].mxu0
  %v499 = vadd.f32 %v402, %v498
  %v500 = vpop.f32.mrb[0].mxu0
  %v501 = vpop.f32.mrb[0].mxu0
  %v502 = vadd.f32 %v405, %v501
  %v503 = vpop.f32.mrb[0].mxu0
  %504 = vmatprep.mubr.bf16.mxu0 0
  %505 = vmatmul.mubr.bf16.gmra.mrb[0].mxu0 %v332
  %v506 = vpop.f32.mrb[0].mxu0
  %v507 = vadd.f32 %v410, %v506
  %v508 = vpop.f32.mrb[0].mxu0
  %v509 = vpop.f32.mrb[0].mxu0
  %v510 = vadd.f32 %v413, %v509
  %v511 = vpop.f32.mrb[0].mxu0
  %512 = vmatprep.mubr.bf16.mxu0 0
  %513 = vmatmul.mubr.bf16.gmra.mrb[0].mxu0 %v335
  %v514 = vpop.f32.mrb[0].mxu0
  %v515 = vadd.f32 %v418, %v514
  %v516 = vpop.f32.mrb[0].mxu0
  %v517 = vpop.f32.mrb[0].mxu0
  %v518 = vadd.f32 %v421, %v517
  %v519 = vpop.f32.mrb[0].mxu0
  %520 = vmatprep.mubr.bf16.mxu0 0
  %521 = vmatmul.mubr.bf16.gmra.mrb[0].mxu0 %v338
  %v522 = vpop.f32.mrb[0].mxu0
  %v523 = vadd.f32 %v426, %v522
  %v524 = vpop.f32.mrb[0].mxu0
  %v525 = vpop.f32.mrb[0].mxu0
  %v526 = vadd.f32 %v429, %v525
  %v527 = vpop.f32.mrb[0].mxu0
  %528 = vmatprep.mubr.bf16.mxu0 0
  %529 = vmatmul.mubr.bf16.gmra.mrb[0].mxu0 %v341
  %v530 = vpop.f32.mrb[0].mxu0
  %v531 = vadd.f32 %v434, %v530
  %v532 = vpop.f32.mrb[0].mxu0
  %v533 = vpop.f32.mrb[0].mxu0
  %v534 = vadd.f32 %v437, %v533
  %v535 = vpop.f32.mrb[0].mxu0
  %536 = vdwg.mxu0
  %v537 = vtanh.pop %v475
  %v538 = vtanh.pop %v478
  %v539 = vtanh.pop %v483
  %v540 = vtanh.pop %v486
  %v541 = vtanh.pop %v491
  %v542 = vtanh.pop %v494
  %v543 = vtanh.pop %v499
  %v544 = vtanh.pop %v502
  %v545 = vtanh.pop %v507
  %v546 = vtanh.pop %v510
  %v547 = vtanh.pop %v515
  %v548 = vtanh.pop %v518
  %v549 = vtanh.pop %v523
  %v550 = vtanh.pop %v526
  %v551 = vtanh.pop %v531
  %v552 = vtanh.pop %v534
  %553 = vst [vmem:[%s3] sm:$0xff] %v537
  %554 = vst [vmem:[%s3 + $0x8] sm:$0xff] %v538
  %555 = vst [vmem:[%s3 + $0x10] sm:$0xff] %v539
  %556 = vst [vmem:[%s3 + $0x18] sm:$0xff] %v540
  %557 = vst [vmem:[%s3 + $0x20] sm:$0xff] %v541
  %558 = vst [vmem:[%s3 + $0x28] sm:$0xff] %v542
  %559 = vst [vmem:[%s3 + $0x30] sm:$0xff] %v543
  %560 = vst [vmem:[%s3 + $0x38] sm:$0xff] %v544
  %561 = vst [vmem:[%s3 + $0x40] sm:$0xff] %v545
  %562 = vst [vmem:[%s3 + $0x48] sm:$0xff] %v546
  %563 = vst [vmem:[%s3 + $0x50] sm:$0xff] %v547
  %564 = vst [vmem:[%s3 + $0x58] sm:$0xff] %v548
  %565 = vst [vmem:[%s3 + $0x60] sm:$0xff] %v549
  %566 = vst [vmem:[%s3 + $0x68] sm:$0xff] %v550
  %567 = vst [vmem:[%s3 + $0x70] sm:$0xff] %v551
  %568 = vst [vmem:[%s3 + $0x78] sm:$0xff] %v552
  // Predicated region
  $region14: #{vqvae_forward.37} parent=0 // pred_check
    _
  $region15: #{vqvae_forward.37} parent=0 // pred_check_branch
    %570 = sbr.rel (0) target = $region17
  $region16: #{vqvae_forward.37} parent=0 // pred_region
    _
  $region17: #{vqvae_forward.37} parent=0 // pred_fallthru
    _
  // Predicated region
  $region18: #{vqvae_forward.37} parent=0 // pred_check
    _
  $region19: #{vqvae_forward.37} parent=0 // pred_check_branch
    %572 = sbr.rel (0) target = $region21
  $region20: #{vqvae_forward.37} parent=0 // pred_region
    _
  $region21: #{vqvae_forward.37} parent=0 // pred_fallthru
    _

</llo_original>
